<compile_context>
chip_gen: v7x
topology: tpu7x:2x2x1
jax: 0.10.0
libtpu: 0.0.40
codegen_flags: <defaults>
</compile_context>

<pallas_src>
import jax
import jax.numpy as jnp
from jax import lax
from jax.experimental import pallas as pl
from jax.experimental.pallas import tpu as pltpu

_K = 5       # conv kernel size
_S = 2       # conv stride
_EPS = 1e-5  # BatchNorm eps


def _conv_size_out(size, k=_K, s=_S):
    return (size - (k - 1) - 1) // s + 1


def _layer_dims(h, w, c0, chans):
    """Per conv layer: (Hi, Wi, Ci, Ho, Wo, Co)."""
    dims = []
    hi, wi, ci = h, w, c0
    for co in chans:
        ho, wo = _conv_size_out(hi), _conv_size_out(wi)
        dims.append((hi, wi, ci, ho, wo, co))
        hi, wi, ci = ho, wo, co
    return dims


# ----------------------------------------------------------------------------
# Fused Pallas kernel: one grid step == one image of the batch
# ----------------------------------------------------------------------------
def _make_dqn_kernel(dims):
    ho1, wo1, c1 = dims[0][3], dims[0][4], dims[0][5]
    ho2, wo2, c2 = dims[1][3], dims[1][4], dims[1][5]
    ho3, wo3, c3 = dims[2][3], dims[2][4], dims[2][5]
    s1, s2, s3 = ho1 * wo1, ho2 * wo2, ho3 * wo3

    def kernel(p1_ref, w1_ref, b1_ref, w2_ref, b2_ref, w3_ref, b3_ref,
               wh_ref, bh_ref, o_ref, act1, pat2, act2, pat3):
        # ---- conv1 (+ folded BN) + ReLU on wrapper-built lane-dense patches ----
        y1 = jnp.dot(p1_ref[0], w1_ref[...], preferred_element_type=jnp.float32)
        act1[...] = jnp.maximum(y1 + b1_ref[...], 0.0)            # (s1, c1) in VMEM

        # ---- im2col for conv2: one lane-dense (wo2, K*K*c1) store per output row ----
        for oy in range(ho2):
            taps = []
            for di in range(_K):
                src = (_S * oy + di) * wo1
                for dj in range(_K):
                    taps.append(act1[pl.ds(src + dj, wo2, _S), :])     # (wo2, c1)
            pat2[oy * wo2:(oy + 1) * wo2, :] = jnp.concatenate(taps, axis=-1)

        y2 = jnp.dot(pat2[...], w2_ref[...], preferred_element_type=jnp.float32)
        act2[...] = jnp.maximum(y2 + b2_ref[...], 0.0)            # (s2, c2) in VMEM

        # ---- im2col for conv3 ----
        for oy in range(ho3):
            taps = []
            for di in range(_K):
                src = (_S * oy + di) * wo2
                for dj in range(_K):
                    taps.append(act2[pl.ds(src + dj, wo3, _S), :])     # (wo3, c2)
            pat3[oy * wo3:(oy + 1) * wo3, :] = jnp.concatenate(taps, axis=-1)

        y3 = jnp.dot(pat3[...], w3_ref[...], preferred_element_type=jnp.float32)
        y3 = jnp.maximum(y3 + b3_ref[...], 0.0)                   # (s3, c3)

        # ---- linear head: wh rows are pre-permuted to (s, c) order, so contract the
        #      conv3 tile row-by-row (no in-kernel relayout / regroup buffer needed).
        acc = bh_ref[...]
        for s in range(s3):
            acc = acc + jnp.dot(y3[s:s + 1, :], wh_ref[s * c3:(s + 1) * c3, :],
                                preferred_element_type=jnp.float32)
        o_ref[0] = acc

    scratch = [
        pltpu.VMEM((s1, c1), jnp.float32),               # act1
        pltpu.VMEM((s2, _K * _K * c1), jnp.float32),     # conv2 patches
        pltpu.VMEM((s2, c2), jnp.float32),               # act2
        pltpu.VMEM((s3, _K * _K * c2), jnp.float32),     # conv3 patches
    ]
    return kernel, scratch


# ----------------------------------------------------------------------------
# Trace-time parameter folding (reshapes/constants only)
# ----------------------------------------------------------------------------
def _fold_conv_bn(conv_w, conv_b, gamma, beta, mean, var, eps=_EPS):
    o, i, kh, kw = conv_w.shape
    w_mat = jnp.transpose(conv_w, (2, 3, 1, 0)).reshape(kh * kw * i, o)
    s = gamma / jnp.sqrt(var + eps)
    # y = relu( patches @ (W * s) + (s*conv_b + beta - s*mean) )
    return w_mat * s[None, :], (s * conv_b + beta - mean * s).reshape(1, o)


def dqn_forward(x_nchw, params):
    b, c0, h, w = x_nchw.shape
    chans = (params["w1"].shape[0], params["w2"].shape[0], params["w3"].shape[0])
    outputs = params["head_w"].shape[0]
    dims = _layer_dims(h, w, c0, chans)
    ho1, wo1, c1 = dims[0][3], dims[0][4], dims[0][5]
    ho2, wo2, c2 = dims[1][3], dims[1][4], dims[1][5]
    ho3, wo3, c3 = dims[2][3], dims[2][4], dims[2][5]
    s1, s2, s3 = ho1 * wo1, ho2 * wo2, ho3 * wo3

    w1m, b1 = _fold_conv_bn(params["w1"], params["b1"], params["g1"],
                            params["be1"], params["m1"], params["v1"])
    w2m, b2 = _fold_conv_bn(params["w2"], params["b2"], params["g2"],
                            params["be2"], params["m2"], params["v2"])
    w3m, b3 = _fold_conv_bn(params["w3"], params["b3"], params["g3"],
                            params["be3"], params["m3"], params["v3"])

    # Fold the PyTorch NCHW flatten order (index = c*s3 + s) into the head weight's
    # row order (s*c3 + c) used by the kernel.
    hw = params["head_w"].reshape(outputs, c3, s3)
    wh = jnp.transpose(hw, (2, 1, 0)).reshape(s3 * c3, outputs)
    bh = params["head_b"].reshape(1, outputs)

    # Wrapper-side im2col for layer 1: lane-dense (B, Ho1*Wo1, K*K*C0) patches.
    # Replaces the lane-sparse (B*H*W, 3) input layout and its ~900 narrow in-kernel copies.
    xn = jnp.transpose(x_nchw, (0, 2, 3, 1))                        # (B, H, W, C0)
    taps = []
    for di in range(_K):
        for dj in range(_K):
            taps.append(xn[:, di:di + _S * (ho1 - 1) + 1:_S,
                           dj:dj + _S * (wo1 - 1) + 1:_S, :])       # (B, ho1, wo1, C0)
    p1 = jnp.concatenate(taps, axis=-1).reshape(b, s1, _K * _K * c0)

    kernel, scratch = _make_dqn_kernel(dims)

    flops = 2 * b * (s1 * (_K * _K * c0) * c1
                     + s2 * (_K * _K * c1) * c2
                     + s3 * (_K * _K * c2) * c3
                     + s3 * c3 * outputs)
    bytes_accessed = 4 * (p1.size + w1m.size + w2m.size + w3m.size + wh.size
                          + b1.size + b2.size + b3.size + bh.size + b * outputs)

    out = pl.pallas_call(
        kernel,
        out_shape=jax.ShapeDtypeStruct((b, 1, outputs), jnp.float32),
        grid_spec=pltpu.PrefetchScalarGridSpec(
            num_scalar_prefetch=0,
            grid=(b,),
            in_specs=[
                pl.BlockSpec((1, s1, _K * _K * c0), lambda i: (i, 0, 0)),  # per-image patches
                pl.BlockSpec(w1m.shape, lambda i: (0, 0)),
                pl.BlockSpec(b1.shape, lambda i: (0, 0)),
                pl.BlockSpec(w2m.shape, lambda i: (0, 0)),
                pl.BlockSpec(b2.shape, lambda i: (0, 0)),
                pl.BlockSpec(w3m.shape, lambda i: (0, 0)),
                pl.BlockSpec(b3.shape, lambda i: (0, 0)),
                pl.BlockSpec(wh.shape, lambda i: (0, 0)),
                pl.BlockSpec(bh.shape, lambda i: (0, 0)),
            ],
            out_specs=pl.BlockSpec((1, 1, outputs), lambda i: (i, 0, 0)),
            scratch_shapes=scratch,
        ),
        compiler_params=pltpu.CompilerParams(
            dimension_semantics=("parallel",),          # megacore batch split on v7x
            vmem_limit_bytes=32 * 1024 * 1024,
        ),
        cost_estimate=pl.CostEstimate(flops=flops, transcendentals=0,
                                      bytes_accessed=bytes_accessed),
    )(p1, w1m, b1, w2m, b2, w3m, b3, wh, bh)
    return out.reshape(b, outputs)


# ----------------------------------------------------------------------------
# Reference (plain JAX/XLA) for correctness check
# ----------------------------------------------------------------------------
def _ref_forward(x, p, eps=_EPS):
    def block(x, w, b, g, be, m, v):
        y = lax.conv_general_dilated(
            x, w, (2, 2), "VALID", dimension_numbers=("NCHW", "OIHW", "NCHW"))
        y = y + b[None, :, None, None]
        y = g[None, :, None, None] * (y - m[None, :, None, None]) \
            / jnp.sqrt(v[None, :, None, None] + eps) + be[None, :, None, None]
        return jnp.maximum(y, 0.0)

    y = block(x, p["w1"], p["b1"], p["g1"], p["be1"], p["m1"], p["v1"])
    y = block(y, p["w2"], p["b2"], p["g2"], p["be2"], p["m2"], p["v2"])
    y = block(y, p["w3"], p["b3"], p["g3"], p["be3"], p["m3"], p["v3"])
    flat = y.reshape(y.shape[0], -1)
    return flat @ p["head_w"].T + p["head_b"]


# ----------------------------------------------------------------------------
# Deterministic parameter init (shapes from DQN.__init__)
# ----------------------------------------------------------------------------
def init_params(h, w, outputs, key):
    ks = jax.random.split(key, 20)
    convw = _conv_size_out(_conv_size_out(_conv_size_out(w)))
    convh = _conv_size_out(_conv_size_out(_conv_size_out(h)))
    lin_in = convw * convh * 32

    def norm(k, shape, scale):
        return scale * jax.random.normal(k, shape, jnp.float32)

    p = {
        "w1": norm(ks[0], (16, 3, 5, 5), 0.05),   "b1": norm(ks[1], (16,), 0.05),
        "g1": 1.0 + norm(ks[2], (16,), 0.05),     "be1": norm(ks[3], (16,), 0.05),
        "m1": norm(ks[4], (16,), 0.05),           "v1": 1.0 + jnp.abs(norm(ks[5], (16,), 0.05)),
        "w2": norm(ks[6], (32, 16, 5, 5), 0.05),  "b2": norm(ks[7], (32,), 0.05),
        "g2": 1.0 + norm(ks[8], (32,), 0.05),     "be2": norm(ks[9], (32,), 0.05),
        "m2": norm(ks[10], (32,), 0.05),          "v2": 1.0 + jnp.abs(norm(ks[11], (32,), 0.05)),
        "w3": norm(ks[12], (32, 32, 5, 5), 0.05), "b3": norm(ks[13], (32,), 0.05),
        "g3": 1.0 + norm(ks[14], (32,), 0.05),    "be3": norm(ks[15], (32,), 0.05),
        "m3": norm(ks[16], (32,), 0.05),          "v3": 1.0 + jnp.abs(norm(ks[17], (32,), 0.05)),
        "head_w": norm(ks[18], (outputs, lin_in), 0.05),
        "head_b": norm(ks[19], (outputs,), 0.05),
    }
    return p


if __name__ == "__main__":
    B, H, W, OUTPUTS = 2, 40, 40, 4
    key = jax.random.PRNGKey(0)
    kx, kp = jax.random.split(key)
    x = jax.random.normal(kx, (B, 3, H, W), jnp.float32)
    params = init_params(H, W, OUTPUTS, kp)

    fwd = jax.jit(dqn_forward)
    out = jax.block_until_ready(fwd(x, params))
    ref = jax.block_until_ready(_ref_forward(x, params))

    assert out.shape == (B, OUTPUTS), out.shape
    assert jnp.allclose(out, ref, rtol=1e-4, atol=1e-4), (out, ref)
    print("KERNEL_OK")
</pallas_src>

<mosaic_0001>
module attributes {stable_mosaic.version = 11 : i64} {
  func.func @kernel(%arg0: i32, %arg1: memref<1x324x75xf32, #tpu.memory_space<vmem>>, %arg2: memref<75x16xf32, #tpu.memory_space<vmem>>, %arg3: memref<1x16xf32, #tpu.memory_space<vmem>>, %arg4: memref<400x32xf32, #tpu.memory_space<vmem>>, %arg5: memref<1x32xf32, #tpu.memory_space<vmem>>, %arg6: memref<800x32xf32, #tpu.memory_space<vmem>>, %arg7: memref<1x32xf32, #tpu.memory_space<vmem>>, %arg8: memref<128x4xf32, #tpu.memory_space<vmem>>, %arg9: memref<1x4xf32, #tpu.memory_space<vmem>>, %arg10: memref<1x1x4xf32, #tpu.memory_space<vmem>>, %arg11: memref<324x16xf32, #tpu.memory_space<vmem>>, %arg12: memref<49x400xf32, #tpu.memory_space<vmem>>, %arg13: memref<49x32xf32, #tpu.memory_space<vmem>>, %arg14: memref<4x800xf32, #tpu.memory_space<vmem>>) attributes {dimension_semantics = [#tpu.dimension_semantics<parallel>], iteration_bounds = array<i64: 2>, scalar_prefetch = 0 : i64, scratch_operands = 4 : i64, tpu.core_type = #tpu.core_type<tc>, window_params = [{transform_indices = @transform_0, window_bounds = array<i64: 1, 324, 75>}, {pipeline_mode = #tpu.pipeline_mode<synchronous>, transform_indices = @transform_1, window_bounds = array<i64: 75, 16>}, {pipeline_mode = #tpu.pipeline_mode<synchronous>, transform_indices = @transform_2, window_bounds = array<i64: 1, 16>}, {pipeline_mode = #tpu.pipeline_mode<synchronous>, transform_indices = @transform_3, window_bounds = array<i64: 400, 32>}, {pipeline_mode = #tpu.pipeline_mode<synchronous>, transform_indices = @transform_4, window_bounds = array<i64: 1, 32>}, {pipeline_mode = #tpu.pipeline_mode<synchronous>, transform_indices = @transform_5, window_bounds = array<i64: 800, 32>}, {pipeline_mode = #tpu.pipeline_mode<synchronous>, transform_indices = @transform_6, window_bounds = array<i64: 1, 32>}, {pipeline_mode = #tpu.pipeline_mode<synchronous>, transform_indices = @transform_7, window_bounds = array<i64: 128, 4>}, {pipeline_mode = #tpu.pipeline_mode<synchronous>, transform_indices = @transform_8, window_bounds = array<i64: 1, 4>}, {transform_indices = @transform_9, window_bounds = array<i64: 1, 1, 4>}]} {
    %c0 = arith.constant 0 : index
    %c0_0 = arith.constant 0 : index
    %c0_1 = arith.constant 0 : index
    %0 = vector.load %arg1[%c0, %c0_0, %c0_1] : memref<1x324x75xf32, #tpu.memory_space<vmem>>, vector<1x324x75xf32>
    %1 = vector.shape_cast %0 : vector<1x324x75xf32> to vector<324x75xf32>
    %c0_2 = arith.constant 0 : index
    %c0_3 = arith.constant 0 : index
    %2 = vector.load %arg2[%c0_2, %c0_3] : memref<75x16xf32, #tpu.memory_space<vmem>>, vector<75x16xf32>
    %cst = arith.constant dense<0.000000e+00> : vector<324x16xf32>
    %3 = tpu.matmul %1, %2, %cst {dimension_numbers = #tpu.dot_dimension_numbers<[1], [0], [0], [1], [0, 0, 1, 1], [], []>} : vector<324x75xf32>, vector<75x16xf32>, vector<324x16xf32> -> vector<324x16xf32>
    %c0_4 = arith.constant 0 : index
    %c0_5 = arith.constant 0 : index
    %4 = vector.load %arg3[%c0_4, %c0_5] : memref<1x16xf32, #tpu.memory_space<vmem>>, vector<1x16xf32>
    %5 = vector.broadcast %4 : vector<1x16xf32> to vector<324x16xf32>
    %6 = arith.addf %3, %5 : vector<324x16xf32>
    %cst_6 = arith.constant 0.000000e+00 : f32
    %7 = vector.broadcast %cst_6 : f32 to vector<324x16xf32>
    %8 = arith.maximumf %6, %7 : vector<324x16xf32>
    %c0_7 = arith.constant 0 : index
    %c0_8 = arith.constant 0 : index
    %9 = vector.load %arg11[%c0_7, %c0_8] : memref<324x16xf32, #tpu.memory_space<vmem>>, vector<324x16xf32>
    tpu.vector_store %arg11[%c0_7, %c0_8], %8 {strides = array<i32>} : memref<324x16xf32, #tpu.memory_space<vmem>>, vector<324x16xf32>,
    %c0_9 = arith.constant 0 : index
    %c0_10 = arith.constant 0 : index
    %10 = tpu.strided_load %arg11[%c0_9, %c0_10] {strides = array<i32: 2, 1>} : memref<324x16xf32, #tpu.memory_space<vmem>>, vector<7x16xf32>
    %c1 = arith.constant 1 : index
    %c0_11 = arith.constant 0 : index
    %11 = tpu.strided_load %arg11[%c1, %c0_11] {strides = array<i32: 2, 1>} : memref<324x16xf32, #tpu.memory_space<vmem>>, vector<7x16xf32>
    %c2 = arith.constant 2 : index
    %c0_12 = arith.constant 0 : index
    %12 = tpu.strided_load %arg11[%c2, %c0_12] {strides = array<i32: 2, 1>} : memref<324x16xf32, #tpu.memory_space<vmem>>, vector<7x16xf32>
    %c3 = arith.constant 3 : index
    %c0_13 = arith.constant 0 : index
    %13 = tpu.strided_load %arg11[%c3, %c0_13] {strides = array<i32: 2, 1>} : memref<324x16xf32, #tpu.memory_space<vmem>>, vector<7x16xf32>
    %c4 = arith.constant 4 : index
    %c0_14 = arith.constant 0 : index
    %14 = tpu.strided_load %arg11[%c4, %c0_14] {strides = array<i32: 2, 1>} : memref<324x16xf32, #tpu.memory_space<vmem>>, vector<7x16xf32>
    %c18 = arith.constant 18 : index
    %c0_15 = arith.constant 0 : index
    %15 = tpu.strided_load %arg11[%c18, %c0_15] {strides = array<i32: 2, 1>} : memref<324x16xf32, #tpu.memory_space<vmem>>, vector<7x16xf32>
    %c19 = arith.constant 19 : index
    %c0_16 = arith.constant 0 : index
    %16 = tpu.strided_load %arg11[%c19, %c0_16] {strides = array<i32: 2, 1>} : memref<324x16xf32, #tpu.memory_space<vmem>>, vector<7x16xf32>
    %c20 = arith.constant 20 : index
    %c0_17 = arith.constant 0 : index
    %17 = tpu.strided_load %arg11[%c20, %c0_17] {strides = array<i32: 2, 1>} : memref<324x16xf32, #tpu.memory_space<vmem>>, vector<7x16xf32>
    %c21 = arith.constant 21 : index
    %c0_18 = arith.constant 0 : index
    %18 = tpu.strided_load %arg11[%c21, %c0_18] {strides = array<i32: 2, 1>} : memref<324x16xf32, #tpu.memory_space<vmem>>, vector<7x16xf32>
    %c22 = arith.constant 22 : index
    %c0_19 = arith.constant 0 : index
    %19 = tpu.strided_load %arg11[%c22, %c0_19] {strides = array<i32: 2, 1>} : memref<324x16xf32, #tpu.memory_space<vmem>>, vector<7x16xf32>
    %c36 = arith.constant 36 : index
    %c0_20 = arith.constant 0 : index
    %20 = tpu.strided_load %arg11[%c36, %c0_20] {strides = array<i32: 2, 1>} : memref<324x16xf32, #tpu.memory_space<vmem>>, vector<7x16xf32>
    %c37 = arith.constant 37 : index
    %c0_21 = arith.constant 0 : index
    %21 = tpu.strided_load %arg11[%c37, %c0_21] {strides = array<i32: 2, 1>} : memref<324x16xf32, #tpu.memory_space<vmem>>, vector<7x16xf32>
    %c38 = arith.constant 38 : index
    %c0_22 = arith.constant 0 : index
    %22 = tpu.strided_load %arg11[%c38, %c0_22] {strides = array<i32: 2, 1>} : memref<324x16xf32, #tpu.memory_space<vmem>>, vector<7x16xf32>
    %c39 = arith.constant 39 : index
    %c0_23 = arith.constant 0 : index
    %23 = tpu.strided_load %arg11[%c39, %c0_23] {strides = array<i32: 2, 1>} : memref<324x16xf32, #tpu.memory_space<vmem>>, vector<7x16xf32>
    %c40 = arith.constant 40 : index
    %c0_24 = arith.constant 0 : index
    %24 = tpu.strided_load %arg11[%c40, %c0_24] {strides = array<i32: 2, 1>} : memref<324x16xf32, #tpu.memory_space<vmem>>, vector<7x16xf32>
    %c54 = arith.constant 54 : index
    %c0_25 = arith.constant 0 : index
    %25 = tpu.strided_load %arg11[%c54, %c0_25] {strides = array<i32: 2, 1>} : memref<324x16xf32, #tpu.memory_space<vmem>>, vector<7x16xf32>
    %c55 = arith.constant 55 : index
    %c0_26 = arith.constant 0 : index
    %26 = tpu.strided_load %arg11[%c55, %c0_26] {strides = array<i32: 2, 1>} : memref<324x16xf32, #tpu.memory_space<vmem>>, vector<7x16xf32>
    %c56 = arith.constant 56 : index
    %c0_27 = arith.constant 0 : index
    %27 = tpu.strided_load %arg11[%c56, %c0_27] {strides = array<i32: 2, 1>} : memref<324x16xf32, #tpu.memory_space<vmem>>, vector<7x16xf32>
    %c57 = arith.constant 57 : index
    %c0_28 = arith.constant 0 : index
    %28 = tpu.strided_load %arg11[%c57, %c0_28] {strides = array<i32: 2, 1>} : memref<324x16xf32, #tpu.memory_space<vmem>>, vector<7x16xf32>
    %c58 = arith.constant 58 : index
    %c0_29 = arith.constant 0 : index
    %29 = tpu.strided_load %arg11[%c58, %c0_29] {strides = array<i32: 2, 1>} : memref<324x16xf32, #tpu.memory_space<vmem>>, vector<7x16xf32>
    %c72 = arith.constant 72 : index
    %c0_30 = arith.constant 0 : index
    %30 = tpu.strided_load %arg11[%c72, %c0_30] {strides = array<i32: 2, 1>} : memref<324x16xf32, #tpu.memory_space<vmem>>, vector<7x16xf32>
    %c73 = arith.constant 73 : index
    %c0_31 = arith.constant 0 : index
    %31 = tpu.strided_load %arg11[%c73, %c0_31] {strides = array<i32: 2, 1>} : memref<324x16xf32, #tpu.memory_space<vmem>>, vector<7x16xf32>
    %c74 = arith.constant 74 : index
    %c0_32 = arith.constant 0 : index
    %32 = tpu.strided_load %arg11[%c74, %c0_32] {strides = array<i32: 2, 1>} : memref<324x16xf32, #tpu.memory_space<vmem>>, vector<7x16xf32>
    %c75 = arith.constant 75 : index
    %c0_33 = arith.constant 0 : index
    %33 = tpu.strided_load %arg11[%c75, %c0_33] {strides = array<i32: 2, 1>} : memref<324x16xf32, #tpu.memory_space<vmem>>, vector<7x16xf32>
    %c76 = arith.constant 76 : index
    %c0_34 = arith.constant 0 : index
    %34 = tpu.strided_load %arg11[%c76, %c0_34] {strides = array<i32: 2, 1>} : memref<324x16xf32, #tpu.memory_space<vmem>>, vector<7x16xf32>
    %35 = tpu.concatenate %10, %11, %12, %13, %14, %15, %16, %17, %18, %19, %20, %21, %22, %23, %24, %25 in 1 : vector<7x16xf32>, vector<7x16xf32>, vector<7x16xf32>, vector<7x16xf32>, vector<7x16xf32>, vector<7x16xf32>, vector<7x16xf32>, vector<7x16xf32>, vector<7x16xf32>, vector<7x16xf32>, vector<7x16xf32>, vector<7x16xf32>, vector<7x16xf32>, vector<7x16xf32>, vector<7x16xf32>, vector<7x16xf32> -> vector<7x256xf32>
    %36 = tpu.concatenate %26, %27, %28, %29, %30, %31, %32, %33, %34 in 1 : vector<7x16xf32>, vector<7x16xf32>, vector<7x16xf32>, vector<7x16xf32>, vector<7x16xf32>, vector<7x16xf32>, vector<7x16xf32>, vector<7x16xf32>, vector<7x16xf32> -> vector<7x144xf32>
    %37 = tpu.concatenate %35, %36 in 1 : vector<7x256xf32>, vector<7x144xf32> -> vector<7x400xf32>
    %c0_35 = arith.constant 0 : index
    %c0_36 = arith.constant 0 : index
    %38 = vector.load %arg12[%c0_35, %c0_36] : memref<49x400xf32, #tpu.memory_space<vmem>>, vector<7x400xf32>
    tpu.vector_store %arg12[%c0_35, %c0_36], %37 {strides = array<i32>} : memref<49x400xf32, #tpu.memory_space<vmem>>, vector<7x400xf32>,
    %c36_37 = arith.constant 36 : index
    %c0_38 = arith.constant 0 : index
    %39 = tpu.strided_load %arg11[%c36_37, %c0_38] {strides = array<i32: 2, 1>} : memref<324x16xf32, #tpu.memory_space<vmem>>, vector<7x16xf32>
    %c37_39 = arith.constant 37 : index
    %c0_40 = arith.constant 0 : index
    %40 = tpu.strided_load %arg11[%c37_39, %c0_40] {strides = array<i32: 2, 1>} : memref<324x16xf32, #tpu.memory_space<vmem>>, vector<7x16xf32>
    %c38_41 = arith.constant 38 : index
    %c0_42 = arith.constant 0 : index
    %41 = tpu.strided_load %arg11[%c38_41, %c0_42] {strides = array<i32: 2, 1>} : memref<324x16xf32, #tpu.memory_space<vmem>>, vector<7x16xf32>
    %c39_43 = arith.constant 39 : index
    %c0_44 = arith.constant 0 : index
    %42 = tpu.strided_load %arg11[%c39_43, %c0_44] {strides = array<i32: 2, 1>} : memref<324x16xf32, #tpu.memory_space<vmem>>, vector<7x16xf32>
    %c40_45 = arith.constant 40 : index
    %c0_46 = arith.constant 0 : index
    %43 = tpu.strided_load %arg11[%c40_45, %c0_46] {strides = array<i32: 2, 1>} : memref<324x16xf32, #tpu.memory_space<vmem>>, vector<7x16xf32>
    %c54_47 = arith.constant 54 : index
    %c0_48 = arith.constant 0 : index
    %44 = tpu.strided_load %arg11[%c54_47, %c0_48] {strides = array<i32: 2, 1>} : memref<324x16xf32, #tpu.memory_space<vmem>>, vector<7x16xf32>
    %c55_49 = arith.constant 55 : index
    %c0_50 = arith.constant 0 : index
    %45 = tpu.strided_load %arg11[%c55_49, %c0_50] {strides = array<i32: 2, 1>} : memref<324x16xf32, #tpu.memory_space<vmem>>, vector<7x16xf32>
    %c56_51 = arith.constant 56 : index
    %c0_52 = arith.constant 0 : index
    %46 = tpu.strided_load %arg11[%c56_51, %c0_52] {strides = array<i32: 2, 1>} : memref<324x16xf32, #tpu.memory_space<vmem>>, vector<7x16xf32>
    %c57_53 = arith.constant 57 : index
    %c0_54 = arith.constant 0 : index
    %47 = tpu.strided_load %arg11[%c57_53, %c0_54] {strides = array<i32: 2, 1>} : memref<324x16xf32, #tpu.memory_space<vmem>>, vector<7x16xf32>
    %c58_55 = arith.constant 58 : index
    %c0_56 = arith.constant 0 : index
    %48 = tpu.strided_load %arg11[%c58_55, %c0_56] {strides = array<i32: 2, 1>} : memref<324x16xf32, #tpu.memory_space<vmem>>, vector<7x16xf32>
    %c72_57 = arith.constant 72 : index
    %c0_58 = arith.constant 0 : index
    %49 = tpu.strided_load %arg11[%c72_57, %c0_58] {strides = array<i32: 2, 1>} : memref<324x16xf32, #tpu.memory_space<vmem>>, vector<7x16xf32>
    %c73_59 = arith.constant 73 : index
    %c0_60 = arith.constant 0 : index
    %50 = tpu.strided_load %arg11[%c73_59, %c0_60] {strides = array<i32: 2, 1>} : memref<324x16xf32, #tpu.memory_space<vmem>>, vector<7x16xf32>
    %c74_61 = arith.constant 74 : index
    %c0_62 = arith.constant 0 : index
    %51 = tpu.strided_load %arg11[%c74_61, %c0_62] {strides = array<i32: 2, 1>} : memref<324x16xf32, #tpu.memory_space<vmem>>, vector<7x16xf32>
    %c75_63 = arith.constant 75 : index
    %c0_64 = arith.constant 0 : index
    %52 = tpu.strided_load %arg11[%c75_63, %c0_64] {strides = array<i32: 2, 1>} : memref<324x16xf32, #tpu.memory_space<vmem>>, vector<7x16xf32>
    %c76_65 = arith.constant 76 : index
    %c0_66 = arith.constant 0 : index
    %53 = tpu.strided_load %arg11[%c76_65, %c0_66] {strides = array<i32: 2, 1>} : memref<324x16xf32, #tpu.memory_space<vmem>>, vector<7x16xf32>
    %c90 = arith.constant 90 : index
    %c0_67 = arith.constant 0 : index
    %54 = tpu.strided_load %arg11[%c90, %c0_67] {strides = array<i32: 2, 1>} : memref<324x16xf32, #tpu.memory_space<vmem>>, vector<7x16xf32>
    %c91 = arith.constant 91 : index
    %c0_68 = arith.constant 0 : index
    %55 = tpu.strided_load %arg11[%c91, %c0_68] {strides = array<i32: 2, 1>} : memref<324x16xf32, #tpu.memory_space<vmem>>, vector<7x16xf32>
    %c92 = arith.constant 92 : index
    %c0_69 = arith.constant 0 : index
    %56 = tpu.strided_load %arg11[%c92, %c0_69] {strides = array<i32: 2, 1>} : memref<324x16xf32, #tpu.memory_space<vmem>>, vector<7x16xf32>
    %c93 = arith.constant 93 : index
    %c0_70 = arith.constant 0 : index
    %57 = tpu.strided_load %arg11[%c93, %c0_70] {strides = array<i32: 2, 1>} : memref<324x16xf32, #tpu.memory_space<vmem>>, vector<7x16xf32>
    %c94 = arith.constant 94 : index
    %c0_71 = arith.constant 0 : index
    %58 = tpu.strided_load %arg11[%c94, %c0_71] {strides = array<i32: 2, 1>} : memref<324x16xf32, #tpu.memory_space<vmem>>, vector<7x16xf32>
    %c108 = arith.constant 108 : index
    %c0_72 = arith.constant 0 : index
    %59 = tpu.strided_load %arg11[%c108, %c0_72] {strides = array<i32: 2, 1>} : memref<324x16xf32, #tpu.memory_space<vmem>>, vector<7x16xf32>
    %c109 = arith.constant 109 : index
    %c0_73 = arith.constant 0 : index
    %60 = tpu.strided_load %arg11[%c109, %c0_73] {strides = array<i32: 2, 1>} : memref<324x16xf32, #tpu.memory_space<vmem>>, vector<7x16xf32>
    %c110 = arith.constant 110 : index
    %c0_74 = arith.constant 0 : index
    %61 = tpu.strided_load %arg11[%c110, %c0_74] {strides = array<i32: 2, 1>} : memref<324x16xf32, #tpu.memory_space<vmem>>, vector<7x16xf32>
    %c111 = arith.constant 111 : index
    %c0_75 = arith.constant 0 : index
    %62 = tpu.strided_load %arg11[%c111, %c0_75] {strides = array<i32: 2, 1>} : memref<324x16xf32, #tpu.memory_space<vmem>>, vector<7x16xf32>
    %c112 = arith.constant 112 : index
    %c0_76 = arith.constant 0 : index
    %63 = tpu.strided_load %arg11[%c112, %c0_76] {strides = array<i32: 2, 1>} : memref<324x16xf32, #tpu.memory_space<vmem>>, vector<7x16xf32>
    %64 = tpu.concatenate %39, %40, %41, %42, %43, %44, %45, %46, %47, %48, %49, %50, %51, %52, %53, %54 in 1 : vector<7x16xf32>, vector<7x16xf32>, vector<7x16xf32>, vector<7x16xf32>, vector<7x16xf32>, vector<7x16xf32>, vector<7x16xf32>, vector<7x16xf32>, vector<7x16xf32>, vector<7x16xf32>, vector<7x16xf32>, vector<7x16xf32>, vector<7x16xf32>, vector<7x16xf32>, vector<7x16xf32>, vector<7x16xf32> -> vector<7x256xf32>
    %65 = tpu.concatenate %55, %56, %57, %58, %59, %60, %61, %62, %63 in 1 : vector<7x16xf32>, vector<7x16xf32>, vector<7x16xf32>, vector<7x16xf32>, vector<7x16xf32>, vector<7x16xf32>, vector<7x16xf32>, vector<7x16xf32>, vector<7x16xf32> -> vector<7x144xf32>
    %66 = tpu.concatenate %64, %65 in 1 : vector<7x256xf32>, vector<7x144xf32> -> vector<7x400xf32>
    %c7 = arith.constant 7 : index
    %c0_77 = arith.constant 0 : index
    %67 = vector.load %arg12[%c7, %c0_77] : memref<49x400xf32, #tpu.memory_space<vmem>>, vector<7x400xf32>
    tpu.vector_store %arg12[%c7, %c0_77], %66 {strides = array<i32>} : memref<49x400xf32, #tpu.memory_space<vmem>>, vector<7x400xf32>,
    %c72_78 = arith.constant 72 : index
    %c0_79 = arith.constant 0 : index
    %68 = tpu.strided_load %arg11[%c72_78, %c0_79] {strides = array<i32: 2, 1>} : memref<324x16xf32, #tpu.memory_space<vmem>>, vector<7x16xf32>
    %c73_80 = arith.constant 73 : index
    %c0_81 = arith.constant 0 : index
    %69 = tpu.strided_load %arg11[%c73_80, %c0_81] {strides = array<i32: 2, 1>} : memref<324x16xf32, #tpu.memory_space<vmem>>, vector<7x16xf32>
    %c74_82 = arith.constant 74 : index
    %c0_83 = arith.constant 0 : index
    %70 = tpu.strided_load %arg11[%c74_82, %c0_83] {strides = array<i32: 2, 1>} : memref<324x16xf32, #tpu.memory_space<vmem>>, vector<7x16xf32>
    %c75_84 = arith.constant 75 : index
    %c0_85 = arith.constant 0 : index
    %71 = tpu.strided_load %arg11[%c75_84, %c0_85] {strides = array<i32: 2, 1>} : memref<324x16xf32, #tpu.memory_space<vmem>>, vector<7x16xf32>
    %c76_86 = arith.constant 76 : index
    %c0_87 = arith.constant 0 : index
    %72 = tpu.strided_load %arg11[%c76_86, %c0_87] {strides = array<i32: 2, 1>} : memref<324x16xf32, #tpu.memory_space<vmem>>, vector<7x16xf32>
    %c90_88 = arith.constant 90 : index
    %c0_89 = arith.constant 0 : index
    %73 = tpu.strided_load %arg11[%c90_88, %c0_89] {strides = array<i32: 2, 1>} : memref<324x16xf32, #tpu.memory_space<vmem>>, vector<7x16xf32>
    %c91_90 = arith.constant 91 : index
    %c0_91 = arith.constant 0 : index
    %74 = tpu.strided_load %arg11[%c91_90, %c0_91] {strides = array<i32: 2, 1>} : memref<324x16xf32, #tpu.memory_space<vmem>>, vector<7x16xf32>
    %c92_92 = arith.constant 92 : index
    %c0_93 = arith.constant 0 : index
    %75 = tpu.strided_load %arg11[%c92_92, %c0_93] {strides = array<i32: 2, 1>} : memref<324x16xf32, #tpu.memory_space<vmem>>, vector<7x16xf32>
    %c93_94 = arith.constant 93 : index
    %c0_95 = arith.constant 0 : index
    %76 = tpu.strided_load %arg11[%c93_94, %c0_95] {strides = array<i32: 2, 1>} : memref<324x16xf32, #tpu.memory_space<vmem>>, vector<7x16xf32>
    %c94_96 = arith.constant 94 : index
    %c0_97 = arith.constant 0 : index
    %77 = tpu.strided_load %arg11[%c94_96, %c0_97] {strides = array<i32: 2, 1>} : memref<324x16xf32, #tpu.memory_space<vmem>>, vector<7x16xf32>
    %c108_98 = arith.constant 108 : index
    %c0_99 = arith.constant 0 : index
    %78 = tpu.strided_load %arg11[%c108_98, %c0_99] {strides = array<i32: 2, 1>} : memref<324x16xf32, #tpu.memory_space<vmem>>, vector<7x16xf32>
    %c109_100 = arith.constant 109 : index
    %c0_101 = arith.constant 0 : index
    %79 = tpu.strided_load %arg11[%c109_100, %c0_101] {strides = array<i32: 2, 1>} : memref<324x16xf32, #tpu.memory_space<vmem>>, vector<7x16xf32>
    %c110_102 = arith.constant 110 : index
    %c0_103 = arith.constant 0 : index
    %80 = tpu.strided_load %arg11[%c110_102, %c0_103] {strides = array<i32: 2, 1>} : memref<324x16xf32, #tpu.memory_space<vmem>>, vector<7x16xf32>
    %c111_104 = arith.constant 111 : index
    %c0_105 = arith.constant 0 : index
    %81 = tpu.strided_load %arg11[%c111_104, %c0_105] {strides = array<i32: 2, 1>} : memref<324x16xf32, #tpu.memory_space<vmem>>, vector<7x16xf32>
    %c112_106 = arith.constant 112 : index
    %c0_107 = arith.constant 0 : index
    %82 = tpu.strided_load %arg11[%c112_106, %c0_107] {strides = array<i32: 2, 1>} : memref<324x16xf32, #tpu.memory_space<vmem>>, vector<7x16xf32>
    %c126 = arith.constant 126 : index
    %c0_108 = arith.constant 0 : index
    %83 = tpu.strided_load %arg11[%c126, %c0_108] {strides = array<i32: 2, 1>} : memref<324x16xf32, #tpu.memory_space<vmem>>, vector<7x16xf32>
    %c127 = arith.constant 127 : index
    %c0_109 = arith.constant 0 : index
    %84 = tpu.strided_load %arg11[%c127, %c0_109] {strides = array<i32: 2, 1>} : memref<324x16xf32, #tpu.memory_space<vmem>>, vector<7x16xf32>
    %c128 = arith.constant 128 : index
    %c0_110 = arith.constant 0 : index
    %85 = tpu.strided_load %arg11[%c128, %c0_110] {strides = array<i32: 2, 1>} : memref<324x16xf32, #tpu.memory_space<vmem>>, vector<7x16xf32>
    %c129 = arith.constant 129 : index
    %c0_111 = arith.constant 0 : index
    %86 = tpu.strided_load %arg11[%c129, %c0_111] {strides = array<i32: 2, 1>} : memref<324x16xf32, #tpu.memory_space<vmem>>, vector<7x16xf32>
    %c130 = arith.constant 130 : index
    %c0_112 = arith.constant 0 : index
    %87 = tpu.strided_load %arg11[%c130, %c0_112] {strides = array<i32: 2, 1>} : memref<324x16xf32, #tpu.memory_space<vmem>>, vector<7x16xf32>
    %c144 = arith.constant 144 : index
    %c0_113 = arith.constant 0 : index
    %88 = tpu.strided_load %arg11[%c144, %c0_113] {strides = array<i32: 2, 1>} : memref<324x16xf32, #tpu.memory_space<vmem>>, vector<7x16xf32>
    %c145 = arith.constant 145 : index
    %c0_114 = arith.constant 0 : index
    %89 = tpu.strided_load %arg11[%c145, %c0_114] {strides = array<i32: 2, 1>} : memref<324x16xf32, #tpu.memory_space<vmem>>, vector<7x16xf32>
    %c146 = arith.constant 146 : index
    %c0_115 = arith.constant 0 : index
    %90 = tpu.strided_load %arg11[%c146, %c0_115] {strides = array<i32: 2, 1>} : memref<324x16xf32, #tpu.memory_space<vmem>>, vector<7x16xf32>
    %c147 = arith.constant 147 : index
    %c0_116 = arith.constant 0 : index
    %91 = tpu.strided_load %arg11[%c147, %c0_116] {strides = array<i32: 2, 1>} : memref<324x16xf32, #tpu.memory_space<vmem>>, vector<7x16xf32>
    %c148 = arith.constant 148 : index
    %c0_117 = arith.constant 0 : index
    %92 = tpu.strided_load %arg11[%c148, %c0_117] {strides = array<i32: 2, 1>} : memref<324x16xf32, #tpu.memory_space<vmem>>, vector<7x16xf32>
    %93 = tpu.concatenate %68, %69, %70, %71, %72, %73, %74, %75, %76, %77, %78, %79, %80, %81, %82, %83 in 1 : vector<7x16xf32>, vector<7x16xf32>, vector<7x16xf32>, vector<7x16xf32>, vector<7x16xf32>, vector<7x16xf32>, vector<7x16xf32>, vector<7x16xf32>, vector<7x16xf32>, vector<7x16xf32>, vector<7x16xf32>, vector<7x16xf32>, vector<7x16xf32>, vector<7x16xf32>, vector<7x16xf32>, vector<7x16xf32> -> vector<7x256xf32>
    %94 = tpu.concatenate %84, %85, %86, %87, %88, %89, %90, %91, %92 in 1 : vector<7x16xf32>, vector<7x16xf32>, vector<7x16xf32>, vector<7x16xf32>, vector<7x16xf32>, vector<7x16xf32>, vector<7x16xf32>, vector<7x16xf32>, vector<7x16xf32> -> vector<7x144xf32>
    %95 = tpu.concatenate %93, %94 in 1 : vector<7x256xf32>, vector<7x144xf32> -> vector<7x400xf32>
    %c14 = arith.constant 14 : index
    %c0_118 = arith.constant 0 : index
    %96 = vector.load %arg12[%c14, %c0_118] : memref<49x400xf32, #tpu.memory_space<vmem>>, vector<7x400xf32>
    tpu.vector_store %arg12[%c14, %c0_118], %95 {strides = array<i32>} : memref<49x400xf32, #tpu.memory_space<vmem>>, vector<7x400xf32>,
    %c108_119 = arith.constant 108 : index
    %c0_120 = arith.constant 0 : index
    %97 = tpu.strided_load %arg11[%c108_119, %c0_120] {strides = array<i32: 2, 1>} : memref<324x16xf32, #tpu.memory_space<vmem>>, vector<7x16xf32>
    %c109_121 = arith.constant 109 : index
    %c0_122 = arith.constant 0 : index
    %98 = tpu.strided_load %arg11[%c109_121, %c0_122] {strides = array<i32: 2, 1>} : memref<324x16xf32, #tpu.memory_space<vmem>>, vector<7x16xf32>
    %c110_123 = arith.constant 110 : index
    %c0_124 = arith.constant 0 : index
    %99 = tpu.strided_load %arg11[%c110_123, %c0_124] {strides = array<i32: 2, 1>} : memref<324x16xf32, #tpu.memory_space<vmem>>, vector<7x16xf32>
    %c111_125 = arith.constant 111 : index
    %c0_126 = arith.constant 0 : index
    %100 = tpu.strided_load %arg11[%c111_125, %c0_126] {strides = array<i32: 2, 1>} : memref<324x16xf32, #tpu.memory_space<vmem>>, vector<7x16xf32>
    %c112_127 = arith.constant 112 : index
    %c0_128 = arith.constant 0 : index
    %101 = tpu.strided_load %arg11[%c112_127, %c0_128] {strides = array<i32: 2, 1>} : memref<324x16xf32, #tpu.memory_space<vmem>>, vector<7x16xf32>
    %c126_129 = arith.constant 126 : index
    %c0_130 = arith.constant 0 : index
    %102 = tpu.strided_load %arg11[%c126_129, %c0_130] {strides = array<i32: 2, 1>} : memref<324x16xf32, #tpu.memory_space<vmem>>, vector<7x16xf32>
    %c127_131 = arith.constant 127 : index
    %c0_132 = arith.constant 0 : index
    %103 = tpu.strided_load %arg11[%c127_131, %c0_132] {strides = array<i32: 2, 1>} : memref<324x16xf32, #tpu.memory_space<vmem>>, vector<7x16xf32>
    %c128_133 = arith.constant 128 : index
    %c0_134 = arith.constant 0 : index
    %104 = tpu.strided_load %arg11[%c128_133, %c0_134] {strides = array<i32: 2, 1>} : memref<324x16xf32, #tpu.memory_space<vmem>>, vector<7x16xf32>
    %c129_135 = arith.constant 129 : index
    %c0_136 = arith.constant 0 : index
    %105 = tpu.strided_load %arg11[%c129_135, %c0_136] {strides = array<i32: 2, 1>} : memref<324x16xf32, #tpu.memory_space<vmem>>, vector<7x16xf32>
    %c130_137 = arith.constant 130 : index
    %c0_138 = arith.constant 0 : index
    %106 = tpu.strided_load %arg11[%c130_137, %c0_138] {strides = array<i32: 2, 1>} : memref<324x16xf32, #tpu.memory_space<vmem>>, vector<7x16xf32>
    %c144_139 = arith.constant 144 : index
    %c0_140 = arith.constant 0 : index
    %107 = tpu.strided_load %arg11[%c144_139, %c0_140] {strides = array<i32: 2, 1>} : memref<324x16xf32, #tpu.memory_space<vmem>>, vector<7x16xf32>
    %c145_141 = arith.constant 145 : index
    %c0_142 = arith.constant 0 : index
    %108 = tpu.strided_load %arg11[%c145_141, %c0_142] {strides = array<i32: 2, 1>} : memref<324x16xf32, #tpu.memory_space<vmem>>, vector<7x16xf32>
    %c146_143 = arith.constant 146 : index
    %c0_144 = arith.constant 0 : index
    %109 = tpu.strided_load %arg11[%c146_143, %c0_144] {strides = array<i32: 2, 1>} : memref<324x16xf32, #tpu.memory_space<vmem>>, vector<7x16xf32>
    %c147_145 = arith.constant 147 : index
    %c0_146 = arith.constant 0 : index
    %110 = tpu.strided_load %arg11[%c147_145, %c0_146] {strides = array<i32: 2, 1>} : memref<324x16xf32, #tpu.memory_space<vmem>>, vector<7x16xf32>
    %c148_147 = arith.constant 148 : index
    %c0_148 = arith.constant 0 : index
    %111 = tpu.strided_load %arg11[%c148_147, %c0_148] {strides = array<i32: 2, 1>} : memref<324x16xf32, #tpu.memory_space<vmem>>, vector<7x16xf32>
    %c162 = arith.constant 162 : index
    %c0_149 = arith.constant 0 : index
    %112 = tpu.strided_load %arg11[%c162, %c0_149] {strides = array<i32: 2, 1>} : memref<324x16xf32, #tpu.memory_space<vmem>>, vector<7x16xf32>
    %c163 = arith.constant 163 : index
    %c0_150 = arith.constant 0 : index
    %113 = tpu.strided_load %arg11[%c163, %c0_150] {strides = array<i32: 2, 1>} : memref<324x16xf32, #tpu.memory_space<vmem>>, vector<7x16xf32>
    %c164 = arith.constant 164 : index
    %c0_151 = arith.constant 0 : index
    %114 = tpu.strided_load %arg11[%c164, %c0_151] {strides = array<i32: 2, 1>} : memref<324x16xf32, #tpu.memory_space<vmem>>, vector<7x16xf32>
    %c165 = arith.constant 165 : index
    %c0_152 = arith.constant 0 : index
    %115 = tpu.strided_load %arg11[%c165, %c0_152] {strides = array<i32: 2, 1>} : memref<324x16xf32, #tpu.memory_space<vmem>>, vector<7x16xf32>
    %c166 = arith.constant 166 : index
    %c0_153 = arith.constant 0 : index
    %116 = tpu.strided_load %arg11[%c166, %c0_153] {strides = array<i32: 2, 1>} : memref<324x16xf32, #tpu.memory_space<vmem>>, vector<7x16xf32>
    %c180 = arith.constant 180 : index
    %c0_154 = arith.constant 0 : index
    %117 = tpu.strided_load %arg11[%c180, %c0_154] {strides = array<i32: 2, 1>} : memref<324x16xf32, #tpu.memory_space<vmem>>, vector<7x16xf32>
    %c181 = arith.constant 181 : index
    %c0_155 = arith.constant 0 : index
    %118 = tpu.strided_load %arg11[%c181, %c0_155] {strides = array<i32: 2, 1>} : memref<324x16xf32, #tpu.memory_space<vmem>>, vector<7x16xf32>
    %c182 = arith.constant 182 : index
    %c0_156 = arith.constant 0 : index
    %119 = tpu.strided_load %arg11[%c182, %c0_156] {strides = array<i32: 2, 1>} : memref<324x16xf32, #tpu.memory_space<vmem>>, vector<7x16xf32>
    %c183 = arith.constant 183 : index
    %c0_157 = arith.constant 0 : index
    %120 = tpu.strided_load %arg11[%c183, %c0_157] {strides = array<i32: 2, 1>} : memref<324x16xf32, #tpu.memory_space<vmem>>, vector<7x16xf32>
    %c184 = arith.constant 184 : index
    %c0_158 = arith.constant 0 : index
    %121 = tpu.strided_load %arg11[%c184, %c0_158] {strides = array<i32: 2, 1>} : memref<324x16xf32, #tpu.memory_space<vmem>>, vector<7x16xf32>
    %122 = tpu.concatenate %97, %98, %99, %100, %101, %102, %103, %104, %105, %106, %107, %108, %109, %110, %111, %112 in 1 : vector<7x16xf32>, vector<7x16xf32>, vector<7x16xf32>, vector<7x16xf32>, vector<7x16xf32>, vector<7x16xf32>, vector<7x16xf32>, vector<7x16xf32>, vector<7x16xf32>, vector<7x16xf32>, vector<7x16xf32>, vector<7x16xf32>, vector<7x16xf32>, vector<7x16xf32>, vector<7x16xf32>, vector<7x16xf32> -> vector<7x256xf32>
    %123 = tpu.concatenate %113, %114, %115, %116, %117, %118, %119, %120, %121 in 1 : vector<7x16xf32>, vector<7x16xf32>, vector<7x16xf32>, vector<7x16xf32>, vector<7x16xf32>, vector<7x16xf32>, vector<7x16xf32>, vector<7x16xf32>, vector<7x16xf32> -> vector<7x144xf32>
    %124 = tpu.concatenate %122, %123 in 1 : vector<7x256xf32>, vector<7x144xf32> -> vector<7x400xf32>
    %c21_159 = arith.constant 21 : index
    %c0_160 = arith.constant 0 : index
    %125 = vector.load %arg12[%c21_159, %c0_160] : memref<49x400xf32, #tpu.memory_space<vmem>>, vector<7x400xf32>
    tpu.vector_store %arg12[%c21_159, %c0_160], %124 {strides = array<i32>} : memref<49x400xf32, #tpu.memory_space<vmem>>, vector<7x400xf32>,
    %c144_161 = arith.constant 144 : index
    %c0_162 = arith.constant 0 : index
    %126 = tpu.strided_load %arg11[%c144_161, %c0_162] {strides = array<i32: 2, 1>} : memref<324x16xf32, #tpu.memory_space<vmem>>, vector<7x16xf32>
    %c145_163 = arith.constant 145 : index
    %c0_164 = arith.constant 0 : index
    %127 = tpu.strided_load %arg11[%c145_163, %c0_164] {strides = array<i32: 2, 1>} : memref<324x16xf32, #tpu.memory_space<vmem>>, vector<7x16xf32>
    %c146_165 = arith.constant 146 : index
    %c0_166 = arith.constant 0 : index
    %128 = tpu.strided_load %arg11[%c146_165, %c0_166] {strides = array<i32: 2, 1>} : memref<324x16xf32, #tpu.memory_space<vmem>>, vector<7x16xf32>
    %c147_167 = arith.constant 147 : index
    %c0_168 = arith.constant 0 : index
    %129 = tpu.strided_load %arg11[%c147_167, %c0_168] {strides = array<i32: 2, 1>} : memref<324x16xf32, #tpu.memory_space<vmem>>, vector<7x16xf32>
    %c148_169 = arith.constant 148 : index
    %c0_170 = arith.constant 0 : index
    %130 = tpu.strided_load %arg11[%c148_169, %c0_170] {strides = array<i32: 2, 1>} : memref<324x16xf32, #tpu.memory_space<vmem>>, vector<7x16xf32>
    %c162_171 = arith.constant 162 : index
    %c0_172 = arith.constant 0 : index
    %131 = tpu.strided_load %arg11[%c162_171, %c0_172] {strides = array<i32: 2, 1>} : memref<324x16xf32, #tpu.memory_space<vmem>>, vector<7x16xf32>
    %c163_173 = arith.constant 163 : index
    %c0_174 = arith.constant 0 : index
    %132 = tpu.strided_load %arg11[%c163_173, %c0_174] {strides = array<i32: 2, 1>} : memref<324x16xf32, #tpu.memory_space<vmem>>, vector<7x16xf32>
    %c164_175 = arith.constant 164 : index
    %c0_176 = arith.constant 0 : index
    %133 = tpu.strided_load %arg11[%c164_175, %c0_176] {strides = array<i32: 2, 1>} : memref<324x16xf32, #tpu.memory_space<vmem>>, vector<7x16xf32>
    %c165_177 = arith.constant 165 : index
    %c0_178 = arith.constant 0 : index
    %134 = tpu.strided_load %arg11[%c165_177, %c0_178] {strides = array<i32: 2, 1>} : memref<324x16xf32, #tpu.memory_space<vmem>>, vector<7x16xf32>
    %c166_179 = arith.constant 166 : index
    %c0_180 = arith.constant 0 : index
    %135 = tpu.strided_load %arg11[%c166_179, %c0_180] {strides = array<i32: 2, 1>} : memref<324x16xf32, #tpu.memory_space<vmem>>, vector<7x16xf32>
    %c180_181 = arith.constant 180 : index
    %c0_182 = arith.constant 0 : index
    %136 = tpu.strided_load %arg11[%c180_181, %c0_182] {strides = array<i32: 2, 1>} : memref<324x16xf32, #tpu.memory_space<vmem>>, vector<7x16xf32>
    %c181_183 = arith.constant 181 : index
    %c0_184 = arith.constant 0 : index
    %137 = tpu.strided_load %arg11[%c181_183, %c0_184] {strides = array<i32: 2, 1>} : memref<324x16xf32, #tpu.memory_space<vmem>>, vector<7x16xf32>
    %c182_185 = arith.constant 182 : index
    %c0_186 = arith.constant 0 : index
    %138 = tpu.strided_load %arg11[%c182_185, %c0_186] {strides = array<i32: 2, 1>} : memref<324x16xf32, #tpu.memory_space<vmem>>, vector<7x16xf32>
    %c183_187 = arith.constant 183 : index
    %c0_188 = arith.constant 0 : index
    %139 = tpu.strided_load %arg11[%c183_187, %c0_188] {strides = array<i32: 2, 1>} : memref<324x16xf32, #tpu.memory_space<vmem>>, vector<7x16xf32>
    %c184_189 = arith.constant 184 : index
    %c0_190 = arith.constant 0 : index
    %140 = tpu.strided_load %arg11[%c184_189, %c0_190] {strides = array<i32: 2, 1>} : memref<324x16xf32, #tpu.memory_space<vmem>>, vector<7x16xf32>
    %c198 = arith.constant 198 : index
    %c0_191 = arith.constant 0 : index
    %141 = tpu.strided_load %arg11[%c198, %c0_191] {strides = array<i32: 2, 1>} : memref<324x16xf32, #tpu.memory_space<vmem>>, vector<7x16xf32>
    %c199 = arith.constant 199 : index
    %c0_192 = arith.constant 0 : index
    %142 = tpu.strided_load %arg11[%c199, %c0_192] {strides = array<i32: 2, 1>} : memref<324x16xf32, #tpu.memory_space<vmem>>, vector<7x16xf32>
    %c200 = arith.constant 200 : index
    %c0_193 = arith.constant 0 : index
    %143 = tpu.strided_load %arg11[%c200, %c0_193] {strides = array<i32: 2, 1>} : memref<324x16xf32, #tpu.memory_space<vmem>>, vector<7x16xf32>
    %c201 = arith.constant 201 : index
    %c0_194 = arith.constant 0 : index
    %144 = tpu.strided_load %arg11[%c201, %c0_194] {strides = array<i32: 2, 1>} : memref<324x16xf32, #tpu.memory_space<vmem>>, vector<7x16xf32>
    %c202 = arith.constant 202 : index
    %c0_195 = arith.constant 0 : index
    %145 = tpu.strided_load %arg11[%c202, %c0_195] {strides = array<i32: 2, 1>} : memref<324x16xf32, #tpu.memory_space<vmem>>, vector<7x16xf32>
    %c216 = arith.constant 216 : index
    %c0_196 = arith.constant 0 : index
    %146 = tpu.strided_load %arg11[%c216, %c0_196] {strides = array<i32: 2, 1>} : memref<324x16xf32, #tpu.memory_space<vmem>>, vector<7x16xf32>
    %c217 = arith.constant 217 : index
    %c0_197 = arith.constant 0 : index
    %147 = tpu.strided_load %arg11[%c217, %c0_197] {strides = array<i32: 2, 1>} : memref<324x16xf32, #tpu.memory_space<vmem>>, vector<7x16xf32>
    %c218 = arith.constant 218 : index
    %c0_198 = arith.constant 0 : index
    %148 = tpu.strided_load %arg11[%c218, %c0_198] {strides = array<i32: 2, 1>} : memref<324x16xf32, #tpu.memory_space<vmem>>, vector<7x16xf32>
    %c219 = arith.constant 219 : index
    %c0_199 = arith.constant 0 : index
    %149 = tpu.strided_load %arg11[%c219, %c0_199] {strides = array<i32: 2, 1>} : memref<324x16xf32, #tpu.memory_space<vmem>>, vector<7x16xf32>
    %c220 = arith.constant 220 : index
    %c0_200 = arith.constant 0 : index
    %150 = tpu.strided_load %arg11[%c220, %c0_200] {strides = array<i32: 2, 1>} : memref<324x16xf32, #tpu.memory_space<vmem>>, vector<7x16xf32>
    %151 = tpu.concatenate %126, %127, %128, %129, %130, %131, %132, %133, %134, %135, %136, %137, %138, %139, %140, %141 in 1 : vector<7x16xf32>, vector<7x16xf32>, vector<7x16xf32>, vector<7x16xf32>, vector<7x16xf32>, vector<7x16xf32>, vector<7x16xf32>, vector<7x16xf32>, vector<7x16xf32>, vector<7x16xf32>, vector<7x16xf32>, vector<7x16xf32>, vector<7x16xf32>, vector<7x16xf32>, vector<7x16xf32>, vector<7x16xf32> -> vector<7x256xf32>
    %152 = tpu.concatenate %142, %143, %144, %145, %146, %147, %148, %149, %150 in 1 : vector<7x16xf32>, vector<7x16xf32>, vector<7x16xf32>, vector<7x16xf32>, vector<7x16xf32>, vector<7x16xf32>, vector<7x16xf32>, vector<7x16xf32>, vector<7x16xf32> -> vector<7x144xf32>
    %153 = tpu.concatenate %151, %152 in 1 : vector<7x256xf32>, vector<7x144xf32> -> vector<7x400xf32>
    %c28 = arith.constant 28 : index
    %c0_201 = arith.constant 0 : index
    %154 = vector.load %arg12[%c28, %c0_201] : memref<49x400xf32, #tpu.memory_space<vmem>>, vector<7x400xf32>
    tpu.vector_store %arg12[%c28, %c0_201], %153 {strides = array<i32>} : memref<49x400xf32, #tpu.memory_space<vmem>>, vector<7x400xf32>,
    %c180_202 = arith.constant 180 : index
    %c0_203 = arith.constant 0 : index
    %155 = tpu.strided_load %arg11[%c180_202, %c0_203] {strides = array<i32: 2, 1>} : memref<324x16xf32, #tpu.memory_space<vmem>>, vector<7x16xf32>
    %c181_204 = arith.constant 181 : index
    %c0_205 = arith.constant 0 : index
    %156 = tpu.strided_load %arg11[%c181_204, %c0_205] {strides = array<i32: 2, 1>} : memref<324x16xf32, #tpu.memory_space<vmem>>, vector<7x16xf32>
    %c182_206 = arith.constant 182 : index
    %c0_207 = arith.constant 0 : index
    %157 = tpu.strided_load %arg11[%c182_206, %c0_207] {strides = array<i32: 2, 1>} : memref<324x16xf32, #tpu.memory_space<vmem>>, vector<7x16xf32>
    %c183_208 = arith.constant 183 : index
    %c0_209 = arith.constant 0 : index
    %158 = tpu.strided_load %arg11[%c183_208, %c0_209] {strides = array<i32: 2, 1>} : memref<324x16xf32, #tpu.memory_space<vmem>>, vector<7x16xf32>
    %c184_210 = arith.constant 184 : index
    %c0_211 = arith.constant 0 : index
    %159 = tpu.strided_load %arg11[%c184_210, %c0_211] {strides = array<i32: 2, 1>} : memref<324x16xf32, #tpu.memory_space<vmem>>, vector<7x16xf32>
    %c198_212 = arith.constant 198 : index
    %c0_213 = arith.constant 0 : index
    %160 = tpu.strided_load %arg11[%c198_212, %c0_213] {strides = array<i32: 2, 1>} : memref<324x16xf32, #tpu.memory_space<vmem>>, vector<7x16xf32>
    %c199_214 = arith.constant 199 : index
    %c0_215 = arith.constant 0 : index
    %161 = tpu.strided_load %arg11[%c199_214, %c0_215] {strides = array<i32: 2, 1>} : memref<324x16xf32, #tpu.memory_space<vmem>>, vector<7x16xf32>
    %c200_216 = arith.constant 200 : index
    %c0_217 = arith.constant 0 : index
    %162 = tpu.strided_load %arg11[%c200_216, %c0_217] {strides = array<i32: 2, 1>} : memref<324x16xf32, #tpu.memory_space<vmem>>, vector<7x16xf32>
    %c201_218 = arith.constant 201 : index
    %c0_219 = arith.constant 0 : index
    %163 = tpu.strided_load %arg11[%c201_218, %c0_219] {strides = array<i32: 2, 1>} : memref<324x16xf32, #tpu.memory_space<vmem>>, vector<7x16xf32>
    %c202_220 = arith.constant 202 : index
    %c0_221 = arith.constant 0 : index
    %164 = tpu.strided_load %arg11[%c202_220, %c0_221] {strides = array<i32: 2, 1>} : memref<324x16xf32, #tpu.memory_space<vmem>>, vector<7x16xf32>
    %c216_222 = arith.constant 216 : index
    %c0_223 = arith.constant 0 : index
    %165 = tpu.strided_load %arg11[%c216_222, %c0_223] {strides = array<i32: 2, 1>} : memref<324x16xf32, #tpu.memory_space<vmem>>, vector<7x16xf32>
    %c217_224 = arith.constant 217 : index
    %c0_225 = arith.constant 0 : index
    %166 = tpu.strided_load %arg11[%c217_224, %c0_225] {strides = array<i32: 2, 1>} : memref<324x16xf32, #tpu.memory_space<vmem>>, vector<7x16xf32>
    %c218_226 = arith.constant 218 : index
    %c0_227 = arith.constant 0 : index
    %167 = tpu.strided_load %arg11[%c218_226, %c0_227] {strides = array<i32: 2, 1>} : memref<324x16xf32, #tpu.memory_space<vmem>>, vector<7x16xf32>
    %c219_228 = arith.constant 219 : index
    %c0_229 = arith.constant 0 : index
    %168 = tpu.strided_load %arg11[%c219_228, %c0_229] {strides = array<i32: 2, 1>} : memref<324x16xf32, #tpu.memory_space<vmem>>, vector<7x16xf32>
    %c220_230 = arith.constant 220 : index
    %c0_231 = arith.constant 0 : index
    %169 = tpu.strided_load %arg11[%c220_230, %c0_231] {strides = array<i32: 2, 1>} : memref<324x16xf32, #tpu.memory_space<vmem>>, vector<7x16xf32>
    %c234 = arith.constant 234 : index
    %c0_232 = arith.constant 0 : index
    %170 = tpu.strided_load %arg11[%c234, %c0_232] {strides = array<i32: 2, 1>} : memref<324x16xf32, #tpu.memory_space<vmem>>, vector<7x16xf32>
    %c235 = arith.constant 235 : index
    %c0_233 = arith.constant 0 : index
    %171 = tpu.strided_load %arg11[%c235, %c0_233] {strides = array<i32: 2, 1>} : memref<324x16xf32, #tpu.memory_space<vmem>>, vector<7x16xf32>
    %c236 = arith.constant 236 : index
    %c0_234 = arith.constant 0 : index
    %172 = tpu.strided_load %arg11[%c236, %c0_234] {strides = array<i32: 2, 1>} : memref<324x16xf32, #tpu.memory_space<vmem>>, vector<7x16xf32>
    %c237 = arith.constant 237 : index
    %c0_235 = arith.constant 0 : index
    %173 = tpu.strided_load %arg11[%c237, %c0_235] {strides = array<i32: 2, 1>} : memref<324x16xf32, #tpu.memory_space<vmem>>, vector<7x16xf32>
    %c238 = arith.constant 238 : index
    %c0_236 = arith.constant 0 : index
    %174 = tpu.strided_load %arg11[%c238, %c0_236] {strides = array<i32: 2, 1>} : memref<324x16xf32, #tpu.memory_space<vmem>>, vector<7x16xf32>
    %c252 = arith.constant 252 : index
    %c0_237 = arith.constant 0 : index
    %175 = tpu.strided_load %arg11[%c252, %c0_237] {strides = array<i32: 2, 1>} : memref<324x16xf32, #tpu.memory_space<vmem>>, vector<7x16xf32>
    %c253 = arith.constant 253 : index
    %c0_238 = arith.constant 0 : index
    %176 = tpu.strided_load %arg11[%c253, %c0_238] {strides = array<i32: 2, 1>} : memref<324x16xf32, #tpu.memory_space<vmem>>, vector<7x16xf32>
    %c254 = arith.constant 254 : index
    %c0_239 = arith.constant 0 : index
    %177 = tpu.strided_load %arg11[%c254, %c0_239] {strides = array<i32: 2, 1>} : memref<324x16xf32, #tpu.memory_space<vmem>>, vector<7x16xf32>
    %c255 = arith.constant 255 : index
    %c0_240 = arith.constant 0 : index
    %178 = tpu.strided_load %arg11[%c255, %c0_240] {strides = array<i32: 2, 1>} : memref<324x16xf32, #tpu.memory_space<vmem>>, vector<7x16xf32>
    %c256 = arith.constant 256 : index
    %c0_241 = arith.constant 0 : index
    %179 = tpu.strided_load %arg11[%c256, %c0_241] {strides = array<i32: 2, 1>} : memref<324x16xf32, #tpu.memory_space<vmem>>, vector<7x16xf32>
    %180 = tpu.concatenate %155, %156, %157, %158, %159, %160, %161, %162, %163, %164, %165, %166, %167, %168, %169, %170 in 1 : vector<7x16xf32>, vector<7x16xf32>, vector<7x16xf32>, vector<7x16xf32>, vector<7x16xf32>, vector<7x16xf32>, vector<7x16xf32>, vector<7x16xf32>, vector<7x16xf32>, vector<7x16xf32>, vector<7x16xf32>, vector<7x16xf32>, vector<7x16xf32>, vector<7x16xf32>, vector<7x16xf32>, vector<7x16xf32> -> vector<7x256xf32>
    %181 = tpu.concatenate %171, %172, %173, %174, %175, %176, %177, %178, %179 in 1 : vector<7x16xf32>, vector<7x16xf32>, vector<7x16xf32>, vector<7x16xf32>, vector<7x16xf32>, vector<7x16xf32>, vector<7x16xf32>, vector<7x16xf32>, vector<7x16xf32> -> vector<7x144xf32>
    %182 = tpu.concatenate %180, %181 in 1 : vector<7x256xf32>, vector<7x144xf32> -> vector<7x400xf32>
    %c35 = arith.constant 35 : index
    %c0_242 = arith.constant 0 : index
    %183 = vector.load %arg12[%c35, %c0_242] : memref<49x400xf32, #tpu.memory_space<vmem>>, vector<7x400xf32>
    tpu.vector_store %arg12[%c35, %c0_242], %182 {strides = array<i32>} : memref<49x400xf32, #tpu.memory_space<vmem>>, vector<7x400xf32>,
    %c216_243 = arith.constant 216 : index
    %c0_244 = arith.constant 0 : index
    %184 = tpu.strided_load %arg11[%c216_243, %c0_244] {strides = array<i32: 2, 1>} : memref<324x16xf32, #tpu.memory_space<vmem>>, vector<7x16xf32>
    %c217_245 = arith.constant 217 : index
    %c0_246 = arith.constant 0 : index
    %185 = tpu.strided_load %arg11[%c217_245, %c0_246] {strides = array<i32: 2, 1>} : memref<324x16xf32, #tpu.memory_space<vmem>>, vector<7x16xf32>
    %c218_247 = arith.constant 218 : index
    %c0_248 = arith.constant 0 : index
    %186 = tpu.strided_load %arg11[%c218_247, %c0_248] {strides = array<i32: 2, 1>} : memref<324x16xf32, #tpu.memory_space<vmem>>, vector<7x16xf32>
    %c219_249 = arith.constant 219 : index
    %c0_250 = arith.constant 0 : index
    %187 = tpu.strided_load %arg11[%c219_249, %c0_250] {strides = array<i32: 2, 1>} : memref<324x16xf32, #tpu.memory_space<vmem>>, vector<7x16xf32>
    %c220_251 = arith.constant 220 : index
    %c0_252 = arith.constant 0 : index
    %188 = tpu.strided_load %arg11[%c220_251, %c0_252] {strides = array<i32: 2, 1>} : memref<324x16xf32, #tpu.memory_space<vmem>>, vector<7x16xf32>
    %c234_253 = arith.constant 234 : index
    %c0_254 = arith.constant 0 : index
    %189 = tpu.strided_load %arg11[%c234_253, %c0_254] {strides = array<i32: 2, 1>} : memref<324x16xf32, #tpu.memory_space<vmem>>, vector<7x16xf32>
    %c235_255 = arith.constant 235 : index
    %c0_256 = arith.constant 0 : index
    %190 = tpu.strided_load %arg11[%c235_255, %c0_256] {strides = array<i32: 2, 1>} : memref<324x16xf32, #tpu.memory_space<vmem>>, vector<7x16xf32>
    %c236_257 = arith.constant 236 : index
    %c0_258 = arith.constant 0 : index
    %191 = tpu.strided_load %arg11[%c236_257, %c0_258] {strides = array<i32: 2, 1>} : memref<324x16xf32, #tpu.memory_space<vmem>>, vector<7x16xf32>
    %c237_259 = arith.constant 237 : index
    %c0_260 = arith.constant 0 : index
    %192 = tpu.strided_load %arg11[%c237_259, %c0_260] {strides = array<i32: 2, 1>} : memref<324x16xf32, #tpu.memory_space<vmem>>, vector<7x16xf32>
    %c238_261 = arith.constant 238 : index
    %c0_262 = arith.constant 0 : index
    %193 = tpu.strided_load %arg11[%c238_261, %c0_262] {strides = array<i32: 2, 1>} : memref<324x16xf32, #tpu.memory_space<vmem>>, vector<7x16xf32>
    %c252_263 = arith.constant 252 : index
    %c0_264 = arith.constant 0 : index
    %194 = tpu.strided_load %arg11[%c252_263, %c0_264] {strides = array<i32: 2, 1>} : memref<324x16xf32, #tpu.memory_space<vmem>>, vector<7x16xf32>
    %c253_265 = arith.constant 253 : index
    %c0_266 = arith.constant 0 : index
    %195 = tpu.strided_load %arg11[%c253_265, %c0_266] {strides = array<i32: 2, 1>} : memref<324x16xf32, #tpu.memory_space<vmem>>, vector<7x16xf32>
    %c254_267 = arith.constant 254 : index
    %c0_268 = arith.constant 0 : index
    %196 = tpu.strided_load %arg11[%c254_267, %c0_268] {strides = array<i32: 2, 1>} : memref<324x16xf32, #tpu.memory_space<vmem>>, vector<7x16xf32>
    %c255_269 = arith.constant 255 : index
    %c0_270 = arith.constant 0 : index
    %197 = tpu.strided_load %arg11[%c255_269, %c0_270] {strides = array<i32: 2, 1>} : memref<324x16xf32, #tpu.memory_space<vmem>>, vector<7x16xf32>
    %c256_271 = arith.constant 256 : index
    %c0_272 = arith.constant 0 : index
    %198 = tpu.strided_load %arg11[%c256_271, %c0_272] {strides = array<i32: 2, 1>} : memref<324x16xf32, #tpu.memory_space<vmem>>, vector<7x16xf32>
    %c270 = arith.constant 270 : index
    %c0_273 = arith.constant 0 : index
    %199 = tpu.strided_load %arg11[%c270, %c0_273] {strides = array<i32: 2, 1>} : memref<324x16xf32, #tpu.memory_space<vmem>>, vector<7x16xf32>
    %c271 = arith.constant 271 : index
    %c0_274 = arith.constant 0 : index
    %200 = tpu.strided_load %arg11[%c271, %c0_274] {strides = array<i32: 2, 1>} : memref<324x16xf32, #tpu.memory_space<vmem>>, vector<7x16xf32>
    %c272 = arith.constant 272 : index
    %c0_275 = arith.constant 0 : index
    %201 = tpu.strided_load %arg11[%c272, %c0_275] {strides = array<i32: 2, 1>} : memref<324x16xf32, #tpu.memory_space<vmem>>, vector<7x16xf32>
    %c273 = arith.constant 273 : index
    %c0_276 = arith.constant 0 : index
    %202 = tpu.strided_load %arg11[%c273, %c0_276] {strides = array<i32: 2, 1>} : memref<324x16xf32, #tpu.memory_space<vmem>>, vector<7x16xf32>
    %c274 = arith.constant 274 : index
    %c0_277 = arith.constant 0 : index
    %203 = tpu.strided_load %arg11[%c274, %c0_277] {strides = array<i32: 2, 1>} : memref<324x16xf32, #tpu.memory_space<vmem>>, vector<7x16xf32>
    %c288 = arith.constant 288 : index
    %c0_278 = arith.constant 0 : index
    %204 = tpu.strided_load %arg11[%c288, %c0_278] {strides = array<i32: 2, 1>} : memref<324x16xf32, #tpu.memory_space<vmem>>, vector<7x16xf32>
    %c289 = arith.constant 289 : index
    %c0_279 = arith.constant 0 : index
    %205 = tpu.strided_load %arg11[%c289, %c0_279] {strides = array<i32: 2, 1>} : memref<324x16xf32, #tpu.memory_space<vmem>>, vector<7x16xf32>
    %c290 = arith.constant 290 : index
    %c0_280 = arith.constant 0 : index
    %206 = tpu.strided_load %arg11[%c290, %c0_280] {strides = array<i32: 2, 1>} : memref<324x16xf32, #tpu.memory_space<vmem>>, vector<7x16xf32>
    %c291 = arith.constant 291 : index
    %c0_281 = arith.constant 0 : index
    %207 = tpu.strided_load %arg11[%c291, %c0_281] {strides = array<i32: 2, 1>} : memref<324x16xf32, #tpu.memory_space<vmem>>, vector<7x16xf32>
    %c292 = arith.constant 292 : index
    %c0_282 = arith.constant 0 : index
    %208 = tpu.strided_load %arg11[%c292, %c0_282] {strides = array<i32: 2, 1>} : memref<324x16xf32, #tpu.memory_space<vmem>>, vector<7x16xf32>
    %209 = tpu.concatenate %184, %185, %186, %187, %188, %189, %190, %191, %192, %193, %194, %195, %196, %197, %198, %199 in 1 : vector<7x16xf32>, vector<7x16xf32>, vector<7x16xf32>, vector<7x16xf32>, vector<7x16xf32>, vector<7x16xf32>, vector<7x16xf32>, vector<7x16xf32>, vector<7x16xf32>, vector<7x16xf32>, vector<7x16xf32>, vector<7x16xf32>, vector<7x16xf32>, vector<7x16xf32>, vector<7x16xf32>, vector<7x16xf32> -> vector<7x256xf32>
    %210 = tpu.concatenate %200, %201, %202, %203, %204, %205, %206, %207, %208 in 1 : vector<7x16xf32>, vector<7x16xf32>, vector<7x16xf32>, vector<7x16xf32>, vector<7x16xf32>, vector<7x16xf32>, vector<7x16xf32>, vector<7x16xf32>, vector<7x16xf32> -> vector<7x144xf32>
    %211 = tpu.concatenate %209, %210 in 1 : vector<7x256xf32>, vector<7x144xf32> -> vector<7x400xf32>
    %c42 = arith.constant 42 : index
    %c0_283 = arith.constant 0 : index
    %212 = vector.load %arg12[%c42, %c0_283] : memref<49x400xf32, #tpu.memory_space<vmem>>, vector<7x400xf32>
    tpu.vector_store %arg12[%c42, %c0_283], %211 {strides = array<i32>} : memref<49x400xf32, #tpu.memory_space<vmem>>, vector<7x400xf32>,
    %c0_284 = arith.constant 0 : index
    %c0_285 = arith.constant 0 : index
    %213 = vector.load %arg12[%c0_284, %c0_285] : memref<49x400xf32, #tpu.memory_space<vmem>>, vector<49x400xf32>
    %c0_286 = arith.constant 0 : index
    %c0_287 = arith.constant 0 : index
    %214 = vector.load %arg4[%c0_286, %c0_287] : memref<400x32xf32, #tpu.memory_space<vmem>>, vector<400x32xf32>
    %cst_288 = arith.constant dense<0.000000e+00> : vector<49x32xf32>
    %215 = tpu.matmul %213, %214, %cst_288 {dimension_numbers = #tpu.dot_dimension_numbers<[1], [0], [0], [1], [0, 0, 1, 1], [], []>} : vector<49x400xf32>, vector<400x32xf32>, vector<49x32xf32> -> vector<49x32xf32>
    %c0_289 = arith.constant 0 : index
    %c0_290 = arith.constant 0 : index
    %216 = vector.load %arg5[%c0_289, %c0_290] : memref<1x32xf32, #tpu.memory_space<vmem>>, vector<1x32xf32>
    %217 = vector.broadcast %216 : vector<1x32xf32> to vector<49x32xf32>
    %218 = arith.addf %215, %217 : vector<49x32xf32>
    %cst_291 = arith.constant 0.000000e+00 : f32
    %219 = vector.broadcast %cst_291 : f32 to vector<49x32xf32>
    %220 = arith.maximumf %218, %219 : vector<49x32xf32>
    %c0_292 = arith.constant 0 : index
    %c0_293 = arith.constant 0 : index
    %221 = vector.load %arg13[%c0_292, %c0_293] : memref<49x32xf32, #tpu.memory_space<vmem>>, vector<49x32xf32>
    tpu.vector_store %arg13[%c0_292, %c0_293], %220 {strides = array<i32>} : memref<49x32xf32, #tpu.memory_space<vmem>>, vector<49x32xf32>,
    %c0_294 = arith.constant 0 : index
    %c0_295 = arith.constant 0 : index
    %222 = tpu.strided_load %arg13[%c0_294, %c0_295] {strides = array<i32: 2, 1>} : memref<49x32xf32, #tpu.memory_space<vmem>>, vector<2x32xf32>
    %c1_296 = arith.constant 1 : index
    %c0_297 = arith.constant 0 : index
    %223 = tpu.strided_load %arg13[%c1_296, %c0_297] {strides = array<i32: 2, 1>} : memref<49x32xf32, #tpu.memory_space<vmem>>, vector<2x32xf32>
    %c2_298 = arith.constant 2 : index
    %c0_299 = arith.constant 0 : index
    %224 = tpu.strided_load %arg13[%c2_298, %c0_299] {strides = array<i32: 2, 1>} : memref<49x32xf32, #tpu.memory_space<vmem>>, vector<2x32xf32>
    %c3_300 = arith.constant 3 : index
    %c0_301 = arith.constant 0 : index
    %225 = tpu.strided_load %arg13[%c3_300, %c0_301] {strides = array<i32: 2, 1>} : memref<49x32xf32, #tpu.memory_space<vmem>>, vector<2x32xf32>
    %c4_302 = arith.constant 4 : index
    %c0_303 = arith.constant 0 : index
    %226 = tpu.strided_load %arg13[%c4_302, %c0_303] {strides = array<i32: 2, 1>} : memref<49x32xf32, #tpu.memory_space<vmem>>, vector<2x32xf32>
    %c7_304 = arith.constant 7 : index
    %c0_305 = arith.constant 0 : index
    %227 = tpu.strided_load %arg13[%c7_304, %c0_305] {strides = array<i32: 2, 1>} : memref<49x32xf32, #tpu.memory_space<vmem>>, vector<2x32xf32>
    %c8 = arith.constant 8 : index
    %c0_306 = arith.constant 0 : index
    %228 = tpu.strided_load %arg13[%c8, %c0_306] {strides = array<i32: 2, 1>} : memref<49x32xf32, #tpu.memory_space<vmem>>, vector<2x32xf32>
    %c9 = arith.constant 9 : index
    %c0_307 = arith.constant 0 : index
    %229 = tpu.strided_load %arg13[%c9, %c0_307] {strides = array<i32: 2, 1>} : memref<49x32xf32, #tpu.memory_space<vmem>>, vector<2x32xf32>
    %c10 = arith.constant 10 : index
    %c0_308 = arith.constant 0 : index
    %230 = tpu.strided_load %arg13[%c10, %c0_308] {strides = array<i32: 2, 1>} : memref<49x32xf32, #tpu.memory_space<vmem>>, vector<2x32xf32>
    %c11 = arith.constant 11 : index
    %c0_309 = arith.constant 0 : index
    %231 = tpu.strided_load %arg13[%c11, %c0_309] {strides = array<i32: 2, 1>} : memref<49x32xf32, #tpu.memory_space<vmem>>, vector<2x32xf32>
    %c14_310 = arith.constant 14 : index
    %c0_311 = arith.constant 0 : index
    %232 = tpu.strided_load %arg13[%c14_310, %c0_311] {strides = array<i32: 2, 1>} : memref<49x32xf32, #tpu.memory_space<vmem>>, vector<2x32xf32>
    %c15 = arith.constant 15 : index
    %c0_312 = arith.constant 0 : index
    %233 = tpu.strided_load %arg13[%c15, %c0_312] {strides = array<i32: 2, 1>} : memref<49x32xf32, #tpu.memory_space<vmem>>, vector<2x32xf32>
    %c16 = arith.constant 16 : index
    %c0_313 = arith.constant 0 : index
    %234 = tpu.strided_load %arg13[%c16, %c0_313] {strides = array<i32: 2, 1>} : memref<49x32xf32, #tpu.memory_space<vmem>>, vector<2x32xf32>
    %c17 = arith.constant 17 : index
    %c0_314 = arith.constant 0 : index
    %235 = tpu.strided_load %arg13[%c17, %c0_314] {strides = array<i32: 2, 1>} : memref<49x32xf32, #tpu.memory_space<vmem>>, vector<2x32xf32>
    %c18_315 = arith.constant 18 : index
    %c0_316 = arith.constant 0 : index
    %236 = tpu.strided_load %arg13[%c18_315, %c0_316] {strides = array<i32: 2, 1>} : memref<49x32xf32, #tpu.memory_space<vmem>>, vector<2x32xf32>
    %c21_317 = arith.constant 21 : index
    %c0_318 = arith.constant 0 : index
    %237 = tpu.strided_load %arg13[%c21_317, %c0_318] {strides = array<i32: 2, 1>} : memref<49x32xf32, #tpu.memory_space<vmem>>, vector<2x32xf32>
    %c22_319 = arith.constant 22 : index
    %c0_320 = arith.constant 0 : index
    %238 = tpu.strided_load %arg13[%c22_319, %c0_320] {strides = array<i32: 2, 1>} : memref<49x32xf32, #tpu.memory_space<vmem>>, vector<2x32xf32>
    %c23 = arith.constant 23 : index
    %c0_321 = arith.constant 0 : index
    %239 = tpu.strided_load %arg13[%c23, %c0_321] {strides = array<i32: 2, 1>} : memref<49x32xf32, #tpu.memory_space<vmem>>, vector<2x32xf32>
    %c24 = arith.constant 24 : index
    %c0_322 = arith.constant 0 : index
    %240 = tpu.strided_load %arg13[%c24, %c0_322] {strides = array<i32: 2, 1>} : memref<49x32xf32, #tpu.memory_space<vmem>>, vector<2x32xf32>
    %c25 = arith.constant 25 : index
    %c0_323 = arith.constant 0 : index
    %241 = tpu.strided_load %arg13[%c25, %c0_323] {strides = array<i32: 2, 1>} : memref<49x32xf32, #tpu.memory_space<vmem>>, vector<2x32xf32>
    %c28_324 = arith.constant 28 : index
    %c0_325 = arith.constant 0 : index
    %242 = tpu.strided_load %arg13[%c28_324, %c0_325] {strides = array<i32: 2, 1>} : memref<49x32xf32, #tpu.memory_space<vmem>>, vector<2x32xf32>
    %c29 = arith.constant 29 : index
    %c0_326 = arith.constant 0 : index
    %243 = tpu.strided_load %arg13[%c29, %c0_326] {strides = array<i32: 2, 1>} : memref<49x32xf32, #tpu.memory_space<vmem>>, vector<2x32xf32>
    %c30 = arith.constant 30 : index
    %c0_327 = arith.constant 0 : index
    %244 = tpu.strided_load %arg13[%c30, %c0_327] {strides = array<i32: 2, 1>} : memref<49x32xf32, #tpu.memory_space<vmem>>, vector<2x32xf32>
    %c31 = arith.constant 31 : index
    %c0_328 = arith.constant 0 : index
    %245 = tpu.strided_load %arg13[%c31, %c0_328] {strides = array<i32: 2, 1>} : memref<49x32xf32, #tpu.memory_space<vmem>>, vector<2x32xf32>
    %c32 = arith.constant 32 : index
    %c0_329 = arith.constant 0 : index
    %246 = tpu.strided_load %arg13[%c32, %c0_329] {strides = array<i32: 2, 1>} : memref<49x32xf32, #tpu.memory_space<vmem>>, vector<2x32xf32>
    %247 = tpu.concatenate %222, %223, %224, %225, %226, %227, %228, %229, %230, %231, %232, %233, %234, %235, %236, %237 in 1 : vector<2x32xf32>, vector<2x32xf32>, vector<2x32xf32>, vector<2x32xf32>, vector<2x32xf32>, vector<2x32xf32>, vector<2x32xf32>, vector<2x32xf32>, vector<2x32xf32>, vector<2x32xf32>, vector<2x32xf32>, vector<2x32xf32>, vector<2x32xf32>, vector<2x32xf32>, vector<2x32xf32>, vector<2x32xf32> -> vector<2x512xf32>
    %248 = tpu.concatenate %238, %239, %240, %241, %242, %243, %244, %245, %246 in 1 : vector<2x32xf32>, vector<2x32xf32>, vector<2x32xf32>, vector<2x32xf32>, vector<2x32xf32>, vector<2x32xf32>, vector<2x32xf32>, vector<2x32xf32>, vector<2x32xf32> -> vector<2x288xf32>
    %249 = tpu.concatenate %247, %248 in 1 : vector<2x512xf32>, vector<2x288xf32> -> vector<2x800xf32>
    %c0_330 = arith.constant 0 : index
    %c0_331 = arith.constant 0 : index
    %250 = vector.load %arg14[%c0_330, %c0_331] : memref<4x800xf32, #tpu.memory_space<vmem>>, vector<2x800xf32>
    tpu.vector_store %arg14[%c0_330, %c0_331], %249 {strides = array<i32>} : memref<4x800xf32, #tpu.memory_space<vmem>>, vector<2x800xf32>,
    %c14_332 = arith.constant 14 : index
    %c0_333 = arith.constant 0 : index
    %251 = tpu.strided_load %arg13[%c14_332, %c0_333] {strides = array<i32: 2, 1>} : memref<49x32xf32, #tpu.memory_space<vmem>>, vector<2x32xf32>
    %c15_334 = arith.constant 15 : index
    %c0_335 = arith.constant 0 : index
    %252 = tpu.strided_load %arg13[%c15_334, %c0_335] {strides = array<i32: 2, 1>} : memref<49x32xf32, #tpu.memory_space<vmem>>, vector<2x32xf32>
    %c16_336 = arith.constant 16 : index
    %c0_337 = arith.constant 0 : index
    %253 = tpu.strided_load %arg13[%c16_336, %c0_337] {strides = array<i32: 2, 1>} : memref<49x32xf32, #tpu.memory_space<vmem>>, vector<2x32xf32>
    %c17_338 = arith.constant 17 : index
    %c0_339 = arith.constant 0 : index
    %254 = tpu.strided_load %arg13[%c17_338, %c0_339] {strides = array<i32: 2, 1>} : memref<49x32xf32, #tpu.memory_space<vmem>>, vector<2x32xf32>
    %c18_340 = arith.constant 18 : index
    %c0_341 = arith.constant 0 : index
    %255 = tpu.strided_load %arg13[%c18_340, %c0_341] {strides = array<i32: 2, 1>} : memref<49x32xf32, #tpu.memory_space<vmem>>, vector<2x32xf32>
    %c21_342 = arith.constant 21 : index
    %c0_343 = arith.constant 0 : index
    %256 = tpu.strided_load %arg13[%c21_342, %c0_343] {strides = array<i32: 2, 1>} : memref<49x32xf32, #tpu.memory_space<vmem>>, vector<2x32xf32>
    %c22_344 = arith.constant 22 : index
    %c0_345 = arith.constant 0 : index
    %257 = tpu.strided_load %arg13[%c22_344, %c0_345] {strides = array<i32: 2, 1>} : memref<49x32xf32, #tpu.memory_space<vmem>>, vector<2x32xf32>
    %c23_346 = arith.constant 23 : index
    %c0_347 = arith.constant 0 : index
    %258 = tpu.strided_load %arg13[%c23_346, %c0_347] {strides = array<i32: 2, 1>} : memref<49x32xf32, #tpu.memory_space<vmem>>, vector<2x32xf32>
    %c24_348 = arith.constant 24 : index
    %c0_349 = arith.constant 0 : index
    %259 = tpu.strided_load %arg13[%c24_348, %c0_349] {strides = array<i32: 2, 1>} : memref<49x32xf32, #tpu.memory_space<vmem>>, vector<2x32xf32>
    %c25_350 = arith.constant 25 : index
    %c0_351 = arith.constant 0 : index
    %260 = tpu.strided_load %arg13[%c25_350, %c0_351] {strides = array<i32: 2, 1>} : memref<49x32xf32, #tpu.memory_space<vmem>>, vector<2x32xf32>
    %c28_352 = arith.constant 28 : index
    %c0_353 = arith.constant 0 : index
    %261 = tpu.strided_load %arg13[%c28_352, %c0_353] {strides = array<i32: 2, 1>} : memref<49x32xf32, #tpu.memory_space<vmem>>, vector<2x32xf32>
    %c29_354 = arith.constant 29 : index
    %c0_355 = arith.constant 0 : index
    %262 = tpu.strided_load %arg13[%c29_354, %c0_355] {strides = array<i32: 2, 1>} : memref<49x32xf32, #tpu.memory_space<vmem>>, vector<2x32xf32>
    %c30_356 = arith.constant 30 : index
    %c0_357 = arith.constant 0 : index
    %263 = tpu.strided_load %arg13[%c30_356, %c0_357] {strides = array<i32: 2, 1>} : memref<49x32xf32, #tpu.memory_space<vmem>>, vector<2x32xf32>
    %c31_358 = arith.constant 31 : index
    %c0_359 = arith.constant 0 : index
    %264 = tpu.strided_load %arg13[%c31_358, %c0_359] {strides = array<i32: 2, 1>} : memref<49x32xf32, #tpu.memory_space<vmem>>, vector<2x32xf32>
    %c32_360 = arith.constant 32 : index
    %c0_361 = arith.constant 0 : index
    %265 = tpu.strided_load %arg13[%c32_360, %c0_361] {strides = array<i32: 2, 1>} : memref<49x32xf32, #tpu.memory_space<vmem>>, vector<2x32xf32>
    %c35_362 = arith.constant 35 : index
    %c0_363 = arith.constant 0 : index
    %266 = tpu.strided_load %arg13[%c35_362, %c0_363] {strides = array<i32: 2, 1>} : memref<49x32xf32, #tpu.memory_space<vmem>>, vector<2x32xf32>
    %c36_364 = arith.constant 36 : index
    %c0_365 = arith.constant 0 : index
    %267 = tpu.strided_load %arg13[%c36_364, %c0_365] {strides = array<i32: 2, 1>} : memref<49x32xf32, #tpu.memory_space<vmem>>, vector<2x32xf32>
    %c37_366 = arith.constant 37 : index
    %c0_367 = arith.constant 0 : index
    %268 = tpu.strided_load %arg13[%c37_366, %c0_367] {strides = array<i32: 2, 1>} : memref<49x32xf32, #tpu.memory_space<vmem>>, vector<2x32xf32>
    %c38_368 = arith.constant 38 : index
    %c0_369 = arith.constant 0 : index
    %269 = tpu.strided_load %arg13[%c38_368, %c0_369] {strides = array<i32: 2, 1>} : memref<49x32xf32, #tpu.memory_space<vmem>>, vector<2x32xf32>
    %c39_370 = arith.constant 39 : index
    %c0_371 = arith.constant 0 : index
    %270 = tpu.strided_load %arg13[%c39_370, %c0_371] {strides = array<i32: 2, 1>} : memref<49x32xf32, #tpu.memory_space<vmem>>, vector<2x32xf32>
    %c42_372 = arith.constant 42 : index
    %c0_373 = arith.constant 0 : index
    %271 = tpu.strided_load %arg13[%c42_372, %c0_373] {strides = array<i32: 2, 1>} : memref<49x32xf32, #tpu.memory_space<vmem>>, vector<2x32xf32>
    %c43 = arith.constant 43 : index
    %c0_374 = arith.constant 0 : index
    %272 = tpu.strided_load %arg13[%c43, %c0_374] {strides = array<i32: 2, 1>} : memref<49x32xf32, #tpu.memory_space<vmem>>, vector<2x32xf32>
    %c44 = arith.constant 44 : index
    %c0_375 = arith.constant 0 : index
    %273 = tpu.strided_load %arg13[%c44, %c0_375] {strides = array<i32: 2, 1>} : memref<49x32xf32, #tpu.memory_space<vmem>>, vector<2x32xf32>
    %c45 = arith.constant 45 : index
    %c0_376 = arith.constant 0 : index
    %274 = tpu.strided_load %arg13[%c45, %c0_376] {strides = array<i32: 2, 1>} : memref<49x32xf32, #tpu.memory_space<vmem>>, vector<2x32xf32>
    %c46 = arith.constant 46 : index
    %c0_377 = arith.constant 0 : index
    %275 = tpu.strided_load %arg13[%c46, %c0_377] {strides = array<i32: 2, 1>} : memref<49x32xf32, #tpu.memory_space<vmem>>, vector<2x32xf32>
    %276 = tpu.concatenate %251, %252, %253, %254, %255, %256, %257, %258, %259, %260, %261, %262, %263, %264, %265, %266 in 1 : vector<2x32xf32>, vector<2x32xf32>, vector<2x32xf32>, vector<2x32xf32>, vector<2x32xf32>, vector<2x32xf32>, vector<2x32xf32>, vector<2x32xf32>, vector<2x32xf32>, vector<2x32xf32>, vector<2x32xf32>, vector<2x32xf32>, vector<2x32xf32>, vector<2x32xf32>, vector<2x32xf32>, vector<2x32xf32> -> vector<2x512xf32>
    %277 = tpu.concatenate %267, %268, %269, %270, %271, %272, %273, %274, %275 in 1 : vector<2x32xf32>, vector<2x32xf32>, vector<2x32xf32>, vector<2x32xf32>, vector<2x32xf32>, vector<2x32xf32>, vector<2x32xf32>, vector<2x32xf32>, vector<2x32xf32> -> vector<2x288xf32>
    %278 = tpu.concatenate %276, %277 in 1 : vector<2x512xf32>, vector<2x288xf32> -> vector<2x800xf32>
    %c2_378 = arith.constant 2 : index
    %c0_379 = arith.constant 0 : index
    %279 = vector.load %arg14[%c2_378, %c0_379] : memref<4x800xf32, #tpu.memory_space<vmem>>, vector<2x800xf32>
    tpu.vector_store %arg14[%c2_378, %c0_379], %278 {strides = array<i32>} : memref<4x800xf32, #tpu.memory_space<vmem>>, vector<2x800xf32>,
    %c0_380 = arith.constant 0 : index
    %c0_381 = arith.constant 0 : index
    %280 = vector.load %arg14[%c0_380, %c0_381] : memref<4x800xf32, #tpu.memory_space<vmem>>, vector<4x800xf32>
    %c0_382 = arith.constant 0 : index
    %c0_383 = arith.constant 0 : index
    %281 = vector.load %arg6[%c0_382, %c0_383] : memref<800x32xf32, #tpu.memory_space<vmem>>, vector<800x32xf32>
    %cst_384 = arith.constant dense<0.000000e+00> : vector<4x32xf32>
    %282 = tpu.matmul %280, %281, %cst_384 {dimension_numbers = #tpu.dot_dimension_numbers<[1], [0], [0], [1], [0, 0, 1, 1], [], []>} : vector<4x800xf32>, vector<800x32xf32>, vector<4x32xf32> -> vector<4x32xf32>
    %c0_385 = arith.constant 0 : index
    %c0_386 = arith.constant 0 : index
    %283 = vector.load %arg7[%c0_385, %c0_386] : memref<1x32xf32, #tpu.memory_space<vmem>>, vector<1x32xf32>
    %284 = vector.broadcast %283 : vector<1x32xf32> to vector<4x32xf32>
    %285 = arith.addf %282, %284 : vector<4x32xf32>
    %cst_387 = arith.constant 0.000000e+00 : f32
    %286 = vector.broadcast %cst_387 : f32 to vector<4x32xf32>
    %287 = arith.maximumf %285, %286 : vector<4x32xf32>
    %c0_388 = arith.constant 0 : index
    %c0_389 = arith.constant 0 : index
    %288 = vector.load %arg9[%c0_388, %c0_389] : memref<1x4xf32, #tpu.memory_space<vmem>>, vector<1x4xf32>
    %289 = vector.extract_strided_slice %287 {offsets = [0, 0], sizes = [1, 32], strides = [1, 1]} : vector<4x32xf32> to vector<1x32xf32>
    %c0_390 = arith.constant 0 : index
    %c0_391 = arith.constant 0 : index
    %290 = vector.load %arg8[%c0_390, %c0_391] : memref<128x4xf32, #tpu.memory_space<vmem>>, vector<32x4xf32>
    %cst_392 = arith.constant dense<0.000000e+00> : vector<1x4xf32>
    %291 = tpu.matmul %289, %290, %cst_392 {dimension_numbers = #tpu.dot_dimension_numbers<[1], [0], [0], [1], [0, 0, 1, 1], [], []>} : vector<1x32xf32>, vector<32x4xf32>, vector<1x4xf32> -> vector<1x4xf32>
    %292 = arith.addf %288, %291 : vector<1x4xf32>
    %293 = vector.extract_strided_slice %287 {offsets = [1, 0], sizes = [1, 32], strides = [1, 1]} : vector<4x32xf32> to vector<1x32xf32>
    %c32_393 = arith.constant 32 : index
    %c0_394 = arith.constant 0 : index
    %294 = vector.load %arg8[%c32_393, %c0_394] : memref<128x4xf32, #tpu.memory_space<vmem>>, vector<32x4xf32>
    %cst_395 = arith.constant dense<0.000000e+00> : vector<1x4xf32>
    %295 = tpu.matmul %293, %294, %cst_395 {dimension_numbers = #tpu.dot_dimension_numbers<[1], [0], [0], [1], [0, 0, 1, 1], [], []>} : vector<1x32xf32>, vector<32x4xf32>, vector<1x4xf32> -> vector<1x4xf32>
    %296 = arith.addf %292, %295 : vector<1x4xf32>
    %297 = vector.extract_strided_slice %287 {offsets = [2, 0], sizes = [1, 32], strides = [1, 1]} : vector<4x32xf32> to vector<1x32xf32>
    %c64 = arith.constant 64 : index
    %c0_396 = arith.constant 0 : index
    %298 = vector.load %arg8[%c64, %c0_396] : memref<128x4xf32, #tpu.memory_space<vmem>>, vector<32x4xf32>
    %cst_397 = arith.constant dense<0.000000e+00> : vector<1x4xf32>
    %299 = tpu.matmul %297, %298, %cst_397 {dimension_numbers = #tpu.dot_dimension_numbers<[1], [0], [0], [1], [0, 0, 1, 1], [], []>} : vector<1x32xf32>, vector<32x4xf32>, vector<1x4xf32> -> vector<1x4xf32>
    %300 = arith.addf %296, %299 : vector<1x4xf32>
    %301 = vector.extract_strided_slice %287 {offsets = [3, 0], sizes = [1, 32], strides = [1, 1]} : vector<4x32xf32> to vector<1x32xf32>
    %c96 = arith.constant 96 : index
    %c0_398 = arith.constant 0 : index
    %302 = vector.load %arg8[%c96, %c0_398] : memref<128x4xf32, #tpu.memory_space<vmem>>, vector<32x4xf32>
    %cst_399 = arith.constant dense<0.000000e+00> : vector<1x4xf32>
    %303 = tpu.matmul %301, %302, %cst_399 {dimension_numbers = #tpu.dot_dimension_numbers<[1], [0], [0], [1], [0, 0, 1, 1], [], []>} : vector<1x32xf32>, vector<32x4xf32>, vector<1x4xf32> -> vector<1x4xf32>
    %304 = arith.addf %300, %303 : vector<1x4xf32>
    %c0_400 = arith.constant 0 : index
    %c0_401 = arith.constant 0 : index
    %c0_402 = arith.constant 0 : index
    %305 = vector.load %arg10[%c0_400, %c0_401, %c0_402] : memref<1x1x4xf32, #tpu.memory_space<vmem>>, vector<1x1x4xf32>
    %306 = vector.shape_cast %305 : vector<1x1x4xf32> to vector<1x4xf32>
    %307 = vector.shape_cast %304 : vector<1x4xf32> to vector<1x1x4xf32>
    tpu.vector_store %arg10[%c0_400, %c0_401, %c0_402], %307 {strides = array<i32>} : memref<1x1x4xf32, #tpu.memory_space<vmem>>, vector<1x1x4xf32>,
    return
  }
  func.func @transform_0(%arg0: i32) -> (i32, i32, i32) {
    %c0_i32 = arith.constant 0 : i32
    %c0_i32_0 = arith.constant 0 : i32
    %c0_i32_1 = arith.constant 0 : i32
    return %arg0, %c0_i32, %c0_i32_0 : i32, i32, i32
  }
  func.func @transform_1(%arg0: i32) -> (i32, i32) {
    %c0_i32 = arith.constant 0 : i32
    %c0_i32_0 = arith.constant 0 : i32
    %c0_i32_1 = arith.constant 0 : i32
    return %c0_i32, %c0_i32_0 : i32, i32
  }
  func.func @transform_2(%arg0: i32) -> (i32, i32) {
    %c0_i32 = arith.constant 0 : i32
    %c0_i32_0 = arith.constant 0 : i32
    %c0_i32_1 = arith.constant 0 : i32
    return %c0_i32, %c0_i32_0 : i32, i32
  }
  func.func @transform_3(%arg0: i32) -> (i32, i32) {
    %c0_i32 = arith.constant 0 : i32
    %c0_i32_0 = arith.constant 0 : i32
    %c0_i32_1 = arith.constant 0 : i32
    return %c0_i32, %c0_i32_0 : i32, i32
  }
  func.func @transform_4(%arg0: i32) -> (i32, i32) {
    %c0_i32 = arith.constant 0 : i32
    %c0_i32_0 = arith.constant 0 : i32
    %c0_i32_1 = arith.constant 0 : i32
    return %c0_i32, %c0_i32_0 : i32, i32
  }
  func.func @transform_5(%arg0: i32) -> (i32, i32) {
    %c0_i32 = arith.constant 0 : i32
    %c0_i32_0 = arith.constant 0 : i32
    %c0_i32_1 = arith.constant 0 : i32
    return %c0_i32, %c0_i32_0 : i32, i32
  }
  func.func @transform_6(%arg0: i32) -> (i32, i32) {
    %c0_i32 = arith.constant 0 : i32
    %c0_i32_0 = arith.constant 0 : i32
    %c0_i32_1 = arith.constant 0 : i32
    return %c0_i32, %c0_i32_0 : i32, i32
  }
  func.func @transform_7(%arg0: i32) -> (i32, i32) {
    %c0_i32 = arith.constant 0 : i32
    %c0_i32_0 = arith.constant 0 : i32
    %c0_i32_1 = arith.constant 0 : i32
    return %c0_i32, %c0_i32_0 : i32, i32
  }
  func.func @transform_8(%arg0: i32) -> (i32, i32) {
    %c0_i32 = arith.constant 0 : i32
    %c0_i32_0 = arith.constant 0 : i32
    %c0_i32_1 = arith.constant 0 : i32
    return %c0_i32, %c0_i32_0 : i32, i32
  }
  func.func @transform_9(%arg0: i32) -> (i32, i32, i32) {
    %c0_i32 = arith.constant 0 : i32
    %c0_i32_0 = arith.constant 0 : i32
    %c0_i32_1 = arith.constant 0 : i32
    return %arg0, %c0_i32, %c0_i32_0 : i32, i32, i32
  }
}

</mosaic_0001>

<llo_original>
// kernel: dqn_forward.1
$region0: #{dqn_forward.1}
  #allocation0 [shape = 'u32[]', space=smem, size = 0x4, offset = 0x4, fixed_abs, tag = 'smem constant byte address 0x4 - core index']
  #allocation1 [shape = 'u32[144,128]{1,0:T(1,128)}', space=vmem, size = 0x12000, scoped, tag = 'internal scratch']
  #allocation2 [shape = 'f32[324,16]{1,0:T(8,128)}', space=vmem, size = 0x29000, scoped, tag = 'scratch operand']
  #allocation3 [shape = 'f32[49,400]{1,0:T(8,128)}', space=vmem, size = 0x1c000, scoped, tag = 'scratch operand']
  #allocation4 [shape = 'f32[49,32]{1,0:T(8,128)}', space=vmem, size = 0x7000, scoped, tag = 'scratch operand']
  #allocation5 [shape = 'f32[4,800]{1,0:T(4,128)}', space=vmem, size = 0x3800, scoped, tag = 'scratch operand']
  %s0 = inlined_call_operand.vmem [shape: f32[2,324,75], index: 0, kind: input, shape index: {}]
  %s1 = inlined_call_operand.vmem [shape: f32[75,16], index: 1, kind: input, shape index: {}]
  %s2 = inlined_call_operand.vmem [shape: f32[1,16], index: 2, kind: input, shape index: {}]
  %s3 = inlined_call_operand.vmem [shape: f32[400,32], index: 3, kind: input, shape index: {}]
  %s4 = inlined_call_operand.vmem [shape: f32[1,32], index: 4, kind: input, shape index: {}]
  %s5 = inlined_call_operand.vmem [shape: f32[800,32], index: 5, kind: input, shape index: {}]
  %s6 = inlined_call_operand.vmem [shape: f32[1,32], index: 6, kind: input, shape index: {}]
  %s7 = inlined_call_operand.vmem [shape: f32[128,4], index: 7, kind: input, shape index: {}]
  %s8 = inlined_call_operand.vmem [shape: f32[1,4], index: 8, kind: input, shape index: {}]
  %s9 = inlined_call_operand.hbm [shape: f32[2,1,4], index: 9, kind: output, shape index: {}]
  %s10 = sld [smem:[#allocation0]]
  $region69: #{dqn_forward.1} parent=0
    _
  %s12 = ssub.s32 1, %s10
  %s13 = scalar_select 0, %s12, %s10
  $region1: #{dqn_forward.1} parent=0
    #allocation6 [shape = 'u8[1024]{0}', space=vmem, size = 0x400, scoped, tag = 'output window, operand 0']
    #allocation7 [shape = 's32[2]{0}', space=sflag, size = 0x8, scoped, tag = 'scoped memory for dqn_forward.1']
    %14 = vsyncpa [#allocation7], 0
    %s15 = scalar_lea.sflag [#allocation7], 1
    %16 = vsyncpa %s15, 0
    loop: start=0, step=1, limit=4
    $region2: #{dqn_forward.1} parent=1 // loop_pre_header
      _
    $region3: #{dqn_forward.1} parent=1 // loop_header
      %s18 = sphi 0, %s22
      %p19 = scmp.ge.s32.totalorder %s18, 4
      %s28 = sphi 0, %s30
      %s31 = sphi 0, %s28
      %s32 = sphi 0, %s31
      %s48 = sphi 0, %s32
      %s52 = sphi 0, %s52
      %s54 = sphi 0, %s52
      %s55 = sphi 0, %s54
      %s69 = sphi 0, %s55
      %s73 = sphi 0, %s73
      %s75 = sphi 0, %s73
      %s76 = sphi 0, %s75
      %s90 = sphi 0, %s76
      %s94 = sphi 0, %s94
      %s96 = sphi 0, %s94
      %s97 = sphi 0, %s96
      %s111 = sphi 0, %s97
      %s115 = sphi 0, %s115
      %s117 = sphi 0, %s115
      %s118 = sphi 0, %s117
      %s132 = sphi 0, %s118
      %s136 = sphi 0, %s136
      %s138 = sphi 0, %s136
      %s139 = sphi 0, %s138
      %s153 = sphi 0, %s139
      %s157 = sphi 0, %s157
      %s159 = sphi 0, %s157
      %s160 = sphi 0, %s159
      %s174 = sphi 0, %s160
      %s178 = sphi 0, %s178
      %s180 = sphi 0, %s178
      %s181 = sphi 0, %s180
      %s195 = sphi 0, %s181
      %s199 = sphi 0, %s199
      %s201 = sphi 0, %s199
      %s202 = sphi 0, %s201
      %s216 = sphi 0, %s202
      %s222 = sphi 0, %s224
      %s225 = sphi 0, %s222
      %s226 = sphi 0, %s225
      %s242 = sphi 0, %s226
    $region4: #{dqn_forward.1} parent=1 // loop_header_branch
      %21 = sbr.rel (%p19) target = $region8
    $region5: #{dqn_forward.1} parent=1 // loop_body
      %s23 = ssub.s32 %s18, 1
      %s24 = ssub.s32 %s18, 2
      %s25 = sadd.s32 %s18, 1
      %s26 = ssub.s32 %s18, %s25
      %p27 = scmp.eq.s32.totalorder %s26, 0
      %s29 = sadd.s32 %s28, 1
      %s30 = scalar_select %p27, %s28, %s29
      %p33 = pneg %p27
      %p34 = scmp.eq.s32.totalorder %s18, 1
      %p35 = por %p33, %p34
      %p36 = scmp.ne.s32.totalorder %s28, %s31
      %p37 = scmp.eq.s32.totalorder %s18, 0
      %p38 = por %p36, %p37
      %p39 = scmp.ne.s32.totalorder %s28, %s31
      %p40 = scmp.eq.s32.totalorder %s23, 1
      %p41 = por %p39, %p40
      %p42 = scmp.ne.s32.totalorder %s31, %s32
      %p43 = scmp.eq.s32.totalorder %s23, 0
      %p44 = por %p42, %p43
      %p45 = scmp.ne.s32.totalorder %s31, %s32
      %p46 = scmp.eq.s32.totalorder %s24, 1
      %p47 = por %p45, %p46
      %p49 = scmp.ne.s32.totalorder %s32, %s48
      %p50 = scmp.eq.s32.totalorder %s24, 0
      %p51 = por %p49, %p50
      %s53 = sadd.s32 %s52, 1
      %p56 = scmp.eq.s32.totalorder %s18, 1
      %p57 = scmp.ne.s32.totalorder %s52, %s54
      %p58 = scmp.eq.s32.totalorder %s18, 0
      %p59 = por %p57, %p58
      %p60 = scmp.ne.s32.totalorder %s52, %s54
      %p61 = scmp.eq.s32.totalorder %s23, 1
      %p62 = por %p60, %p61
      %p63 = scmp.ne.s32.totalorder %s54, %s55
      %p64 = scmp.eq.s32.totalorder %s23, 0
      %p65 = por %p63, %p64
      %p66 = scmp.ne.s32.totalorder %s54, %s55
      %p67 = scmp.eq.s32.totalorder %s24, 1
      %p68 = por %p66, %p67
      %p70 = scmp.ne.s32.totalorder %s55, %s69
      %p71 = scmp.eq.s32.totalorder %s24, 0
      %p72 = por %p70, %p71
      %s74 = sadd.s32 %s73, 1
      %p77 = scmp.eq.s32.totalorder %s18, 1
      %p78 = scmp.ne.s32.totalorder %s73, %s75
      %p79 = scmp.eq.s32.totalorder %s18, 0
      %p80 = por %p78, %p79
      %p81 = scmp.ne.s32.totalorder %s73, %s75
      %p82 = scmp.eq.s32.totalorder %s23, 1
      %p83 = por %p81, %p82
      %p84 = scmp.ne.s32.totalorder %s75, %s76
      %p85 = scmp.eq.s32.totalorder %s23, 0
      %p86 = por %p84, %p85
      %p87 = scmp.ne.s32.totalorder %s75, %s76
      %p88 = scmp.eq.s32.totalorder %s24, 1
      %p89 = por %p87, %p88
      %p91 = scmp.ne.s32.totalorder %s76, %s90
      %p92 = scmp.eq.s32.totalorder %s24, 0
      %p93 = por %p91, %p92
      %s95 = sadd.s32 %s94, 1
      %p98 = scmp.eq.s32.totalorder %s18, 1
      %p99 = scmp.ne.s32.totalorder %s94, %s96
      %p100 = scmp.eq.s32.totalorder %s18, 0
      %p101 = por %p99, %p100
      %p102 = scmp.ne.s32.totalorder %s94, %s96
      %p103 = scmp.eq.s32.totalorder %s23, 1
      %p104 = por %p102, %p103
      %p105 = scmp.ne.s32.totalorder %s96, %s97
      %p106 = scmp.eq.s32.totalorder %s23, 0
      %p107 = por %p105, %p106
      %p108 = scmp.ne.s32.totalorder %s96, %s97
      %p109 = scmp.eq.s32.totalorder %s24, 1
      %p110 = por %p108, %p109
      %p112 = scmp.ne.s32.totalorder %s97, %s111
      %p113 = scmp.eq.s32.totalorder %s24, 0
      %p114 = por %p112, %p113
      %s116 = sadd.s32 %s115, 1
      %p119 = scmp.eq.s32.totalorder %s18, 1
      %p120 = scmp.ne.s32.totalorder %s115, %s117
      %p121 = scmp.eq.s32.totalorder %s18, 0
      %p122 = por %p120, %p121
      %p123 = scmp.ne.s32.totalorder %s115, %s117
      %p124 = scmp.eq.s32.totalorder %s23, 1
      %p125 = por %p123, %p124
      %p126 = scmp.ne.s32.totalorder %s117, %s118
      %p127 = scmp.eq.s32.totalorder %s23, 0
      %p128 = por %p126, %p127
      %p129 = scmp.ne.s32.totalorder %s117, %s118
      %p130 = scmp.eq.s32.totalorder %s24, 1
      %p131 = por %p129, %p130
      %p133 = scmp.ne.s32.totalorder %s118, %s132
      %p134 = scmp.eq.s32.totalorder %s24, 0
      %p135 = por %p133, %p134
      %s137 = sadd.s32 %s136, 1
      %p140 = scmp.eq.s32.totalorder %s18, 1
      %p141 = scmp.ne.s32.totalorder %s136, %s138
      %p142 = scmp.eq.s32.totalorder %s18, 0
      %p143 = por %p141, %p142
      %p144 = scmp.ne.s32.totalorder %s136, %s138
      %p145 = scmp.eq.s32.totalorder %s23, 1
      %p146 = por %p144, %p145
      %p147 = scmp.ne.s32.totalorder %s138, %s139
      %p148 = scmp.eq.s32.totalorder %s23, 0
      %p149 = por %p147, %p148
      %p150 = scmp.ne.s32.totalorder %s138, %s139
      %p151 = scmp.eq.s32.totalorder %s24, 1
      %p152 = por %p150, %p151
      %p154 = scmp.ne.s32.totalorder %s139, %s153
      %p155 = scmp.eq.s32.totalorder %s24, 0
      %p156 = por %p154, %p155
      %s158 = sadd.s32 %s157, 1
      %p161 = scmp.eq.s32.totalorder %s18, 1
      %p162 = scmp.ne.s32.totalorder %s157, %s159
      %p163 = scmp.eq.s32.totalorder %s18, 0
      %p164 = por %p162, %p163
      %p165 = scmp.ne.s32.totalorder %s157, %s159
      %p166 = scmp.eq.s32.totalorder %s23, 1
      %p167 = por %p165, %p166
      %p168 = scmp.ne.s32.totalorder %s159, %s160
      %p169 = scmp.eq.s32.totalorder %s23, 0
      %p170 = por %p168, %p169
      %p171 = scmp.ne.s32.totalorder %s159, %s160
      %p172 = scmp.eq.s32.totalorder %s24, 1
      %p173 = por %p171, %p172
      %p175 = scmp.ne.s32.totalorder %s160, %s174
      %p176 = scmp.eq.s32.totalorder %s24, 0
      %p177 = por %p175, %p176
      %s179 = sadd.s32 %s178, 1
      %p182 = scmp.eq.s32.totalorder %s18, 1
      %p183 = scmp.ne.s32.totalorder %s178, %s180
      %p184 = scmp.eq.s32.totalorder %s18, 0
      %p185 = por %p183, %p184
      %p186 = scmp.ne.s32.totalorder %s178, %s180
      %p187 = scmp.eq.s32.totalorder %s23, 1
      %p188 = por %p186, %p187
      %p189 = scmp.ne.s32.totalorder %s180, %s181
      %p190 = scmp.eq.s32.totalorder %s23, 0
      %p191 = por %p189, %p190
      %p192 = scmp.ne.s32.totalorder %s180, %s181
      %p193 = scmp.eq.s32.totalorder %s24, 1
      %p194 = por %p192, %p193
      %p196 = scmp.ne.s32.totalorder %s181, %s195
      %p197 = scmp.eq.s32.totalorder %s24, 0
      %p198 = por %p196, %p197
      %s200 = sadd.s32 %s199, 1
      %p203 = scmp.eq.s32.totalorder %s18, 1
      %p204 = scmp.ne.s32.totalorder %s199, %s201
      %p205 = scmp.eq.s32.totalorder %s18, 0
      %p206 = por %p204, %p205
      %p207 = scmp.ne.s32.totalorder %s199, %s201
      %p208 = scmp.eq.s32.totalorder %s23, 1
      %p209 = por %p207, %p208
      %p210 = scmp.ne.s32.totalorder %s201, %s202
      %p211 = scmp.eq.s32.totalorder %s23, 0
      %p212 = por %p210, %p211
      %p213 = scmp.ne.s32.totalorder %s201, %s202
      %p214 = scmp.eq.s32.totalorder %s24, 1
      %p215 = por %p213, %p214
      %p217 = scmp.ne.s32.totalorder %s202, %s216
      %p218 = scmp.eq.s32.totalorder %s24, 0
      %p219 = por %p217, %p218
      %s220 = ssub.s32 %s18, %s25
      %p221 = scmp.eq.s32.totalorder %s220, 0
      %s223 = sadd.s32 %s222, 1
      %s224 = scalar_select %p221, %s222, %s223
      %p227 = pneg %p221
      %p228 = scmp.eq.s32.totalorder %s18, 1
      %p229 = por %p227, %p228
      %p230 = scmp.ne.s32.totalorder %s222, %s225
      %p231 = scmp.eq.s32.totalorder %s18, 0
      %p232 = por %p230, %p231
      %p233 = scmp.ne.s32.totalorder %s222, %s225
      %p234 = scmp.eq.s32.totalorder %s23, 1
      %p235 = por %p233, %p234
      %p236 = scmp.ne.s32.totalorder %s225, %s226
      %p237 = scmp.eq.s32.totalorder %s23, 0
      %p238 = por %p236, %p237
      %p239 = scmp.ne.s32.totalorder %s225, %s226
      %p240 = scmp.eq.s32.totalorder %s24, 1
      %p241 = por %p239, %p240
      %p243 = scmp.ne.s32.totalorder %s226, %s242
      %p244 = scmp.eq.s32.totalorder %s24, 0
      %p245 = por %p243, %p244
      %p246 = scmp.le.s32.totalorder 1, %s18
      %p247 = scmp.lt.s32.totalorder %s18, 3
      %p248 = pnand %p246, %p247
      %p249 = pneg %p248
      // Predicated region
      $region9: #{dqn_forward.1} parent=5 // pred_check
        _
      $region10: #{dqn_forward.1} parent=5 // pred_check_branch
        %251 = sbr.rel (%p248) target = $region12
      $region11: #{dqn_forward.1} parent=5 // pred_region
        %s252 = ssub.s32 %s18, 1
        // Predicated region
        $region13: #{dqn_forward.1} parent=11 // pred_check
          %p253 = pneg %p65
        $region14: #{dqn_forward.1} parent=11 // pred_check_branch
          %255 = sbr.rel (%p253) target = $region16
        $region15: #{dqn_forward.1} parent=11 // pred_region
          _
        $region16: #{dqn_forward.1} parent=11 // pred_fallthru
          _
        // Predicated region
        $region17: #{dqn_forward.1} parent=11 // pred_check
          %p256 = pneg %p86
        $region18: #{dqn_forward.1} parent=11 // pred_check_branch
          %258 = sbr.rel (%p256) target = $region20
        $region19: #{dqn_forward.1} parent=11 // pred_region
          _
        $region20: #{dqn_forward.1} parent=11 // pred_fallthru
          _
        // Predicated region
        $region21: #{dqn_forward.1} parent=11 // pred_check
          %p259 = pneg %p107
        $region22: #{dqn_forward.1} parent=11 // pred_check_branch
          %261 = sbr.rel (%p259) target = $region24
        $region23: #{dqn_forward.1} parent=11 // pred_region
          _
        $region24: #{dqn_forward.1} parent=11 // pred_fallthru
          _
        // Predicated region
        $region25: #{dqn_forward.1} parent=11 // pred_check
          %p262 = pneg %p128
        $region26: #{dqn_forward.1} parent=11 // pred_check_branch
          %264 = sbr.rel (%p262) target = $region28
        $region27: #{dqn_forward.1} parent=11 // pred_region
          _
        $region28: #{dqn_forward.1} parent=11 // pred_fallthru
          _
        // Predicated region
        $region29: #{dqn_forward.1} parent=11 // pred_check
          %p265 = pneg %p149
        $region30: #{dqn_forward.1} parent=11 // pred_check_branch
          %267 = sbr.rel (%p265) target = $region32
        $region31: #{dqn_forward.1} parent=11 // pred_region
          _
        $region32: #{dqn_forward.1} parent=11 // pred_fallthru
          _
        // Predicated region
        $region33: #{dqn_forward.1} parent=11 // pred_check
          %p268 = pneg %p170
        $region34: #{dqn_forward.1} parent=11 // pred_check_branch
          %270 = sbr.rel (%p268) target = $region36
        $region35: #{dqn_forward.1} parent=11 // pred_region
          _
        $region36: #{dqn_forward.1} parent=11 // pred_fallthru
          _
        // Predicated region
        $region37: #{dqn_forward.1} parent=11 // pred_check
          %p271 = pneg %p191
        $region38: #{dqn_forward.1} parent=11 // pred_check_branch
          %273 = sbr.rel (%p271) target = $region40
        $region39: #{dqn_forward.1} parent=11 // pred_region
          _
        $region40: #{dqn_forward.1} parent=11 // pred_fallthru
          _
        // Predicated region
        $region41: #{dqn_forward.1} parent=11 // pred_check
          %p274 = pneg %p212
        $region42: #{dqn_forward.1} parent=11 // pred_check_branch
          %276 = sbr.rel (%p274) target = $region44
        $region43: #{dqn_forward.1} parent=11 // pred_region
          _
        $region44: #{dqn_forward.1} parent=11 // pred_fallthru
          _
      $region12: #{dqn_forward.1} parent=5 // pred_fallthru
        _
      %p277 = scmp.lt.s32.totalorder %s18, 2
      // Predicated region
      $region45: #{dqn_forward.1} parent=5 // pred_check
        %p278 = pneg %p277
      $region46: #{dqn_forward.1} parent=5 // pred_check_branch
        %280 = sbr.rel (%p278) target = $region48
      $region47: #{dqn_forward.1} parent=5 // pred_region
        // Predicated region
        $region49: #{dqn_forward.1} parent=47 // pred_check
          %p281 = pneg %p38
        $region50: #{dqn_forward.1} parent=47 // pred_check_branch
          %283 = sbr.rel (%p281) target = $region52
        $region51: #{dqn_forward.1} parent=47 // pred_region
          %p284 = scmp.lt.s32.totalorder %s18, 1
          %s285 = scalar_select %p284, %s18, 1
          %s286 = smul.addr %s285, 41
          %s287 = smul.addr %s286, 8
          %s288 = scalar_lea.vmem %s0, %s287
        $region52: #{dqn_forward.1} parent=47 // pred_fallthru
          _
      $region48: #{dqn_forward.1} parent=5 // pred_fallthru
        _
      %p289 = scmp.le.s32.totalorder 1, %s18
      %p290 = scmp.lt.s32.totalorder %s18, 3
      %p291 = pnand %p289, %p290
      %p292 = pneg %p291
      // Predicated region
      $region53: #{dqn_forward.1} parent=5 // pred_check
        _
      $region54: #{dqn_forward.1} parent=5 // pred_check_branch
        %294 = sbr.rel (%p291) target = $region56
      $region55: #{dqn_forward.1} parent=5 // pred_region
        %s295 = ssub.s32 %s18, 1
        %p296 = scmp.lt.s32.totalorder %s23, 1
        %s297 = scalar_select %p296, %s23, 1
        %s298 = smul.addr %s297, 41
        %s299 = smul.addr %s298, 8
        %s300 = scalar_lea.vmem %s0, %s299
        %p301 = pneg %p44
        %p302 = pneg %p41
        %p303 = pneg %p65
        %p304 = pneg %p62
        %p305 = pneg %p86
        %p306 = pneg %p83
        %p307 = pneg %p107
        %p308 = pneg %p104
        %p309 = pneg %p128
        %p310 = pneg %p125
        %p311 = pneg %p149
        %p312 = pneg %p146
        %p313 = pneg %p170
        %p314 = pneg %p167
        %p315 = pneg %p191
        %p316 = pneg %p188
        %p317 = pneg %p212
        %p318 = pneg %p209
        %p319 = pneg %p238
        %p320 = pneg %p235
        %s321 = sand.u32 %s225, 1
        %s322 = scalar_lea.sflag [#allocation7], %s321
        %s323 = sand.u32 %s225, 1
        %s324 = scalar_lea.vmem [#allocation6], %s323
        %p325 = scmp.lt.s32.totalorder %s23, 1
        %s326 = scalar_select %p325, %s23, 1
        %s327 = smul.addr %s326, 41
        %s328 = smul.addr %s327, 8
        %s329 = scalar_lea.vmem %s0, %s328
        %v330 = vld [vmem:[%s329] sm:$0xff]
        %v331 = vld [vmem:[%s329 + $0x8] sm:$0xff]
        %v332 = vld [vmem:[%s329 + $0x10] sm:$0xff]
        %v333 = vld [vmem:[%s329 + $0x18] sm:$0xff]
        %v334 = vld [vmem:[%s329 + $0x20] sm:$0xff]
        %v335 = vld [vmem:[%s329 + $0x28] sm:$0xff]
        %v336 = vld [vmem:[%s329 + $0x30] sm:$0xff]
        %v337 = vld [vmem:[%s329 + $0x38] sm:$0xff]
        %v338 = vld [vmem:[%s329 + $0x40] sm:$0xff]
        %v339 = vld [vmem:[%s329 + $0x48] sm:$0xff]
        %v340 = vld [vmem:[%s329 + $0x50] sm:$0xff]
        %v341 = vld [vmem:[%s329 + $0x58] sm:$0xff]
        %v342 = vld [vmem:[%s329 + $0x60] sm:$0xff]
        %v343 = vld [vmem:[%s329 + $0x68] sm:$0xff]
        %v344 = vld [vmem:[%s329 + $0x70] sm:$0xff]
        %v345 = vld [vmem:[%s329 + $0x78] sm:$0xff]
        %v346 = vld [vmem:[%s329 + $0x80] sm:$0xff]
        %v347 = vld [vmem:[%s329 + $0x88] sm:$0xff]
        %v348 = vld [vmem:[%s329 + $0x90] sm:$0xff]
        %v349 = vld [vmem:[%s329 + $0x98] sm:$0xff]
        %v350 = vld [vmem:[%s329 + $0xa0] sm:$0xff]
        %v351 = vld [vmem:[%s329 + $0xa8] sm:$0xff]
        %v352 = vld [vmem:[%s329 + $0xb0] sm:$0xff]
        %v353 = vld [vmem:[%s329 + $0xb8] sm:$0xff]
        %v354 = vld [vmem:[%s329 + $0xc0] sm:$0xff]
        %v355 = vld [vmem:[%s329 + $0xc8] sm:$0xff]
        %v356 = vld [vmem:[%s329 + $0xd0] sm:$0xff]
        %v357 = vld [vmem:[%s329 + $0xd8] sm:$0xff]
        %v358 = vld [vmem:[%s329 + $0xe0] sm:$0xff]
        %v359 = vld [vmem:[%s329 + $0xe8] sm:$0xff]
        %v360 = vld [vmem:[%s329 + $0xf0] sm:$0xff]
        %v361 = vld [vmem:[%s329 + $0xf8] sm:$0xff]
        %v362 = vld [vmem:[%s329 + $0x100] sm:$0xff]
        %v363 = vld [vmem:[%s329 + $0x108] sm:$0xff]
        %v364 = vld [vmem:[%s329 + $0x110] sm:$0xff]
        %v365 = vld [vmem:[%s329 + $0x118] sm:$0xff]
        %v366 = vld [vmem:[%s329 + $0x120] sm:$0xff]
        %v367 = vld [vmem:[%s329 + $0x128] sm:$0xff]
        %v368 = vld [vmem:[%s329 + $0x130] sm:$0xff]
        %v369 = vld [vmem:[%s329 + $0x138] sm:$0xff]
        %v370 = vld [vmem:[%s329 + $0x140] sm:$0xf]
        %v371 = vld [vmem:[%s1] sm:$0xff]
        %v372 = vld [vmem:[%s1 + $0x8] sm:$0xff]
        %v373 = vld [vmem:[%s1 + $0x10] sm:$0xff]
        %v374 = vld [vmem:[%s1 + $0x18] sm:$0xff]
        %v375 = vld [vmem:[%s1 + $0x20] sm:$0xff]
        %v376 = vld [vmem:[%s1 + $0x28] sm:$0xff]
        %v377 = vld [vmem:[%s1 + $0x30] sm:$0xff]
        %v378 = vld [vmem:[%s1 + $0x38] sm:$0xff]
        %v379 = vld [vmem:[%s1 + $0x40] sm:$0xff]
        %v380 = vld [vmem:[%s1 + $0x48] sm:$0x7]
        %v381 = vld [vmem:[%s2] sm:$0x1]
        %v383 = vlaneseq
        %v384 = vshrl.u32 %v383, 7
        %v385 = vsub.s32 0, %v384
        %v386 = vrot.slane %v381, %v385
        %vm388 = vcmask 613376
        %v390 = vsel %vm388, %v330, 0
        %v393 = vsel %vm388, %v331, 0
        %v396 = vsel %vm388, %v332, 0
        %v399 = vsel %vm388, %v333, 0
        %v402 = vsel %vm388, %v334, 0
        %v405 = vsel %vm388, %v335, 0
        %v408 = vsel %vm388, %v336, 0
        %v411 = vsel %vm388, %v337, 0
        %v414 = vsel %vm388, %v338, 0
        %v417 = vsel %vm388, %v339, 0
        %v420 = vsel %vm388, %v340, 0
        %v423 = vsel %vm388, %v341, 0
        %v426 = vsel %vm388, %v342, 0
        %v429 = vsel %vm388, %v343, 0
        %v432 = vsel %vm388, %v344, 0
        %v435 = vsel %vm388, %v345, 0
        %v438 = vsel %vm388, %v346, 0
        %v441 = vsel %vm388, %v347, 0
        %v444 = vsel %vm388, %v348, 0
        %v447 = vsel %vm388, %v349, 0
        %v450 = vsel %vm388, %v350, 0
        %v453 = vsel %vm388, %v351, 0
        %v456 = vsel %vm388, %v352, 0
        %v459 = vsel %vm388, %v353, 0
        %v462 = vsel %vm388, %v354, 0
        %v465 = vsel %vm388, %v355, 0
        %v468 = vsel %vm388, %v356, 0
        %v471 = vsel %vm388, %v357, 0
        %v474 = vsel %vm388, %v358, 0
        %v477 = vsel %vm388, %v359, 0
        %v480 = vsel %vm388, %v360, 0
        %v483 = vsel %vm388, %v361, 0
        %v486 = vsel %vm388, %v362, 0
        %v489 = vsel %vm388, %v363, 0
        %v492 = vsel %vm388, %v364, 0
        %v495 = vsel %vm388, %v365, 0
        %v498 = vsel %vm388, %v366, 0
        %v501 = vsel %vm388, %v367, 0
        %v504 = vsel %vm388, %v368, 0
        %v507 = vsel %vm388, %v369, 0
        %v510 = vsel %vm388, %v370, 0
        %vm512 = vcmask 1042432
        %v514 = vsel %vm512, %v380, 0
        %516 = vmatprep.subr.mxu0 0.0
        %517 = vmatpush1.msra.mxu0 %v371
        %518 = vmatprep.subr.mxu0 0.0
        %519 = vmatpush1.msra.mxu0 %v372
        %520 = vmatprep.subr.mxu0 0.0
        %521 = vmatpush1.msra.mxu0 %v373
        %522 = vmatprep.subr.mxu0 0.0
        %523 = vmatpush1.msra.mxu0 %v374
        %524 = vmatprep.subr.mxu0 0.0
        %525 = vmatpush1.msra.mxu0 %v375
        %526 = vmatprep.subr.mxu0 0.0
        %527 = vmatpush1.msra.mxu0 %v376
        %528 = vmatprep.subr.mxu0 0.0
        %529 = vmatpush1.msra.mxu0 %v377
        %530 = vmatprep.subr.mxu0 0.0
        %531 = vmatpush1.msra.mxu0 %v378
        %532 = vmatprep.subr.mxu0 0.0
        %533 = vmatpush1.msra.mxu0 %v379
        %534 = vmatprep.subr.mxu0 0.0
        %535 = vmatpush1.msra.mxu0 %v514
        %536 = vmatprep.subr.mxu0 0.0
        %537 = vmatpush1.msra.mxu0 0.0
        %538 = vmatprep.subr.mxu0 0.0
        %539 = vmatpush1.msra.mxu0 0.0
        %540 = vmatprep.subr.mxu0 0.0
        %541 = vmatpush1.msra.mxu0 0.0
        %542 = vmatprep.subr.mxu0 0.0
        %543 = vmatpush1.msra.mxu0 0.0
        %544 = vmatprep.subr.mxu0 0.0
        %545 = vmatpush1.msra.mxu0 0.0
        %546 = vmatprep.subr.mxu0 0.0
        %547 = vmatpush1.msra.mxu0 0.0
        %548 = vmatprep.subr.mxu0 0.0
        %549 = vmatpush1.msra.mxu0 0.0
        %550 = vmatprep.subr.mxu0 0.0
        %551 = vmatpush1.msra.mxu0 0.0
        %552 = vmatprep.subr.mxu0 0.0
        %553 = vmatpush1.msra.mxu0 0.0
        %554 = vmatprep.subr.mxu0 0.0
        %555 = vmatpush1.msra.mxu0 0.0
        %556 = vmatprep.subr.mxu0 0.0
        %557 = vmatpush1.msra.mxu0 0.0
        %558 = vmatprep.subr.mxu0 0.0
        %559 = vmatpush1.msra.mxu0 0.0
        %560 = vmatprep.subr.mxu0 0.0
        %561 = vmatpush1.msra.mxu0 0.0
        %562 = vmatprep.subr.mxu0 0.0
        %563 = vmatpush1.msra.mxu0 0.0
        %564 = vmatprep.subr.mxu0 0.0
        %565 = vmatpush1.msra.mxu0 0.0
        %566 = vmatprep.subr.mxu0 0.0
        %567 = vmatpush1.msra.mxu0 0.0
        %568 = vmatprep.subr.mxu0 0.0
        %569 = vmatpush1.msra.mxu0 0.0
        %570 = vmatprep.subr.mxu0 0.0
        %571 = vmatpush1.msra.mxu0 0.0
        %572 = vmatprep.subr.mxu0 0.0
        %573 = vmatpush1.msra.mxu0 0.0
        %574 = vmatprep.subr.mxu0 0.0
        %575 = vmatpush1.msra.mxu0 0.0
        %576 = vmatprep.subr.mxu0 0.0
        %577 = vmatpush1.msra.mxu0 0.0
        %578 = vmatprep.subr.mxu0 0.0
        %579 = vmatpush1.msra.mxu0 0.0
        %580 = vmatprep.mubr.f32.mxu0 0.0
        %581 = vmatmul.mubr.f32.gmra.mrb[0].mxu0 %v390
        %v582 = vpop.f32.mrb[0].mxu0
        %v583 = vadd.f32 %v386, %v582
        %v584 = vpop.f32.mrb[0].mxu0
        %585 = vmatprep.mubr.f32.mxu0 0.0
        %586 = vmatmul.mubr.f32.gmra.mrb[0].mxu0 %v393
        %v587 = vpop.f32.mrb[0].mxu0
        %v588 = vadd.f32 %v386, %v587
        %v589 = vpop.f32.mrb[0].mxu0
        %590 = vmatprep.mubr.f32.mxu0 0.0
        %591 = vmatmul.mubr.f32.gmra.mrb[0].mxu0 %v396
        %v592 = vpop.f32.mrb[0].mxu0
        %v593 = vadd.f32 %v386, %v592
        %v594 = vpop.f32.mrb[0].mxu0
        %595 = vmatprep.mubr.f32.mxu0 0.0
        %596 = vmatmul.mubr.f32.gmra.mrb[0].mxu0 %v399
        %v597 = vpop.f32.mrb[0].mxu0
        %v598 = vadd.f32 %v386, %v597
        %v599 = vpop.f32.mrb[0].mxu0
        %600 = vmatprep.mubr.f32.mxu0 0.0
        %601 = vmatmul.mubr.f32.gmra.mrb[0].mxu0 %v402
        %v602 = vpop.f32.mrb[0].mxu0
        %v603 = vadd.f32 %v386, %v602
        %v604 = vpop.f32.mrb[0].mxu0
        %605 = vmatprep.mubr.f32.mxu0 0.0
        %606 = vmatmul.mubr.f32.gmra.mrb[0].mxu0 %v405
        %v607 = vpop.f32.mrb[0].mxu0
        %v608 = vadd.f32 %v386, %v607
        %v609 = vpop.f32.mrb[0].mxu0
        %610 = vmatprep.mubr.f32.mxu0 0.0
        %611 = vmatmul.mubr.f32.gmra.mrb[0].mxu0 %v408
        %v612 = vpop.f32.mrb[0].mxu0
        %v613 = vadd.f32 %v386, %v612
        %v614 = vpop.f32.mrb[0].mxu0
        %615 = vmatprep.mubr.f32.mxu0 0.0
        %616 = vmatmul.mubr.f32.gmra.mrb[0].mxu0 %v411
        %v617 = vpop.f32.mrb[0].mxu0
        %v618 = vadd.f32 %v386, %v617
        %v619 = vpop.f32.mrb[0].mxu0
        %620 = vmatprep.mubr.f32.mxu0 0.0
        %621 = vmatmul.mubr.f32.gmra.mrb[0].mxu0 %v414
        %v622 = vpop.f32.mrb[0].mxu0
        %v623 = vadd.f32 %v386, %v622
        %v624 = vpop.f32.mrb[0].mxu0
        %625 = vmatprep.mubr.f32.mxu0 0.0
        %626 = vmatmul.mubr.f32.gmra.mrb[0].mxu0 %v417
        %v627 = vpop.f32.mrb[0].mxu0
        %v628 = vadd.f32 %v386, %v627
        %v629 = vpop.f32.mrb[0].mxu0
        %630 = vmatprep.mubr.f32.mxu0 0.0
        %631 = vmatmul.mubr.f32.gmra.mrb[0].mxu0 %v420
        %v632 = vpop.f32.mrb[0].mxu0
        %v633 = vadd.f32 %v386, %v632
        %v634 = vpop.f32.mrb[0].mxu0
        %635 = vmatprep.mubr.f32.mxu0 0.0
        %636 = vmatmul.mubr.f32.gmra.mrb[0].mxu0 %v423
        %v637 = vpop.f32.mrb[0].mxu0
        %v638 = vadd.f32 %v386, %v637
        %v639 = vpop.f32.mrb[0].mxu0
        %640 = vmatprep.mubr.f32.mxu0 0.0
        %641 = vmatmul.mubr.f32.gmra.mrb[0].mxu0 %v426
        %v642 = vpop.f32.mrb[0].mxu0
        %v643 = vadd.f32 %v386, %v642
        %v644 = vpop.f32.mrb[0].mxu0
        %645 = vmatprep.mubr.f32.mxu0 0.0
        %646 = vmatmul.mubr.f32.gmra.mrb[0].mxu0 %v429
        %v647 = vpop.f32.mrb[0].mxu0
        %v648 = vadd.f32 %v386, %v647
        %v649 = vpop.f32.mrb[0].mxu0
        %650 = vmatprep.mubr.f32.mxu0 0.0
        %651 = vmatmul.mubr.f32.gmra.mrb[0].mxu0 %v432
        %v652 = vpop.f32.mrb[0].mxu0
        %v653 = vadd.f32 %v386, %v652
        %v654 = vpop.f32.mrb[0].mxu0
        %655 = vmatprep.mubr.f32.mxu0 0.0
        %656 = vmatmul.mubr.f32.gmra.mrb[0].mxu0 %v435
        %v657 = vpop.f32.mrb[0].mxu0
        %v658 = vadd.f32 %v386, %v657
        %v659 = vpop.f32.mrb[0].mxu0
        %660 = vmatprep.mubr.f32.mxu0 0.0
        %661 = vmatmul.mubr.f32.gmra.mrb[0].mxu0 %v438
        %v662 = vpop.f32.mrb[0].mxu0
        %v663 = vadd.f32 %v386, %v662
        %v664 = vpop.f32.mrb[0].mxu0
        %665 = vmatprep.mubr.f32.mxu0 0.0
        %666 = vmatmul.mubr.f32.gmra.mrb[0].mxu0 %v441
        %v667 = vpop.f32.mrb[0].mxu0
        %v668 = vadd.f32 %v386, %v667
        %v669 = vpop.f32.mrb[0].mxu0
        %670 = vmatprep.mubr.f32.mxu0 0.0
        %671 = vmatmul.mubr.f32.gmra.mrb[0].mxu0 %v444
        %v672 = vpop.f32.mrb[0].mxu0
        %v673 = vadd.f32 %v386, %v672
        %v674 = vpop.f32.mrb[0].mxu0
        %675 = vmatprep.mubr.f32.mxu0 0.0
        %676 = vmatmul.mubr.f32.gmra.mrb[0].mxu0 %v447
        %v677 = vpop.f32.mrb[0].mxu0
        %v678 = vadd.f32 %v386, %v677
        %v679 = vpop.f32.mrb[0].mxu0
        %680 = vmatprep.mubr.f32.mxu0 0.0
        %681 = vmatmul.mubr.f32.gmra.mrb[0].mxu0 %v450
        %v682 = vpop.f32.mrb[0].mxu0
        %v683 = vadd.f32 %v386, %v682
        %v684 = vpop.f32.mrb[0].mxu0
        %685 = vmatprep.mubr.f32.mxu0 0.0
        %686 = vmatmul.mubr.f32.gmra.mrb[0].mxu0 %v453
        %v687 = vpop.f32.mrb[0].mxu0
        %v688 = vadd.f32 %v386, %v687
        %v689 = vpop.f32.mrb[0].mxu0
        %690 = vmatprep.mubr.f32.mxu0 0.0
        %691 = vmatmul.mubr.f32.gmra.mrb[0].mxu0 %v456
        %v692 = vpop.f32.mrb[0].mxu0
        %v693 = vadd.f32 %v386, %v692
        %v694 = vpop.f32.mrb[0].mxu0
        %695 = vmatprep.mubr.f32.mxu0 0.0
        %696 = vmatmul.mubr.f32.gmra.mrb[0].mxu0 %v459
        %v697 = vpop.f32.mrb[0].mxu0
        %v698 = vadd.f32 %v386, %v697
        %v699 = vpop.f32.mrb[0].mxu0
        %700 = vmatprep.mubr.f32.mxu0 0.0
        %701 = vmatmul.mubr.f32.gmra.mrb[0].mxu0 %v462
        %v702 = vpop.f32.mrb[0].mxu0
        %v703 = vadd.f32 %v386, %v702
        %v704 = vpop.f32.mrb[0].mxu0
        %705 = vmatprep.mubr.f32.mxu0 0.0
        %706 = vmatmul.mubr.f32.gmra.mrb[0].mxu0 %v465
        %v707 = vpop.f32.mrb[0].mxu0
        %v708 = vadd.f32 %v386, %v707
        %v709 = vpop.f32.mrb[0].mxu0
        %710 = vmatprep.mubr.f32.mxu0 0.0
        %711 = vmatmul.mubr.f32.gmra.mrb[0].mxu0 %v468
        %v712 = vpop.f32.mrb[0].mxu0
        %v713 = vadd.f32 %v386, %v712
        %v714 = vpop.f32.mrb[0].mxu0
        %715 = vmatprep.mubr.f32.mxu0 0.0
        %716 = vmatmul.mubr.f32.gmra.mrb[0].mxu0 %v471
        %v717 = vpop.f32.mrb[0].mxu0
        %v718 = vadd.f32 %v386, %v717
        %v719 = vpop.f32.mrb[0].mxu0
        %720 = vmatprep.mubr.f32.mxu0 0.0
        %721 = vmatmul.mubr.f32.gmra.mrb[0].mxu0 %v474
        %v722 = vpop.f32.mrb[0].mxu0
        %v723 = vadd.f32 %v386, %v722
        %v724 = vpop.f32.mrb[0].mxu0
        %725 = vmatprep.mubr.f32.mxu0 0.0
        %726 = vmatmul.mubr.f32.gmra.mrb[0].mxu0 %v477
        %v727 = vpop.f32.mrb[0].mxu0
        %v728 = vadd.f32 %v386, %v727
        %v729 = vpop.f32.mrb[0].mxu0
        %730 = vmatprep.mubr.f32.mxu0 0.0
        %731 = vmatmul.mubr.f32.gmra.mrb[0].mxu0 %v480
        %v732 = vpop.f32.mrb[0].mxu0
        %v733 = vadd.f32 %v386, %v732
        %v734 = vpop.f32.mrb[0].mxu0
        %735 = vmatprep.mubr.f32.mxu0 0.0
        %736 = vmatmul.mubr.f32.gmra.mrb[0].mxu0 %v483
        %v737 = vpop.f32.mrb[0].mxu0
        %v738 = vadd.f32 %v386, %v737
        %v739 = vpop.f32.mrb[0].mxu0
        %740 = vmatprep.mubr.f32.mxu0 0.0
        %741 = vmatmul.mubr.f32.gmra.mrb[0].mxu0 %v486
        %v742 = vpop.f32.mrb[0].mxu0
        %v743 = vadd.f32 %v386, %v742
        %v744 = vpop.f32.mrb[0].mxu0
        %745 = vmatprep.mubr.f32.mxu0 0.0
        %746 = vmatmul.mubr.f32.gmra.mrb[0].mxu0 %v489
        %v747 = vpop.f32.mrb[0].mxu0
        %v748 = vadd.f32 %v386, %v747
        %v749 = vpop.f32.mrb[0].mxu0
        %750 = vmatprep.mubr.f32.mxu0 0.0
        %751 = vmatmul.mubr.f32.gmra.mrb[0].mxu0 %v492
        %v752 = vpop.f32.mrb[0].mxu0
        %v753 = vadd.f32 %v386, %v752
        %v754 = vpop.f32.mrb[0].mxu0
        %755 = vmatprep.mubr.f32.mxu0 0.0
        %756 = vmatmul.mubr.f32.gmra.mrb[0].mxu0 %v495
        %v757 = vpop.f32.mrb[0].mxu0
        %v758 = vadd.f32 %v386, %v757
        %v759 = vpop.f32.mrb[0].mxu0
        %760 = vmatprep.mubr.f32.mxu0 0.0
        %761 = vmatmul.mubr.f32.gmra.mrb[0].mxu0 %v498
        %v762 = vpop.f32.mrb[0].mxu0
        %v763 = vadd.f32 %v386, %v762
        %v764 = vpop.f32.mrb[0].mxu0
        %765 = vmatprep.mubr.f32.mxu0 0.0
        %766 = vmatmul.mubr.f32.gmra.mrb[0].mxu0 %v501
        %v767 = vpop.f32.mrb[0].mxu0
        %v768 = vadd.f32 %v386, %v767
        %v769 = vpop.f32.mrb[0].mxu0
        %770 = vmatprep.mubr.f32.mxu0 0.0
        %771 = vmatmul.mubr.f32.gmra.mrb[0].mxu0 %v504
        %v772 = vpop.f32.mrb[0].mxu0
        %v773 = vadd.f32 %v386, %v772
        %v774 = vpop.f32.mrb[0].mxu0
        %775 = vmatprep.mubr.f32.mxu0 0.0
        %776 = vmatmul.mubr.f32.gmra.mrb[0].mxu0 %v507
        %v777 = vpop.f32.mrb[0].mxu0
        %v778 = vadd.f32 %v386, %v777
        %v779 = vpop.f32.mrb[0].mxu0
        %780 = vmatprep.mubr.f32.mxu0 0.0
        %781 = vmatmul.mubr.f32.gmra.mrb[0].mxu0 %v510
        %v782 = vpop.f32.mrb[0].mxu0
        %v783 = vadd.f32 %v386, %v782
        %v784 = vpop.f32.mrb[0].mxu0
        %785 = vdwg.mxu0
        %v786 = vmax.f32 %v583, 0.0
        %v787 = vmax.f32 %v588, 0.0
        %v788 = vmax.f32 %v593, 0.0
        %v789 = vmax.f32 %v598, 0.0
        %v790 = vmax.f32 %v603, 0.0
        %v791 = vmax.f32 %v608, 0.0
        %v792 = vmax.f32 %v613, 0.0
        %v793 = vmax.f32 %v618, 0.0
        %v794 = vmax.f32 %v623, 0.0
        %v795 = vmax.f32 %v628, 0.0
        %v796 = vmax.f32 %v633, 0.0
        %v797 = vmax.f32 %v638, 0.0
        %v798 = vmax.f32 %v643, 0.0
        %v799 = vmax.f32 %v648, 0.0
        %v800 = vmax.f32 %v653, 0.0
        %v801 = vmax.f32 %v658, 0.0
        %v802 = vmax.f32 %v663, 0.0
        %v803 = vmax.f32 %v668, 0.0
        %v804 = vmax.f32 %v673, 0.0
        %v805 = vmax.f32 %v678, 0.0
        %v806 = vmax.f32 %v683, 0.0
        %v807 = vmax.f32 %v688, 0.0
        %v808 = vmax.f32 %v693, 0.0
        %v809 = vmax.f32 %v698, 0.0
        %v810 = vmax.f32 %v703, 0.0
        %v811 = vmax.f32 %v708, 0.0
        %v812 = vmax.f32 %v713, 0.0
        %v813 = vmax.f32 %v718, 0.0
        %v814 = vmax.f32 %v723, 0.0
        %v815 = vmax.f32 %v728, 0.0
        %v816 = vmax.f32 %v733, 0.0
        %v817 = vmax.f32 %v738, 0.0
        %v818 = vmax.f32 %v743, 0.0
        %v819 = vmax.f32 %v748, 0.0
        %v820 = vmax.f32 %v753, 0.0
        %v821 = vmax.f32 %v758, 0.0
        %v822 = vmax.f32 %v763, 0.0
        %v823 = vmax.f32 %v768, 0.0
        %v824 = vmax.f32 %v773, 0.0
        %v825 = vmax.f32 %v778, 0.0
        %v826 = vmax.f32 %v783, 0.0
        %vm827 = vcmask 130048
        %828 = vst.msk [vmem:[#allocation2] sm:$0xff] %vm827, %v786
        %829 = vst.msk [vmem:[#allocation2 + $0x8] sm:$0xff] %vm827, %v787
        %830 = vst.msk [vmem:[#allocation2 + $0x10] sm:$0xff] %vm827, %v788
        %831 = vst.msk [vmem:[#allocation2 + $0x18] sm:$0xff] %vm827, %v789
        %832 = vst.msk [vmem:[#allocation2 + $0x20] sm:$0xff] %vm827, %v790
        %833 = vst.msk [vmem:[#allocation2 + $0x28] sm:$0xff] %vm827, %v791
        %834 = vst.msk [vmem:[#allocation2 + $0x30] sm:$0xff] %vm827, %v792
        %835 = vst.msk [vmem:[#allocation2 + $0x38] sm:$0xff] %vm827, %v793
        %836 = vst.msk [vmem:[#allocation2 + $0x40] sm:$0xff] %vm827, %v794
        %837 = vst.msk [vmem:[#allocation2 + $0x48] sm:$0xff] %vm827, %v795
        %838 = vst.msk [vmem:[#allocation2 + $0x50] sm:$0xff] %vm827, %v796
        %839 = vst.msk [vmem:[#allocation2 + $0x58] sm:$0xff] %vm827, %v797
        %840 = vst.msk [vmem:[#allocation2 + $0x60] sm:$0xff] %vm827, %v798
        %841 = vst.msk [vmem:[#allocation2 + $0x68] sm:$0xff] %vm827, %v799
        %842 = vst.msk [vmem:[#allocation2 + $0x70] sm:$0xff] %vm827, %v800
        %843 = vst.msk [vmem:[#allocation2 + $0x78] sm:$0xff] %vm827, %v801
        %844 = vst.msk [vmem:[#allocation2 + $0x80] sm:$0xff] %vm827, %v802
        %845 = vst.msk [vmem:[#allocation2 + $0x88] sm:$0xff] %vm827, %v803
        %846 = vst.msk [vmem:[#allocation2 + $0x90] sm:$0xff] %vm827, %v804
        %847 = vst.msk [vmem:[#allocation2 + $0x98] sm:$0xff] %vm827, %v805
        %848 = vst.msk [vmem:[#allocation2 + $0xa0] sm:$0xff] %vm827, %v806
        %849 = vst.msk [vmem:[#allocation2 + $0xa8] sm:$0xff] %vm827, %v807
        %850 = vst.msk [vmem:[#allocation2 + $0xb0] sm:$0xff] %vm827, %v808
        %851 = vst.msk [vmem:[#allocation2 + $0xb8] sm:$0xff] %vm827, %v809
        %852 = vst.msk [vmem:[#allocation2 + $0xc0] sm:$0xff] %vm827, %v810
        %853 = vst.msk [vmem:[#allocation2 + $0xc8] sm:$0xff] %vm827, %v811
        %854 = vst.msk [vmem:[#allocation2 + $0xd0] sm:$0xff] %vm827, %v812
        %855 = vst.msk [vmem:[#allocation2 + $0xd8] sm:$0xff] %vm827, %v813
        %856 = vst.msk [vmem:[#allocation2 + $0xe0] sm:$0xff] %vm827, %v814
        %857 = vst.msk [vmem:[#allocation2 + $0xe8] sm:$0xff] %vm827, %v815
        %858 = vst.msk [vmem:[#allocation2 + $0xf0] sm:$0xff] %vm827, %v816
        %859 = vst.msk [vmem:[#allocation2 + $0xf8] sm:$0xff] %vm827, %v817
        %860 = vst.msk [vmem:[#allocation2 + $0x100] sm:$0xff] %vm827, %v818
        %861 = vst.msk [vmem:[#allocation2 + $0x108] sm:$0xff] %vm827, %v819
        %862 = vst.msk [vmem:[#allocation2 + $0x110] sm:$0xff] %vm827, %v820
        %863 = vst.msk [vmem:[#allocation2 + $0x118] sm:$0xff] %vm827, %v821
        %864 = vst.msk [vmem:[#allocation2 + $0x120] sm:$0xff] %vm827, %v822
        %865 = vst.msk [vmem:[#allocation2 + $0x128] sm:$0xff] %vm827, %v823
        %866 = vst.msk [vmem:[#allocation2 + $0x130] sm:$0xff] %vm827, %v824
        %867 = vst.msk [vmem:[#allocation2 + $0x138] sm:$0xff] %vm827, %v825
        %vm868 = vcmask 125952
        %869 = vst.msk [vmem:[#allocation2 + $0x140] sm:$0xf] %vm868, %v826
        %v870 = vld [vmem:[#allocation2] ss:$2 sm:$0x7f]
        %s871 = scalar_lea.vmem [#allocation2], 1
        %v872 = vld [vmem:[%s871] ss:$2 sm:$0x7f]
        %s873 = scalar_lea.vmem [#allocation2], 2
        %v874 = vld [vmem:[%s873] ss:$2 sm:$0x7f]
        %s875 = scalar_lea.vmem [#allocation2], 3
        %v876 = vld [vmem:[%s875] ss:$2 sm:$0x7f]
        %s877 = scalar_lea.vmem [#allocation2], 4
        %v878 = vld [vmem:[%s877] ss:$2 sm:$0x7f]
        %s879 = scalar_lea.vmem [#allocation2], 18
        %v880 = vld [vmem:[%s879] ss:$2 sm:$0x7f]
        %s881 = scalar_lea.vmem [#allocation2], 19
        %v882 = vld [vmem:[%s881] ss:$2 sm:$0x7f]
        %s883 = scalar_lea.vmem [#allocation2], 20
        %v884 = vld [vmem:[%s883] ss:$2 sm:$0x7f]
        %s885 = scalar_lea.vmem [#allocation2], 21
        %v886 = vld [vmem:[%s885] ss:$2 sm:$0x7f]
        %s887 = scalar_lea.vmem [#allocation2], 22
        %v888 = vld [vmem:[%s887] ss:$2 sm:$0x7f]
        %s889 = scalar_lea.vmem [#allocation2], 36
        %v890 = vld [vmem:[%s889] ss:$2 sm:$0x7f]
        %s891 = scalar_lea.vmem [#allocation2], 37
        %v892 = vld [vmem:[%s891] ss:$2 sm:$0x7f]
        %s893 = scalar_lea.vmem [#allocation2], 38
        %v894 = vld [vmem:[%s893] ss:$2 sm:$0x7f]
        %s895 = scalar_lea.vmem [#allocation2], 39
        %v896 = vld [vmem:[%s895] ss:$2 sm:$0x7f]
        %s897 = scalar_lea.vmem [#allocation2], 40
        %v898 = vld [vmem:[%s897] ss:$2 sm:$0x7f]
        %s899 = scalar_lea.vmem [#allocation2], 54
        %v900 = vld [vmem:[%s899] ss:$2 sm:$0x7f]
        %s901 = scalar_lea.vmem [#allocation2], 55
        %v902 = vld [vmem:[%s901] ss:$2 sm:$0x7f]
        %s903 = scalar_lea.vmem [#allocation2], 56
        %v904 = vld [vmem:[%s903] ss:$2 sm:$0x7f]
        %s905 = scalar_lea.vmem [#allocation2], 57
        %v906 = vld [vmem:[%s905] ss:$2 sm:$0x7f]
        %s907 = scalar_lea.vmem [#allocation2], 58
        %v908 = vld [vmem:[%s907] ss:$2 sm:$0x7f]
        %s909 = scalar_lea.vmem [#allocation2], 72
        %v910 = vld [vmem:[%s909] ss:$2 sm:$0x7f]
        %s911 = scalar_lea.vmem [#allocation2], 73
        %v912 = vld [vmem:[%s911] ss:$2 sm:$0x7f]
        %s913 = scalar_lea.vmem [#allocation2], 74
        %v914 = vld [vmem:[%s913] ss:$2 sm:$0x7f]
        %s915 = scalar_lea.vmem [#allocation2], 75
        %v916 = vld [vmem:[%s915] ss:$2 sm:$0x7f]
        %s917 = scalar_lea.vmem [#allocation2], 76
        %v918 = vld [vmem:[%s917] ss:$2 sm:$0x7f]
        %920 = vrot.lane.b32.xlu0 %v872, 16
        %v921 = vpop.permute.xlu0 %920
        %924 = vrot.lane.b32.xlu0 %v874, 32
        %v925 = vpop.permute.xlu0 %924
        %928 = vrot.lane.b32.xlu0 %v876, 48
        %v929 = vpop.permute.xlu0 %928
        %932 = vrot.lane.b32.xlu0 %v878, 64
        %v933 = vpop.permute.xlu0 %932
        %936 = vrot.lane.b32.xlu0 %v880, 80
        %v937 = vpop.permute.xlu0 %936
        %940 = vrot.lane.b32.xlu0 %v882, 96
        %v941 = vpop.permute.xlu0 %940
        %944 = vrot.lane.b32.xlu0 %v884, 112
        %v945 = vpop.permute.xlu0 %944
        %948 = vrot.lane.b32.xlu0 %v888, 16
        %v949 = vpop.permute.xlu0 %948
        %952 = vrot.lane.b32.xlu0 %v890, 32
        %v953 = vpop.permute.xlu0 %952
        %956 = vrot.lane.b32.xlu0 %v892, 48
        %v957 = vpop.permute.xlu0 %956
        %960 = vrot.lane.b32.xlu0 %v894, 64
        %v961 = vpop.permute.xlu0 %960
        %964 = vrot.lane.b32.xlu0 %v896, 80
        %v965 = vpop.permute.xlu0 %964
        %968 = vrot.lane.b32.xlu0 %v898, 96
        %v969 = vpop.permute.xlu0 %968
        %972 = vrot.lane.b32.xlu0 %v900, 112
        %v973 = vpop.permute.xlu0 %972
        %v975 = vsel %vm827, %v870, %v921
        %vm976 = vcmask 261120
        %v977 = vsel %vm976, %v975, %v925
        %vm978 = vcmask 392192
        %v979 = vsel %vm978, %v977, %v929
        %vm980 = vcmask 523264
        %v981 = vsel %vm980, %v979, %v933
        %vm982 = vcmask 654336
        %v983 = vsel %vm982, %v981, %v937
        %vm984 = vcmask 785408
        %v985 = vsel %vm984, %v983, %v941
        %vm986 = vcmask 916480
        %v987 = vsel %vm986, %v985, %v945
        %v988 = vsel %vm827, %v886, %v949
        %v989 = vsel %vm976, %v988, %v953
        %v990 = vsel %vm978, %v989, %v957
        %v991 = vsel %vm980, %v990, %v961
        %v992 = vsel %vm982, %v991, %v965
        %v993 = vsel %vm984, %v992, %v969
        %v994 = vsel %vm986, %v993, %v973
        %996 = vrot.lane.b32.xlu0 %v904, 16
        %v997 = vpop.permute.xlu0 %996
        %1000 = vrot.lane.b32.xlu0 %v906, 32
        %v1001 = vpop.permute.xlu0 %1000
        %1004 = vrot.lane.b32.xlu0 %v908, 48
        %v1005 = vpop.permute.xlu0 %1004
        %1008 = vrot.lane.b32.xlu0 %v910, 64
        %v1009 = vpop.permute.xlu0 %1008
        %1012 = vrot.lane.b32.xlu0 %v912, 80
        %v1013 = vpop.permute.xlu0 %1012
        %1016 = vrot.lane.b32.xlu0 %v914, 96
        %v1017 = vpop.permute.xlu0 %1016
        %1020 = vrot.lane.b32.xlu0 %v916, 112
        %v1021 = vpop.permute.xlu0 %1020
        %v1023 = vsel %vm827, %v902, %v997
        %v1024 = vsel %vm976, %v1023, %v1001
        %v1025 = vsel %vm978, %v1024, %v1005
        %v1026 = vsel %vm980, %v1025, %v1009
        %v1027 = vsel %vm982, %v1026, %v1013
        %v1028 = vsel %vm984, %v1027, %v1017
        %v1029 = vsel %vm986, %v1028, %v1021
        %1030 = vst [vmem:[#allocation3] sm:$0x7f] %v987
        %1031 = vst [vmem:[#allocation3 + $0x8] sm:$0x7f] %v994
        %1032 = vst [vmem:[#allocation3 + $0x10] sm:$0x7f] %v1029
        %vm1033 = vcmask 129024
        %1034 = vst.msk [vmem:[#allocation3 + $0x18] sm:$0x7f] %vm1033, %v918
        %v1035 = vld [vmem:[%s889] ss:$2 sm:$0x7f]
        %v1036 = vld [vmem:[%s891] ss:$2 sm:$0x7f]
        %v1037 = vld [vmem:[%s893] ss:$2 sm:$0x7f]
        %v1038 = vld [vmem:[%s895] ss:$2 sm:$0x7f]
        %v1039 = vld [vmem:[%s897] ss:$2 sm:$0x7f]
        %v1040 = vld [vmem:[%s899] ss:$2 sm:$0x7f]
        %v1041 = vld [vmem:[%s901] ss:$2 sm:$0x7f]
        %v1042 = vld [vmem:[%s903] ss:$2 sm:$0x7f]
        %v1043 = vld [vmem:[%s905] ss:$2 sm:$0x7f]
        %v1044 = vld [vmem:[%s907] ss:$2 sm:$0x7f]
        %v1045 = vld [vmem:[%s909] ss:$2 sm:$0x7f]
        %v1046 = vld [vmem:[%s911] ss:$2 sm:$0x7f]
        %v1047 = vld [vmem:[%s913] ss:$2 sm:$0x7f]
        %v1048 = vld [vmem:[%s915] ss:$2 sm:$0x7f]
        %v1049 = vld [vmem:[%s917] ss:$2 sm:$0x7f]
        %s1050 = scalar_lea.vmem [#allocation2], 90
        %v1051 = vld [vmem:[%s1050] ss:$2 sm:$0x7f]
        %s1052 = scalar_lea.vmem [#allocation2], 91
        %v1053 = vld [vmem:[%s1052] ss:$2 sm:$0x7f]
        %s1054 = scalar_lea.vmem [#allocation2], 92
        %v1055 = vld [vmem:[%s1054] ss:$2 sm:$0x7f]
        %s1056 = scalar_lea.vmem [#allocation2], 93
        %v1057 = vld [vmem:[%s1056] ss:$2 sm:$0x7f]
        %s1058 = scalar_lea.vmem [#allocation2], 94
        %v1059 = vld [vmem:[%s1058] ss:$2 sm:$0x7f]
        %s1060 = scalar_lea.vmem [#allocation2], 108
        %v1061 = vld [vmem:[%s1060] ss:$2 sm:$0x7f]
        %s1062 = scalar_lea.vmem [#allocation2], 109
        %v1063 = vld [vmem:[%s1062] ss:$2 sm:$0x7f]
        %s1064 = scalar_lea.vmem [#allocation2], 110
        %v1065 = vld [vmem:[%s1064] ss:$2 sm:$0x7f]
        %s1066 = scalar_lea.vmem [#allocation2], 111
        %v1067 = vld [vmem:[%s1066] ss:$2 sm:$0x7f]
        %s1068 = scalar_lea.vmem [#allocation2], 112
        %v1069 = vld [vmem:[%s1068] ss:$2 sm:$0x7f]
        %1071 = vrot.lane.b32.xlu0 %v1036, 16
        %v1072 = vpop.permute.xlu0 %1071
        %1075 = vrot.lane.b32.xlu0 %v1037, 32
        %v1076 = vpop.permute.xlu0 %1075
        %1079 = vrot.lane.b32.xlu0 %v1038, 48
        %v1080 = vpop.permute.xlu0 %1079
        %1083 = vrot.lane.b32.xlu0 %v1039, 64
        %v1084 = vpop.permute.xlu0 %1083
        %1087 = vrot.lane.b32.xlu0 %v1040, 80
        %v1088 = vpop.permute.xlu0 %1087
        %1091 = vrot.lane.b32.xlu0 %v1041, 96
        %v1092 = vpop.permute.xlu0 %1091
        %1095 = vrot.lane.b32.xlu0 %v1042, 112
        %v1096 = vpop.permute.xlu0 %1095
        %1099 = vrot.lane.b32.xlu0 %v1044, 16
        %v1100 = vpop.permute.xlu0 %1099
        %1103 = vrot.lane.b32.xlu0 %v1045, 32
        %v1104 = vpop.permute.xlu0 %1103
        %1107 = vrot.lane.b32.xlu0 %v1046, 48
        %v1108 = vpop.permute.xlu0 %1107
        %1111 = vrot.lane.b32.xlu0 %v1047, 64
        %v1112 = vpop.permute.xlu0 %1111
        %1115 = vrot.lane.b32.xlu0 %v1048, 80
        %v1116 = vpop.permute.xlu0 %1115
        %1119 = vrot.lane.b32.xlu0 %v1049, 96
        %v1120 = vpop.permute.xlu0 %1119
        %1123 = vrot.lane.b32.xlu0 %v1051, 112
        %v1124 = vpop.permute.xlu0 %1123
        %v1126 = vsel %vm827, %v1035, %v1072
        %v1127 = vsel %vm976, %v1126, %v1076
        %v1128 = vsel %vm978, %v1127, %v1080
        %v1129 = vsel %vm980, %v1128, %v1084
        %v1130 = vsel %vm982, %v1129, %v1088
        %v1131 = vsel %vm984, %v1130, %v1092
        %v1132 = vsel %vm986, %v1131, %v1096
        %v1133 = vsel %vm827, %v1043, %v1100
        %v1134 = vsel %vm976, %v1133, %v1104
        %v1135 = vsel %vm978, %v1134, %v1108
        %v1136 = vsel %vm980, %v1135, %v1112
        %v1137 = vsel %vm982, %v1136, %v1116
        %v1138 = vsel %vm984, %v1137, %v1120
        %v1139 = vsel %vm986, %v1138, %v1124
        %1141 = vrot.lane.b32.xlu0 %v1055, 16
        %v1142 = vpop.permute.xlu0 %1141
        %1145 = vrot.lane.b32.xlu0 %v1057, 32
        %v1146 = vpop.permute.xlu0 %1145
        %1149 = vrot.lane.b32.xlu0 %v1059, 48
        %v1150 = vpop.permute.xlu0 %1149
        %1153 = vrot.lane.b32.xlu0 %v1061, 64
        %v1154 = vpop.permute.xlu0 %1153
        %1157 = vrot.lane.b32.xlu0 %v1063, 80
        %v1158 = vpop.permute.xlu0 %1157
        %1161 = vrot.lane.b32.xlu0 %v1065, 96
        %v1162 = vpop.permute.xlu0 %1161
        %1165 = vrot.lane.b32.xlu0 %v1067, 112
        %v1166 = vpop.permute.xlu0 %1165
        %v1168 = vsel %vm827, %v1053, %v1142
        %v1169 = vsel %vm976, %v1168, %v1146
        %v1170 = vsel %vm978, %v1169, %v1150
        %v1171 = vsel %vm980, %v1170, %v1154
        %v1172 = vsel %vm982, %v1171, %v1158
        %v1173 = vsel %vm984, %v1172, %v1162
        %v1174 = vsel %vm986, %v1173, %v1166
        %v1179 = vrot.slane %v1132, 1
        %v1180 = vrot.slane %v1139, 1
        %v1181 = vrot.slane %v1174, 1
        %v1182 = vrot.slane %v1069, 1
        %1187 = vst [vmem:[#allocation3] sm:$0x80] %v1179
        %1188 = vst [vmem:[#allocation3 + $0x8] sm:$0x80] %v1180
        %1189 = vst [vmem:[#allocation3 + $0x10] sm:$0x80] %v1181
        %vm1190 = vcmask 130055
        %1191 = vst.msk [vmem:[#allocation3 + $0x18] sm:$0x80] %vm1190, %v1182
        %1192 = vst [vmem:[#allocation3 + $0x20] sm:$0x3f] %v1179
        %1193 = vst [vmem:[#allocation3 + $0x28] sm:$0x3f] %v1180
        %1194 = vst [vmem:[#allocation3 + $0x30] sm:$0x3f] %v1181
        %vm1195 = vcmask 128000
        %1196 = vst.msk [vmem:[#allocation3 + $0x38] sm:$0x3f] %vm1195, %v1182
        %v1197 = vld [vmem:[%s909] ss:$2 sm:$0x7f]
        %v1198 = vld [vmem:[%s911] ss:$2 sm:$0x7f]
        %v1199 = vld [vmem:[%s913] ss:$2 sm:$0x7f]
        %v1200 = vld [vmem:[%s915] ss:$2 sm:$0x7f]
        %v1201 = vld [vmem:[%s917] ss:$2 sm:$0x7f]
        %v1202 = vld [vmem:[%s1050] ss:$2 sm:$0x7f]
        %v1203 = vld [vmem:[%s1052] ss:$2 sm:$0x7f]
        %v1204 = vld [vmem:[%s1054] ss:$2 sm:$0x7f]
        %v1205 = vld [vmem:[%s1056] ss:$2 sm:$0x7f]
        %v1206 = vld [vmem:[%s1058] ss:$2 sm:$0x7f]
        %v1207 = vld [vmem:[%s1060] ss:$2 sm:$0x7f]
        %v1208 = vld [vmem:[%s1062] ss:$2 sm:$0x7f]
        %v1209 = vld [vmem:[%s1064] ss:$2 sm:$0x7f]
        %v1210 = vld [vmem:[%s1066] ss:$2 sm:$0x7f]
        %v1211 = vld [vmem:[%s1068] ss:$2 sm:$0x7f]
        %s1212 = scalar_lea.vmem [#allocation2], 126
        %v1213 = vld [vmem:[%s1212] ss:$2 sm:$0x7f]
        %s1214 = scalar_lea.vmem [#allocation2], 127
        %v1215 = vld [vmem:[%s1214] ss:$2 sm:$0x7f]
        %s1216 = scalar_lea.vmem [#allocation2], 128
        %v1217 = vld [vmem:[%s1216] ss:$2 sm:$0x7f]
        %s1218 = scalar_lea.vmem [#allocation2], 129
        %v1219 = vld [vmem:[%s1218] ss:$2 sm:$0x7f]
        %s1220 = scalar_lea.vmem [#allocation2], 130
        %v1221 = vld [vmem:[%s1220] ss:$2 sm:$0x7f]
        %s1222 = scalar_lea.vmem [#allocation2], 144
        %v1223 = vld [vmem:[%s1222] ss:$2 sm:$0x7f]
        %s1224 = scalar_lea.vmem [#allocation2], 145
        %v1225 = vld [vmem:[%s1224] ss:$2 sm:$0x7f]
        %s1226 = scalar_lea.vmem [#allocation2], 146
        %v1227 = vld [vmem:[%s1226] ss:$2 sm:$0x7f]
        %s1228 = scalar_lea.vmem [#allocation2], 147
        %v1229 = vld [vmem:[%s1228] ss:$2 sm:$0x7f]
        %s1230 = scalar_lea.vmem [#allocation2], 148
        %v1231 = vld [vmem:[%s1230] ss:$2 sm:$0x7f]
        %1233 = vrot.lane.b32.xlu0 %v1198, 16
        %v1234 = vpop.permute.xlu0 %1233
        %1237 = vrot.lane.b32.xlu0 %v1199, 32
        %v1238 = vpop.permute.xlu0 %1237
        %1241 = vrot.lane.b32.xlu0 %v1200, 48
        %v1242 = vpop.permute.xlu0 %1241
        %1245 = vrot.lane.b32.xlu0 %v1201, 64
        %v1246 = vpop.permute.xlu0 %1245
        %1249 = vrot.lane.b32.xlu0 %v1202, 80
        %v1250 = vpop.permute.xlu0 %1249
        %1253 = vrot.lane.b32.xlu0 %v1203, 96
        %v1254 = vpop.permute.xlu0 %1253
        %1257 = vrot.lane.b32.xlu0 %v1204, 112
        %v1258 = vpop.permute.xlu0 %1257
        %1261 = vrot.lane.b32.xlu0 %v1206, 16
        %v1262 = vpop.permute.xlu0 %1261
        %1265 = vrot.lane.b32.xlu0 %v1207, 32
        %v1266 = vpop.permute.xlu0 %1265
        %1269 = vrot.lane.b32.xlu0 %v1208, 48
        %v1270 = vpop.permute.xlu0 %1269
        %1273 = vrot.lane.b32.xlu0 %v1209, 64
        %v1274 = vpop.permute.xlu0 %1273
        %1277 = vrot.lane.b32.xlu0 %v1210, 80
        %v1278 = vpop.permute.xlu0 %1277
        %1281 = vrot.lane.b32.xlu0 %v1211, 96
        %v1282 = vpop.permute.xlu0 %1281
        %1285 = vrot.lane.b32.xlu0 %v1213, 112
        %v1286 = vpop.permute.xlu0 %1285
        %v1288 = vsel %vm827, %v1197, %v1234
        %v1289 = vsel %vm976, %v1288, %v1238
        %v1290 = vsel %vm978, %v1289, %v1242
        %v1291 = vsel %vm980, %v1290, %v1246
        %v1292 = vsel %vm982, %v1291, %v1250
        %v1293 = vsel %vm984, %v1292, %v1254
        %v1294 = vsel %vm986, %v1293, %v1258
        %v1295 = vsel %vm827, %v1205, %v1262
        %v1296 = vsel %vm976, %v1295, %v1266
        %v1297 = vsel %vm978, %v1296, %v1270
        %v1298 = vsel %vm980, %v1297, %v1274
        %v1299 = vsel %vm982, %v1298, %v1278
        %v1300 = vsel %vm984, %v1299, %v1282
        %v1301 = vsel %vm986, %v1300, %v1286
        %1303 = vrot.lane.b32.xlu0 %v1217, 16
        %v1304 = vpop.permute.xlu0 %1303
        %1307 = vrot.lane.b32.xlu0 %v1219, 32
        %v1308 = vpop.permute.xlu0 %1307
        %1311 = vrot.lane.b32.xlu0 %v1221, 48
        %v1312 = vpop.permute.xlu0 %1311
        %1315 = vrot.lane.b32.xlu0 %v1223, 64
        %v1316 = vpop.permute.xlu0 %1315
        %1319 = vrot.lane.b32.xlu0 %v1225, 80
        %v1320 = vpop.permute.xlu0 %1319
        %1323 = vrot.lane.b32.xlu0 %v1227, 96
        %v1324 = vpop.permute.xlu0 %1323
        %1327 = vrot.lane.b32.xlu0 %v1229, 112
        %v1328 = vpop.permute.xlu0 %1327
        %v1330 = vsel %vm827, %v1215, %v1304
        %v1331 = vsel %vm976, %v1330, %v1308
        %v1332 = vsel %vm978, %v1331, %v1312
        %v1333 = vsel %vm980, %v1332, %v1316
        %v1334 = vsel %vm982, %v1333, %v1320
        %v1335 = vsel %vm984, %v1334, %v1324
        %v1336 = vsel %vm986, %v1335, %v1328
        %v1341 = vrot.slane %v1294, 2
        %v1342 = vrot.slane %v1301, 2
        %v1343 = vrot.slane %v1336, 2
        %v1344 = vrot.slane %v1231, 2
        %1349 = vst [vmem:[#allocation3 + $0x20] sm:$0xc0] %v1341
        %1350 = vst [vmem:[#allocation3 + $0x28] sm:$0xc0] %v1342
        %1351 = vst [vmem:[#allocation3 + $0x30] sm:$0xc0] %v1343
        %vm1352 = vcmask 130054
        %1353 = vst.msk [vmem:[#allocation3 + $0x38] sm:$0xc0] %vm1352, %v1344
        %1354 = vst [vmem:[#allocation3 + $0x40] sm:$0x1f] %v1341
        %1355 = vst [vmem:[#allocation3 + $0x48] sm:$0x1f] %v1342
        %1356 = vst [vmem:[#allocation3 + $0x50] sm:$0x1f] %v1343
        %vm1357 = vcmask 126976
        %1358 = vst.msk [vmem:[#allocation3 + $0x58] sm:$0x1f] %vm1357, %v1344
        %v1359 = vld [vmem:[%s1060] ss:$2 sm:$0x7f]
        %v1360 = vld [vmem:[%s1062] ss:$2 sm:$0x7f]
        %v1361 = vld [vmem:[%s1064] ss:$2 sm:$0x7f]
        %v1362 = vld [vmem:[%s1066] ss:$2 sm:$0x7f]
        %v1363 = vld [vmem:[%s1068] ss:$2 sm:$0x7f]
        %v1364 = vld [vmem:[%s1212] ss:$2 sm:$0x7f]
        %v1365 = vld [vmem:[%s1214] ss:$2 sm:$0x7f]
        %v1366 = vld [vmem:[%s1216] ss:$2 sm:$0x7f]
        %v1367 = vld [vmem:[%s1218] ss:$2 sm:$0x7f]
        %v1368 = vld [vmem:[%s1220] ss:$2 sm:$0x7f]
        %v1369 = vld [vmem:[%s1222] ss:$2 sm:$0x7f]
        %v1370 = vld [vmem:[%s1224] ss:$2 sm:$0x7f]
        %v1371 = vld [vmem:[%s1226] ss:$2 sm:$0x7f]
        %v1372 = vld [vmem:[%s1228] ss:$2 sm:$0x7f]
        %v1373 = vld [vmem:[%s1230] ss:$2 sm:$0x7f]
        %s1374 = scalar_lea.vmem [#allocation2], 162
        %v1375 = vld [vmem:[%s1374] ss:$2 sm:$0x7f]
        %s1376 = scalar_lea.vmem [#allocation2], 163
        %v1377 = vld [vmem:[%s1376] ss:$2 sm:$0x7f]
        %s1378 = scalar_lea.vmem [#allocation2], 164
        %v1379 = vld [vmem:[%s1378] ss:$2 sm:$0x7f]
        %s1380 = scalar_lea.vmem [#allocation2], 165
        %v1381 = vld [vmem:[%s1380] ss:$2 sm:$0x7f]
        %s1382 = scalar_lea.vmem [#allocation2], 166
        %v1383 = vld [vmem:[%s1382] ss:$2 sm:$0x7f]
        %s1384 = scalar_lea.vmem [#allocation2], 180
        %v1385 = vld [vmem:[%s1384] ss:$2 sm:$0x7f]
        %s1386 = scalar_lea.vmem [#allocation2], 181
        %v1387 = vld [vmem:[%s1386] ss:$2 sm:$0x7f]
        %s1388 = scalar_lea.vmem [#allocation2], 182
        %v1389 = vld [vmem:[%s1388] ss:$2 sm:$0x7f]
        %s1390 = scalar_lea.vmem [#allocation2], 183
        %v1391 = vld [vmem:[%s1390] ss:$2 sm:$0x7f]
        %s1392 = scalar_lea.vmem [#allocation2], 184
        %v1393 = vld [vmem:[%s1392] ss:$2 sm:$0x7f]
        %1395 = vrot.lane.b32.xlu0 %v1360, 16
        %v1396 = vpop.permute.xlu0 %1395
        %1399 = vrot.lane.b32.xlu0 %v1361, 32
        %v1400 = vpop.permute.xlu0 %1399
        %1403 = vrot.lane.b32.xlu0 %v1362, 48
        %v1404 = vpop.permute.xlu0 %1403
        %1407 = vrot.lane.b32.xlu0 %v1363, 64
        %v1408 = vpop.permute.xlu0 %1407
        %1411 = vrot.lane.b32.xlu0 %v1364, 80
        %v1412 = vpop.permute.xlu0 %1411
        %1415 = vrot.lane.b32.xlu0 %v1365, 96
        %v1416 = vpop.permute.xlu0 %1415
        %1419 = vrot.lane.b32.xlu0 %v1366, 112
        %v1420 = vpop.permute.xlu0 %1419
        %1423 = vrot.lane.b32.xlu0 %v1368, 16
        %v1424 = vpop.permute.xlu0 %1423
        %1427 = vrot.lane.b32.xlu0 %v1369, 32
        %v1428 = vpop.permute.xlu0 %1427
        %1431 = vrot.lane.b32.xlu0 %v1370, 48
        %v1432 = vpop.permute.xlu0 %1431
        %1435 = vrot.lane.b32.xlu0 %v1371, 64
        %v1436 = vpop.permute.xlu0 %1435
        %1439 = vrot.lane.b32.xlu0 %v1372, 80
        %v1440 = vpop.permute.xlu0 %1439
        %1443 = vrot.lane.b32.xlu0 %v1373, 96
        %v1444 = vpop.permute.xlu0 %1443
        %1447 = vrot.lane.b32.xlu0 %v1375, 112
        %v1448 = vpop.permute.xlu0 %1447
        %v1450 = vsel %vm827, %v1359, %v1396
        %v1451 = vsel %vm976, %v1450, %v1400
        %v1452 = vsel %vm978, %v1451, %v1404
        %v1453 = vsel %vm980, %v1452, %v1408
        %v1454 = vsel %vm982, %v1453, %v1412
        %v1455 = vsel %vm984, %v1454, %v1416
        %v1456 = vsel %vm986, %v1455, %v1420
        %v1457 = vsel %vm827, %v1367, %v1424
        %v1458 = vsel %vm976, %v1457, %v1428
        %v1459 = vsel %vm978, %v1458, %v1432
        %v1460 = vsel %vm980, %v1459, %v1436
        %v1461 = vsel %vm982, %v1460, %v1440
        %v1462 = vsel %vm984, %v1461, %v1444
        %v1463 = vsel %vm986, %v1462, %v1448
        %1465 = vrot.lane.b32.xlu0 %v1379, 16
        %v1466 = vpop.permute.xlu0 %1465
        %1469 = vrot.lane.b32.xlu0 %v1381, 32
        %v1470 = vpop.permute.xlu0 %1469
        %1473 = vrot.lane.b32.xlu0 %v1383, 48
        %v1474 = vpop.permute.xlu0 %1473
        %1477 = vrot.lane.b32.xlu0 %v1385, 64
        %v1478 = vpop.permute.xlu0 %1477
        %1481 = vrot.lane.b32.xlu0 %v1387, 80
        %v1482 = vpop.permute.xlu0 %1481
        %1485 = vrot.lane.b32.xlu0 %v1389, 96
        %v1486 = vpop.permute.xlu0 %1485
        %1489 = vrot.lane.b32.xlu0 %v1391, 112
        %v1490 = vpop.permute.xlu0 %1489
        %v1492 = vsel %vm827, %v1377, %v1466
        %v1493 = vsel %vm976, %v1492, %v1470
        %v1494 = vsel %vm978, %v1493, %v1474
        %v1495 = vsel %vm980, %v1494, %v1478
        %v1496 = vsel %vm982, %v1495, %v1482
        %v1497 = vsel %vm984, %v1496, %v1486
        %v1498 = vsel %vm986, %v1497, %v1490
        %v1503 = vrot.slane %v1456, 3
        %v1504 = vrot.slane %v1463, 3
        %v1505 = vrot.slane %v1498, 3
        %v1506 = vrot.slane %v1393, 3
        %1511 = vst [vmem:[#allocation3 + $0x40] sm:$0xe0] %v1503
        %1512 = vst [vmem:[#allocation3 + $0x48] sm:$0xe0] %v1504
        %1513 = vst [vmem:[#allocation3 + $0x50] sm:$0xe0] %v1505
        %vm1514 = vcmask 130053
        %1515 = vst.msk [vmem:[#allocation3 + $0x58] sm:$0xe0] %vm1514, %v1506
        %1516 = vst [vmem:[#allocation3 + $0x60] sm:$0xf] %v1503
        %1517 = vst [vmem:[#allocation3 + $0x68] sm:$0xf] %v1504
        %1518 = vst [vmem:[#allocation3 + $0x70] sm:$0xf] %v1505
        %1519 = vst.msk [vmem:[#allocation3 + $0x78] sm:$0xf] %vm868, %v1506
        %v1520 = vld [vmem:[%s1222] ss:$2 sm:$0x7f]
        %v1521 = vld [vmem:[%s1224] ss:$2 sm:$0x7f]
        %v1522 = vld [vmem:[%s1226] ss:$2 sm:$0x7f]
        %v1523 = vld [vmem:[%s1228] ss:$2 sm:$0x7f]
        %v1524 = vld [vmem:[%s1230] ss:$2 sm:$0x7f]
        %v1525 = vld [vmem:[%s1374] ss:$2 sm:$0x7f]
        %v1526 = vld [vmem:[%s1376] ss:$2 sm:$0x7f]
        %v1527 = vld [vmem:[%s1378] ss:$2 sm:$0x7f]
        %v1528 = vld [vmem:[%s1380] ss:$2 sm:$0x7f]
        %v1529 = vld [vmem:[%s1382] ss:$2 sm:$0x7f]
        %v1530 = vld [vmem:[%s1384] ss:$2 sm:$0x7f]
        %v1531 = vld [vmem:[%s1386] ss:$2 sm:$0x7f]
        %v1532 = vld [vmem:[%s1388] ss:$2 sm:$0x7f]
        %v1533 = vld [vmem:[%s1390] ss:$2 sm:$0x7f]
        %v1534 = vld [vmem:[%s1392] ss:$2 sm:$0x7f]
        %s1535 = scalar_lea.vmem [#allocation2], 198
        %v1536 = vld [vmem:[%s1535] ss:$2 sm:$0x7f]
        %s1537 = scalar_lea.vmem [#allocation2], 199
        %v1538 = vld [vmem:[%s1537] ss:$2 sm:$0x7f]
        %s1539 = scalar_lea.vmem [#allocation2], 200
        %v1540 = vld [vmem:[%s1539] ss:$2 sm:$0x7f]
        %s1541 = scalar_lea.vmem [#allocation2], 201
        %v1542 = vld [vmem:[%s1541] ss:$2 sm:$0x7f]
        %s1543 = scalar_lea.vmem [#allocation2], 202
        %v1544 = vld [vmem:[%s1543] ss:$2 sm:$0x7f]
        %s1545 = scalar_lea.vmem [#allocation2], 216
        %v1546 = vld [vmem:[%s1545] ss:$2 sm:$0x7f]
        %s1547 = scalar_lea.vmem [#allocation2], 217
        %v1548 = vld [vmem:[%s1547] ss:$2 sm:$0x7f]
        %s1549 = scalar_lea.vmem [#allocation2], 218
        %v1550 = vld [vmem:[%s1549] ss:$2 sm:$0x7f]
        %s1551 = scalar_lea.vmem [#allocation2], 219
        %v1552 = vld [vmem:[%s1551] ss:$2 sm:$0x7f]
        %s1553 = scalar_lea.vmem [#allocation2], 220
        %v1554 = vld [vmem:[%s1553] ss:$2 sm:$0x7f]
        %1556 = vrot.lane.b32.xlu0 %v1521, 16
        %v1557 = vpop.permute.xlu0 %1556
        %1560 = vrot.lane.b32.xlu0 %v1522, 32
        %v1561 = vpop.permute.xlu0 %1560
        %1564 = vrot.lane.b32.xlu0 %v1523, 48
        %v1565 = vpop.permute.xlu0 %1564
        %1568 = vrot.lane.b32.xlu0 %v1524, 64
        %v1569 = vpop.permute.xlu0 %1568
        %1572 = vrot.lane.b32.xlu0 %v1525, 80
        %v1573 = vpop.permute.xlu0 %1572
        %1576 = vrot.lane.b32.xlu0 %v1526, 96
        %v1577 = vpop.permute.xlu0 %1576
        %1580 = vrot.lane.b32.xlu0 %v1527, 112
        %v1581 = vpop.permute.xlu0 %1580
        %1584 = vrot.lane.b32.xlu0 %v1529, 16
        %v1585 = vpop.permute.xlu0 %1584
        %1588 = vrot.lane.b32.xlu0 %v1530, 32
        %v1589 = vpop.permute.xlu0 %1588
        %1592 = vrot.lane.b32.xlu0 %v1531, 48
        %v1593 = vpop.permute.xlu0 %1592
        %1596 = vrot.lane.b32.xlu0 %v1532, 64
        %v1597 = vpop.permute.xlu0 %1596
        %1600 = vrot.lane.b32.xlu0 %v1533, 80
        %v1601 = vpop.permute.xlu0 %1600
        %1604 = vrot.lane.b32.xlu0 %v1534, 96
        %v1605 = vpop.permute.xlu0 %1604
        %1608 = vrot.lane.b32.xlu0 %v1536, 112
        %v1609 = vpop.permute.xlu0 %1608
        %v1611 = vsel %vm827, %v1520, %v1557
        %v1612 = vsel %vm976, %v1611, %v1561
        %v1613 = vsel %vm978, %v1612, %v1565
        %v1614 = vsel %vm980, %v1613, %v1569
        %v1615 = vsel %vm982, %v1614, %v1573
        %v1616 = vsel %vm984, %v1615, %v1577
        %v1617 = vsel %vm986, %v1616, %v1581
        %v1618 = vsel %vm827, %v1528, %v1585
        %v1619 = vsel %vm976, %v1618, %v1589
        %v1620 = vsel %vm978, %v1619, %v1593
        %v1621 = vsel %vm980, %v1620, %v1597
        %v1622 = vsel %vm982, %v1621, %v1601
        %v1623 = vsel %vm984, %v1622, %v1605
        %v1624 = vsel %vm986, %v1623, %v1609
        %1626 = vrot.lane.b32.xlu0 %v1540, 16
        %v1627 = vpop.permute.xlu0 %1626
        %1630 = vrot.lane.b32.xlu0 %v1542, 32
        %v1631 = vpop.permute.xlu0 %1630
        %1634 = vrot.lane.b32.xlu0 %v1544, 48
        %v1635 = vpop.permute.xlu0 %1634
        %1638 = vrot.lane.b32.xlu0 %v1546, 64
        %v1639 = vpop.permute.xlu0 %1638
        %1642 = vrot.lane.b32.xlu0 %v1548, 80
        %v1643 = vpop.permute.xlu0 %1642
        %1646 = vrot.lane.b32.xlu0 %v1550, 96
        %v1647 = vpop.permute.xlu0 %1646
        %1650 = vrot.lane.b32.xlu0 %v1552, 112
        %v1651 = vpop.permute.xlu0 %1650
        %v1653 = vsel %vm827, %v1538, %v1627
        %v1654 = vsel %vm976, %v1653, %v1631
        %v1655 = vsel %vm978, %v1654, %v1635
        %v1656 = vsel %vm980, %v1655, %v1639
        %v1657 = vsel %vm982, %v1656, %v1643
        %v1658 = vsel %vm984, %v1657, %v1647
        %v1659 = vsel %vm986, %v1658, %v1651
        %v1664 = vrot.slane %v1617, 4
        %v1665 = vrot.slane %v1624, 4
        %v1666 = vrot.slane %v1659, 4
        %v1667 = vrot.slane %v1554, 4
        %1672 = vst [vmem:[#allocation3 + $0x60] sm:$0xf0] %v1664
        %1673 = vst [vmem:[#allocation3 + $0x68] sm:$0xf0] %v1665
        %1674 = vst [vmem:[#allocation3 + $0x70] sm:$0xf0] %v1666
        %vm1675 = vcmask 130052
        %1676 = vst.msk [vmem:[#allocation3 + $0x78] sm:$0xf0] %vm1675, %v1667
        %1677 = vst [vmem:[#allocation3 + $0x80] sm:$0x7] %v1664
        %1678 = vst [vmem:[#allocation3 + $0x88] sm:$0x7] %v1665
        %1679 = vst [vmem:[#allocation3 + $0x90] sm:$0x7] %v1666
        %vm1680 = vcmask 124928
        %1681 = vst.msk [vmem:[#allocation3 + $0x98] sm:$0x7] %vm1680, %v1667
        %v1682 = vld [vmem:[%s1384] ss:$2 sm:$0x7f]
        %v1683 = vld [vmem:[%s1386] ss:$2 sm:$0x7f]
        %v1684 = vld [vmem:[%s1388] ss:$2 sm:$0x7f]
        %v1685 = vld [vmem:[%s1390] ss:$2 sm:$0x7f]
        %v1686 = vld [vmem:[%s1392] ss:$2 sm:$0x7f]
        %v1687 = vld [vmem:[%s1535] ss:$2 sm:$0x7f]
        %v1688 = vld [vmem:[%s1537] ss:$2 sm:$0x7f]
        %v1689 = vld [vmem:[%s1539] ss:$2 sm:$0x7f]
        %v1690 = vld [vmem:[%s1541] ss:$2 sm:$0x7f]
        %v1691 = vld [vmem:[%s1543] ss:$2 sm:$0x7f]
        %v1692 = vld [vmem:[%s1545] ss:$2 sm:$0x7f]
        %v1693 = vld [vmem:[%s1547] ss:$2 sm:$0x7f]
        %v1694 = vld [vmem:[%s1549] ss:$2 sm:$0x7f]
        %v1695 = vld [vmem:[%s1551] ss:$2 sm:$0x7f]
        %v1696 = vld [vmem:[%s1553] ss:$2 sm:$0x7f]
        %s1697 = scalar_lea.vmem [#allocation2], 234
        %v1698 = vld [vmem:[%s1697] ss:$2 sm:$0x7f]
        %s1699 = scalar_lea.vmem [#allocation2], 235
        %v1700 = vld [vmem:[%s1699] ss:$2 sm:$0x7f]
        %s1701 = scalar_lea.vmem [#allocation2], 236
        %v1702 = vld [vmem:[%s1701] ss:$2 sm:$0x7f]
        %s1703 = scalar_lea.vmem [#allocation2], 237
        %v1704 = vld [vmem:[%s1703] ss:$2 sm:$0x7f]
        %s1705 = scalar_lea.vmem [#allocation2], 238
        %v1706 = vld [vmem:[%s1705] ss:$2 sm:$0x7f]
        %s1707 = scalar_lea.vmem [#allocation2], 252
        %v1708 = vld [vmem:[%s1707] ss:$2 sm:$0x7f]
        %s1709 = scalar_lea.vmem [#allocation2], 253
        %v1710 = vld [vmem:[%s1709] ss:$2 sm:$0x7f]
        %s1711 = scalar_lea.vmem [#allocation2], 254
        %v1712 = vld [vmem:[%s1711] ss:$2 sm:$0x7f]
        %s1713 = scalar_lea.vmem [#allocation2], 255
        %v1714 = vld [vmem:[%s1713] ss:$2 sm:$0x7f]
        %s1715 = scalar_lea.vmem [#allocation2], 256
        %v1716 = vld [vmem:[%s1715] ss:$2 sm:$0x7f]
        %1718 = vrot.lane.b32.xlu0 %v1683, 16
        %v1719 = vpop.permute.xlu0 %1718
        %1722 = vrot.lane.b32.xlu0 %v1684, 32
        %v1723 = vpop.permute.xlu0 %1722
        %1726 = vrot.lane.b32.xlu0 %v1685, 48
        %v1727 = vpop.permute.xlu0 %1726
        %1730 = vrot.lane.b32.xlu0 %v1686, 64
        %v1731 = vpop.permute.xlu0 %1730
        %1734 = vrot.lane.b32.xlu0 %v1687, 80
        %v1735 = vpop.permute.xlu0 %1734
        %1738 = vrot.lane.b32.xlu0 %v1688, 96
        %v1739 = vpop.permute.xlu0 %1738
        %1742 = vrot.lane.b32.xlu0 %v1689, 112
        %v1743 = vpop.permute.xlu0 %1742
        %1746 = vrot.lane.b32.xlu0 %v1691, 16
        %v1747 = vpop.permute.xlu0 %1746
        %1750 = vrot.lane.b32.xlu0 %v1692, 32
        %v1751 = vpop.permute.xlu0 %1750
        %1754 = vrot.lane.b32.xlu0 %v1693, 48
        %v1755 = vpop.permute.xlu0 %1754
        %1758 = vrot.lane.b32.xlu0 %v1694, 64
        %v1759 = vpop.permute.xlu0 %1758
        %1762 = vrot.lane.b32.xlu0 %v1695, 80
        %v1763 = vpop.permute.xlu0 %1762
        %1766 = vrot.lane.b32.xlu0 %v1696, 96
        %v1767 = vpop.permute.xlu0 %1766
        %1770 = vrot.lane.b32.xlu0 %v1698, 112
        %v1771 = vpop.permute.xlu0 %1770
        %v1773 = vsel %vm827, %v1682, %v1719
        %v1774 = vsel %vm976, %v1773, %v1723
        %v1775 = vsel %vm978, %v1774, %v1727
        %v1776 = vsel %vm980, %v1775, %v1731
        %v1777 = vsel %vm982, %v1776, %v1735
        %v1778 = vsel %vm984, %v1777, %v1739
        %v1779 = vsel %vm986, %v1778, %v1743
        %v1780 = vsel %vm827, %v1690, %v1747
        %v1781 = vsel %vm976, %v1780, %v1751
        %v1782 = vsel %vm978, %v1781, %v1755
        %v1783 = vsel %vm980, %v1782, %v1759
        %v1784 = vsel %vm982, %v1783, %v1763
        %v1785 = vsel %vm984, %v1784, %v1767
        %v1786 = vsel %vm986, %v1785, %v1771
        %1788 = vrot.lane.b32.xlu0 %v1702, 16
        %v1789 = vpop.permute.xlu0 %1788
        %1792 = vrot.lane.b32.xlu0 %v1704, 32
        %v1793 = vpop.permute.xlu0 %1792
        %1796 = vrot.lane.b32.xlu0 %v1706, 48
        %v1797 = vpop.permute.xlu0 %1796
        %1800 = vrot.lane.b32.xlu0 %v1708, 64
        %v1801 = vpop.permute.xlu0 %1800
        %1804 = vrot.lane.b32.xlu0 %v1710, 80
        %v1805 = vpop.permute.xlu0 %1804
        %1808 = vrot.lane.b32.xlu0 %v1712, 96
        %v1809 = vpop.permute.xlu0 %1808
        %1812 = vrot.lane.b32.xlu0 %v1714, 112
        %v1813 = vpop.permute.xlu0 %1812
        %v1815 = vsel %vm827, %v1700, %v1789
        %v1816 = vsel %vm976, %v1815, %v1793
        %v1817 = vsel %vm978, %v1816, %v1797
        %v1818 = vsel %vm980, %v1817, %v1801
        %v1819 = vsel %vm982, %v1818, %v1805
        %v1820 = vsel %vm984, %v1819, %v1809
        %v1821 = vsel %vm986, %v1820, %v1813
        %v1826 = vrot.slane %v1779, 5
        %v1827 = vrot.slane %v1786, 5
        %v1828 = vrot.slane %v1821, 5
        %v1829 = vrot.slane %v1716, 5
        %1834 = vst [vmem:[#allocation3 + $0x80] sm:$0xf8] %v1826
        %1835 = vst [vmem:[#allocation3 + $0x88] sm:$0xf8] %v1827
        %1836 = vst [vmem:[#allocation3 + $0x90] sm:$0xf8] %v1828
        %vm1837 = vcmask 130051
        %1838 = vst.msk [vmem:[#allocation3 + $0x98] sm:$0xf8] %vm1837, %v1829
        %1839 = vst [vmem:[#allocation3 + $0xa0] sm:$0x3] %v1826
        %1840 = vst [vmem:[#allocation3 + $0xa8] sm:$0x3] %v1827
        %1841 = vst [vmem:[#allocation3 + $0xb0] sm:$0x3] %v1828
        %vm1842 = vcmask 123904
        %1843 = vst.msk [vmem:[#allocation3 + $0xb8] sm:$0x3] %vm1842, %v1829
        %v1844 = vld [vmem:[%s1545] ss:$2 sm:$0x7f]
        %v1845 = vld [vmem:[%s1547] ss:$2 sm:$0x7f]
        %v1846 = vld [vmem:[%s1549] ss:$2 sm:$0x7f]
        %v1847 = vld [vmem:[%s1551] ss:$2 sm:$0x7f]
        %v1848 = vld [vmem:[%s1553] ss:$2 sm:$0x7f]
        %v1849 = vld [vmem:[%s1697] ss:$2 sm:$0x7f]
        %v1850 = vld [vmem:[%s1699] ss:$2 sm:$0x7f]
        %v1851 = vld [vmem:[%s1701] ss:$2 sm:$0x7f]
        %v1852 = vld [vmem:[%s1703] ss:$2 sm:$0x7f]
        %v1853 = vld [vmem:[%s1705] ss:$2 sm:$0x7f]
        %v1854 = vld [vmem:[%s1707] ss:$2 sm:$0x7f]
        %v1855 = vld [vmem:[%s1709] ss:$2 sm:$0x7f]
        %v1856 = vld [vmem:[%s1711] ss:$2 sm:$0x7f]
        %v1857 = vld [vmem:[%s1713] ss:$2 sm:$0x7f]
        %v1858 = vld [vmem:[%s1715] ss:$2 sm:$0x7f]
        %s1859 = scalar_lea.vmem [#allocation2], 270
        %v1860 = vld [vmem:[%s1859] ss:$2 sm:$0x7f]
        %s1861 = scalar_lea.vmem [#allocation2], 271
        %v1862 = vld [vmem:[%s1861] ss:$2 sm:$0x7f]
        %s1863 = scalar_lea.vmem [#allocation2], 272
        %v1864 = vld [vmem:[%s1863] ss:$2 sm:$0x7f]
        %s1865 = scalar_lea.vmem [#allocation2], 273
        %v1866 = vld [vmem:[%s1865] ss:$2 sm:$0x7f]
        %s1867 = scalar_lea.vmem [#allocation2], 274
        %v1868 = vld [vmem:[%s1867] ss:$2 sm:$0x7f]
        %s1869 = scalar_lea.vmem [#allocation2], 288
        %v1870 = vld [vmem:[%s1869] ss:$2 sm:$0x7f]
        %s1871 = scalar_lea.vmem [#allocation2], 289
        %v1872 = vld [vmem:[%s1871] ss:$2 sm:$0x7f]
        %s1873 = scalar_lea.vmem [#allocation2], 290
        %v1874 = vld [vmem:[%s1873] ss:$2 sm:$0x7f]
        %s1875 = scalar_lea.vmem [#allocation2], 291
        %v1876 = vld [vmem:[%s1875] ss:$2 sm:$0x7f]
        %s1877 = scalar_lea.vmem [#allocation2], 292
        %v1878 = vld [vmem:[%s1877] ss:$2 sm:$0x7f]
        %1880 = vrot.lane.b32.xlu0 %v1845, 16
        %v1881 = vpop.permute.xlu0 %1880
        %1884 = vrot.lane.b32.xlu0 %v1846, 32
        %v1885 = vpop.permute.xlu0 %1884
        %1888 = vrot.lane.b32.xlu0 %v1847, 48
        %v1889 = vpop.permute.xlu0 %1888
        %1892 = vrot.lane.b32.xlu0 %v1848, 64
        %v1893 = vpop.permute.xlu0 %1892
        %1896 = vrot.lane.b32.xlu0 %v1849, 80
        %v1897 = vpop.permute.xlu0 %1896
        %1900 = vrot.lane.b32.xlu0 %v1850, 96
        %v1901 = vpop.permute.xlu0 %1900
        %1904 = vrot.lane.b32.xlu0 %v1851, 112
        %v1905 = vpop.permute.xlu0 %1904
        %1908 = vrot.lane.b32.xlu0 %v1853, 16
        %v1909 = vpop.permute.xlu0 %1908
        %1912 = vrot.lane.b32.xlu0 %v1854, 32
        %v1913 = vpop.permute.xlu0 %1912
        %1916 = vrot.lane.b32.xlu0 %v1855, 48
        %v1917 = vpop.permute.xlu0 %1916
        %1920 = vrot.lane.b32.xlu0 %v1856, 64
        %v1921 = vpop.permute.xlu0 %1920
        %1924 = vrot.lane.b32.xlu0 %v1857, 80
        %v1925 = vpop.permute.xlu0 %1924
        %1928 = vrot.lane.b32.xlu0 %v1858, 96
        %v1929 = vpop.permute.xlu0 %1928
        %1932 = vrot.lane.b32.xlu0 %v1860, 112
        %v1933 = vpop.permute.xlu0 %1932
        %v1935 = vsel %vm827, %v1844, %v1881
        %v1936 = vsel %vm976, %v1935, %v1885
        %v1937 = vsel %vm978, %v1936, %v1889
        %v1938 = vsel %vm980, %v1937, %v1893
        %v1939 = vsel %vm982, %v1938, %v1897
        %v1940 = vsel %vm984, %v1939, %v1901
        %v1941 = vsel %vm986, %v1940, %v1905
        %v1942 = vsel %vm827, %v1852, %v1909
        %v1943 = vsel %vm976, %v1942, %v1913
        %v1944 = vsel %vm978, %v1943, %v1917
        %v1945 = vsel %vm980, %v1944, %v1921
        %v1946 = vsel %vm982, %v1945, %v1925
        %v1947 = vsel %vm984, %v1946, %v1929
        %v1948 = vsel %vm986, %v1947, %v1933
        %1950 = vrot.lane.b32.xlu0 %v1864, 16
        %v1951 = vpop.permute.xlu0 %1950
        %1954 = vrot.lane.b32.xlu0 %v1866, 32
        %v1955 = vpop.permute.xlu0 %1954
        %1958 = vrot.lane.b32.xlu0 %v1868, 48
        %v1959 = vpop.permute.xlu0 %1958
        %1962 = vrot.lane.b32.xlu0 %v1870, 64
        %v1963 = vpop.permute.xlu0 %1962
        %1966 = vrot.lane.b32.xlu0 %v1872, 80
        %v1967 = vpop.permute.xlu0 %1966
        %1970 = vrot.lane.b32.xlu0 %v1874, 96
        %v1971 = vpop.permute.xlu0 %1970
        %1974 = vrot.lane.b32.xlu0 %v1876, 112
        %v1975 = vpop.permute.xlu0 %1974
        %v1977 = vsel %vm827, %v1862, %v1951
        %v1978 = vsel %vm976, %v1977, %v1955
        %v1979 = vsel %vm978, %v1978, %v1959
        %v1980 = vsel %vm980, %v1979, %v1963
        %v1981 = vsel %vm982, %v1980, %v1967
        %v1982 = vsel %vm984, %v1981, %v1971
        %v1983 = vsel %vm986, %v1982, %v1975
        %v1988 = vrot.slane %v1941, 6
        %v1989 = vrot.slane %v1948, 6
        %v1990 = vrot.slane %v1983, 6
        %v1991 = vrot.slane %v1878, 6
        %1996 = vst [vmem:[#allocation3 + $0xa0] sm:$0xfc] %v1988
        %1997 = vst [vmem:[#allocation3 + $0xa8] sm:$0xfc] %v1989
        %1998 = vst [vmem:[#allocation3 + $0xb0] sm:$0xfc] %v1990
        %vm1999 = vcmask 130050
        %2000 = vst.msk [vmem:[#allocation3 + $0xb8] sm:$0xfc] %vm1999, %v1991
        %2001 = vst [vmem:[#allocation3 + $0xc0] sm:$0x1] %v1988
        %2002 = vst [vmem:[#allocation3 + $0xc8] sm:$0x1] %v1989
        %2003 = vst [vmem:[#allocation3 + $0xd0] sm:$0x1] %v1990
        %vm2004 = vcmask 122880
        %2005 = vst.msk [vmem:[#allocation3 + $0xd8] sm:$0x1] %vm2004, %v1991
        %v2006 = vld [vmem:[#allocation3] sm:$0xff]
        %v2007 = vld [vmem:[#allocation3 + $0x8] sm:$0xff]
        %v2008 = vld [vmem:[#allocation3 + $0x10] sm:$0xff]
        %v2009 = vld [vmem:[#allocation3 + $0x18] sm:$0xff]
        %v2010 = vld [vmem:[#allocation3 + $0x20] sm:$0xff]
        %v2011 = vld [vmem:[#allocation3 + $0x28] sm:$0xff]
        %v2012 = vld [vmem:[#allocation3 + $0x30] sm:$0xff]
        %v2013 = vld [vmem:[#allocation3 + $0x38] sm:$0xff]
        %v2014 = vld [vmem:[#allocation3 + $0x40] sm:$0xff]
        %v2015 = vld [vmem:[#allocation3 + $0x48] sm:$0xff]
        %v2016 = vld [vmem:[#allocation3 + $0x50] sm:$0xff]
        %v2017 = vld [vmem:[#allocation3 + $0x58] sm:$0xff]
        %v2018 = vld [vmem:[#allocation3 + $0x60] sm:$0xff]
        %v2019 = vld [vmem:[#allocation3 + $0x68] sm:$0xff]
        %v2020 = vld [vmem:[#allocation3 + $0x70] sm:$0xff]
        %v2021 = vld [vmem:[#allocation3 + $0x78] sm:$0xff]
        %v2022 = vld [vmem:[#allocation3 + $0x80] sm:$0xff]
        %v2023 = vld [vmem:[#allocation3 + $0x88] sm:$0xff]
        %v2024 = vld [vmem:[#allocation3 + $0x90] sm:$0xff]
        %v2025 = vld [vmem:[#allocation3 + $0x98] sm:$0xff]
        %v2026 = vld [vmem:[#allocation3 + $0xa0] sm:$0xff]
        %v2027 = vld [vmem:[#allocation3 + $0xa8] sm:$0xff]
        %v2028 = vld [vmem:[#allocation3 + $0xb0] sm:$0xff]
        %v2029 = vld [vmem:[#allocation3 + $0xb8] sm:$0xff]
        %v2030 = vld [vmem:[#allocation3 + $0xc0] sm:$0x1]
        %v2031 = vld [vmem:[#allocation3 + $0xc8] sm:$0x1]
        %v2032 = vld [vmem:[#allocation3 + $0xd0] sm:$0x1]
        %v2033 = vld [vmem:[#allocation3 + $0xd8] sm:$0x1]
        %v2034 = vld [vmem:[%s3] sm:$0xff]
        %v2035 = vld [vmem:[%s3 + $0x8] sm:$0xff]
        %v2036 = vld [vmem:[%s3 + $0x10] sm:$0xff]
        %v2037 = vld [vmem:[%s3 + $0x18] sm:$0xff]
        %v2038 = vld [vmem:[%s3 + $0x20] sm:$0xff]
        %v2039 = vld [vmem:[%s3 + $0x28] sm:$0xff]
        %v2040 = vld [vmem:[%s3 + $0x30] sm:$0xff]
        %v2041 = vld [vmem:[%s3 + $0x38] sm:$0xff]
        %v2042 = vld [vmem:[%s3 + $0x40] sm:$0xff]
        %v2043 = vld [vmem:[%s3 + $0x48] sm:$0xff]
        %v2044 = vld [vmem:[%s3 + $0x50] sm:$0xff]
        %v2045 = vld [vmem:[%s3 + $0x58] sm:$0xff]
        %v2046 = vld [vmem:[%s3 + $0x60] sm:$0xff]
        %v2047 = vld [vmem:[%s3 + $0x68] sm:$0xff]
        %v2048 = vld [vmem:[%s3 + $0x70] sm:$0xff]
        %v2049 = vld [vmem:[%s3 + $0x78] sm:$0xff]
        %v2050 = vld [vmem:[%s3 + $0x80] sm:$0xff]
        %v2051 = vld [vmem:[%s3 + $0x88] sm:$0xff]
        %v2052 = vld [vmem:[%s3 + $0x90] sm:$0xff]
        %v2053 = vld [vmem:[%s3 + $0x98] sm:$0xff]
        %v2054 = vld [vmem:[%s3 + $0xa0] sm:$0xff]
        %v2055 = vld [vmem:[%s3 + $0xa8] sm:$0xff]
        %v2056 = vld [vmem:[%s3 + $0xb0] sm:$0xff]
        %v2057 = vld [vmem:[%s3 + $0xb8] sm:$0xff]
        %v2058 = vld [vmem:[%s3 + $0xc0] sm:$0xff]
        %v2059 = vld [vmem:[%s3 + $0xc8] sm:$0xff]
        %v2060 = vld [vmem:[%s3 + $0xd0] sm:$0xff]
        %v2061 = vld [vmem:[%s3 + $0xd8] sm:$0xff]
        %v2062 = vld [vmem:[%s3 + $0xe0] sm:$0xff]
        %v2063 = vld [vmem:[%s3 + $0xe8] sm:$0xff]
        %v2064 = vld [vmem:[%s3 + $0xf0] sm:$0xff]
        %v2065 = vld [vmem:[%s3 + $0xf8] sm:$0xff]
        %v2066 = vld [vmem:[%s3 + $0x100] sm:$0xff]
        %v2067 = vld [vmem:[%s3 + $0x108] sm:$0xff]
        %v2068 = vld [vmem:[%s3 + $0x110] sm:$0xff]
        %v2069 = vld [vmem:[%s3 + $0x118] sm:$0xff]
        %v2070 = vld [vmem:[%s3 + $0x120] sm:$0xff]
        %v2071 = vld [vmem:[%s3 + $0x128] sm:$0xff]
        %v2072 = vld [vmem:[%s3 + $0x130] sm:$0xff]
        %v2073 = vld [vmem:[%s3 + $0x138] sm:$0xff]
        %v2074 = vld [vmem:[%s3 + $0x140] sm:$0xff]
        %v2075 = vld [vmem:[%s3 + $0x148] sm:$0xff]
        %v2076 = vld [vmem:[%s3 + $0x150] sm:$0xff]
        %v2077 = vld [vmem:[%s3 + $0x158] sm:$0xff]
        %v2078 = vld [vmem:[%s3 + $0x160] sm:$0xff]
        %v2079 = vld [vmem:[%s3 + $0x168] sm:$0xff]
        %v2080 = vld [vmem:[%s3 + $0x170] sm:$0xff]
        %v2081 = vld [vmem:[%s3 + $0x178] sm:$0xff]
        %v2082 = vld [vmem:[%s3 + $0x180] sm:$0xff]
        %v2083 = vld [vmem:[%s3 + $0x188] sm:$0xff]
        %v2084 = vld [vmem:[%s4] sm:$0x1]
        %v2086 = vlaneseq
        %v2087 = vshrl.u32 %v2086, 7
        %v2088 = vsub.s32 0, %v2087
        %v2089 = vrot.slane %v2084, %v2088
        %v2092 = vsel %vm827, %v2009, 0
        %v2095 = vsel %vm827, %v2013, 0
        %v2098 = vsel %vm827, %v2017, 0
        %v2101 = vsel %vm827, %v2021, 0
        %v2104 = vsel %vm827, %v2025, 0
        %v2107 = vsel %vm827, %v2029, 0
        %v2110 = vsel %vm827, %v2033, 0
        %2112 = vmatprep.subr.mxu0 0.0
        %2113 = vmatpush1.msra.mxu0 %v2034
        %2114 = vmatprep.subr.mxu0 0.0
        %2115 = vmatpush1.msra.mxu0 %v2035
        %2116 = vmatprep.subr.mxu0 0.0
        %2117 = vmatpush1.msra.mxu0 %v2036
        %2118 = vmatprep.subr.mxu0 0.0
        %2119 = vmatpush1.msra.mxu0 %v2037
        %2120 = vmatprep.subr.mxu0 0.0
        %2121 = vmatpush1.msra.mxu0 %v2038
        %2122 = vmatprep.subr.mxu0 0.0
        %2123 = vmatpush1.msra.mxu0 %v2039
        %2124 = vmatprep.subr.mxu0 0.0
        %2125 = vmatpush1.msra.mxu0 %v2040
        %2126 = vmatprep.subr.mxu0 0.0
        %2127 = vmatpush1.msra.mxu0 %v2041
        %2128 = vmatprep.subr.mxu0 0.0
        %2129 = vmatpush1.msra.mxu0 %v2042
        %2130 = vmatprep.subr.mxu0 0.0
        %2131 = vmatpush1.msra.mxu0 %v2043
        %2132 = vmatprep.subr.mxu0 0.0
        %2133 = vmatpush1.msra.mxu0 %v2044
        %2134 = vmatprep.subr.mxu0 0.0
        %2135 = vmatpush1.msra.mxu0 %v2045
        %2136 = vmatprep.subr.mxu0 0.0
        %2137 = vmatpush1.msra.mxu0 %v2046
        %2138 = vmatprep.subr.mxu0 0.0
        %2139 = vmatpush1.msra.mxu0 %v2047
        %2140 = vmatprep.subr.mxu0 0.0
        %2141 = vmatpush1.msra.mxu0 %v2048
        %2142 = vmatprep.subr.mxu0 0.0
        %2143 = vmatpush1.msra.mxu0 %v2049
        %2144 = vmatprep.subr.mxu0 0.0
        %2145 = vmatpush1.msra.mxu0 %v2050
        %2146 = vmatprep.subr.mxu0 0.0
        %2147 = vmatpush1.msra.mxu0 %v2051
        %2148 = vmatprep.subr.mxu0 0.0
        %2149 = vmatpush1.msra.mxu0 %v2052
        %2150 = vmatprep.subr.mxu0 0.0
        %2151 = vmatpush1.msra.mxu0 %v2053
        %2152 = vmatprep.subr.mxu0 0.0
        %2153 = vmatpush1.msra.mxu0 %v2054
        %2154 = vmatprep.subr.mxu0 0.0
        %2155 = vmatpush1.msra.mxu0 %v2055
        %2156 = vmatprep.subr.mxu0 0.0
        %2157 = vmatpush1.msra.mxu0 %v2056
        %2158 = vmatprep.subr.mxu0 0.0
        %2159 = vmatpush1.msra.mxu0 %v2057
        %2160 = vmatprep.subr.mxu0 0.0
        %2161 = vmatpush1.msra.mxu0 %v2058
        %2162 = vmatprep.subr.mxu0 0.0
        %2163 = vmatpush1.msra.mxu0 %v2059
        %2164 = vmatprep.subr.mxu0 0.0
        %2165 = vmatpush1.msra.mxu0 %v2060
        %2166 = vmatprep.subr.mxu0 0.0
        %2167 = vmatpush1.msra.mxu0 %v2061
        %2168 = vmatprep.subr.mxu0 0.0
        %2169 = vmatpush1.msra.mxu0 %v2062
        %2170 = vmatprep.subr.mxu0 0.0
        %2171 = vmatpush1.msra.mxu0 %v2063
        %2172 = vmatprep.subr.mxu0 0.0
        %2173 = vmatpush1.msra.mxu0 %v2064
        %2174 = vmatprep.subr.mxu0 0.0
        %2175 = vmatpush1.msra.mxu0 %v2065
        %2176 = vmatprep.mubr.f32.mxu0 %v2007
        %2177 = vmatmul.mubr.f32.gmra.mrb[0].mxu0 %v2006
        %v2178 = vpop.f32.mrb[0].mxu0
        %v2179 = vadd.f32 %v2089, %v2178
        %v2180 = vpop.f32.mrb[0].mxu0
        %2181 = vmatprep.mubr.f32.mxu0 %v2011
        %2182 = vmatmul.mubr.f32.gmra.mrb[0].mxu0 %v2010
        %v2183 = vpop.f32.mrb[0].mxu0
        %v2184 = vadd.f32 %v2089, %v2183
        %v2185 = vpop.f32.mrb[0].mxu0
        %2186 = vmatprep.mubr.f32.mxu0 %v2015
        %2187 = vmatmul.mubr.f32.gmra.mrb[0].mxu0 %v2014
        %v2188 = vpop.f32.mrb[0].mxu0
        %v2189 = vadd.f32 %v2089, %v2188
        %v2190 = vpop.f32.mrb[0].mxu0
        %2191 = vmatprep.mubr.f32.mxu0 %v2019
        %2192 = vmatmul.mubr.f32.gmra.mrb[0].mxu0 %v2018
        %v2193 = vpop.f32.mrb[0].mxu0
        %v2194 = vadd.f32 %v2089, %v2193
        %v2195 = vpop.f32.mrb[0].mxu0
        %2196 = vmatprep.mubr.f32.mxu0 %v2023
        %2197 = vmatmul.mubr.f32.gmra.mrb[0].mxu0 %v2022
        %v2198 = vpop.f32.mrb[0].mxu0
        %v2199 = vadd.f32 %v2089, %v2198
        %v2200 = vpop.f32.mrb[0].mxu0
        %2201 = vmatprep.mubr.f32.mxu0 %v2027
        %2202 = vmatmul.mubr.f32.gmra.mrb[0].mxu0 %v2026
        %v2203 = vpop.f32.mrb[0].mxu0
        %v2204 = vadd.f32 %v2089, %v2203
        %v2205 = vpop.f32.mrb[0].mxu0
        %2206 = vmatprep.mubr.f32.mxu0 %v2031
        %2207 = vmatmul.mubr.f32.gmra.mrb[0].mxu0 %v2030
        %v2208 = vpop.f32.mrb[0].mxu0
        %v2209 = vadd.f32 %v2089, %v2208
        %v2210 = vpop.f32.mrb[0].mxu0
        %2211 = vdwg.mxu0
        %2212 = vmatprep.subr.mxu0 0.0
        %2213 = vmatpush1.msra.mxu0 %v2066
        %2214 = vmatprep.subr.mxu0 0.0
        %2215 = vmatpush1.msra.mxu0 %v2067
        %2216 = vmatprep.subr.mxu0 0.0
        %2217 = vmatpush1.msra.mxu0 %v2068
        %2218 = vmatprep.subr.mxu0 0.0
        %2219 = vmatpush1.msra.mxu0 %v2069
        %2220 = vmatprep.subr.mxu0 0.0
        %2221 = vmatpush1.msra.mxu0 %v2070
        %2222 = vmatprep.subr.mxu0 0.0
        %2223 = vmatpush1.msra.mxu0 %v2071
        %2224 = vmatprep.subr.mxu0 0.0
        %2225 = vmatpush1.msra.mxu0 %v2072
        %2226 = vmatprep.subr.mxu0 0.0
        %2227 = vmatpush1.msra.mxu0 %v2073
        %2228 = vmatprep.subr.mxu0 0.0
        %2229 = vmatpush1.msra.mxu0 %v2074
        %2230 = vmatprep.subr.mxu0 0.0
        %2231 = vmatpush1.msra.mxu0 %v2075
        %2232 = vmatprep.subr.mxu0 0.0
        %2233 = vmatpush1.msra.mxu0 %v2076
        %2234 = vmatprep.subr.mxu0 0.0
        %2235 = vmatpush1.msra.mxu0 %v2077
        %2236 = vmatprep.subr.mxu0 0.0
        %2237 = vmatpush1.msra.mxu0 %v2078
        %2238 = vmatprep.subr.mxu0 0.0
        %2239 = vmatpush1.msra.mxu0 %v2079
        %2240 = vmatprep.subr.mxu0 0.0
        %2241 = vmatpush1.msra.mxu0 %v2080
        %2242 = vmatprep.subr.mxu0 0.0
        %2243 = vmatpush1.msra.mxu0 %v2081
        %2244 = vmatprep.subr.mxu0 0.0
        %2245 = vmatpush1.msra.mxu0 %v2082
        %2246 = vmatprep.subr.mxu0 0.0
        %2247 = vmatpush1.msra.mxu0 %v2083
        %2248 = vmatprep.subr.mxu0 0.0
        %2249 = vmatpush1.msra.mxu0 0.0
        %2250 = vmatprep.subr.mxu0 0.0
        %2251 = vmatpush1.msra.mxu0 0.0
        %2252 = vmatprep.subr.mxu0 0.0
        %2253 = vmatpush1.msra.mxu0 0.0
        %2254 = vmatprep.subr.mxu0 0.0
        %2255 = vmatpush1.msra.mxu0 0.0
        %2256 = vmatprep.subr.mxu0 0.0
        %2257 = vmatpush1.msra.mxu0 0.0
        %2258 = vmatprep.subr.mxu0 0.0
        %2259 = vmatpush1.msra.mxu0 0.0
        %2260 = vmatprep.subr.mxu0 0.0
        %2261 = vmatpush1.msra.mxu0 0.0
        %2262 = vmatprep.subr.mxu0 0.0
        %2263 = vmatpush1.msra.mxu0 0.0
        %2264 = vmatprep.subr.mxu0 0.0
        %2265 = vmatpush1.msra.mxu0 0.0
        %2266 = vmatprep.subr.mxu0 0.0
        %2267 = vmatpush1.msra.mxu0 0.0
        %2268 = vmatprep.subr.mxu0 0.0
        %2269 = vmatpush1.msra.mxu0 0.0
        %2270 = vmatprep.subr.mxu0 0.0
        %2271 = vmatpush1.msra.mxu0 0.0
        %2272 = vmatprep.subr.mxu0 0.0
        %2273 = vmatpush1.msra.mxu0 0.0
        %2274 = vmatprep.subr.mxu0 0.0
        %2275 = vmatpush1.msra.mxu0 0.0
        %2276 = vmatprep.mubr.f32.mxu0 %v2092
        %2277 = vmatmul.mubr.f32.gmra.mrb[0].mxu0 %v2008
        %v2278 = vpop.f32.mrb[0].mxu0
        %v2279 = vadd.f32 %v2179, %v2278
        %v2280 = vpop.f32.mrb[0].mxu0
        %2281 = vmatprep.mubr.f32.mxu0 %v2095
        %2282 = vmatmul.mubr.f32.gmra.mrb[0].mxu0 %v2012
        %v2283 = vpop.f32.mrb[0].mxu0
        %v2284 = vadd.f32 %v2184, %v2283
        %v2285 = vpop.f32.mrb[0].mxu0
        %2286 = vmatprep.mubr.f32.mxu0 %v2098
        %2287 = vmatmul.mubr.f32.gmra.mrb[0].mxu0 %v2016
        %v2288 = vpop.f32.mrb[0].mxu0
        %v2289 = vadd.f32 %v2189, %v2288
        %v2290 = vpop.f32.mrb[0].mxu0
        %2291 = vmatprep.mubr.f32.mxu0 %v2101
        %2292 = vmatmul.mubr.f32.gmra.mrb[0].mxu0 %v2020
        %v2293 = vpop.f32.mrb[0].mxu0
        %v2294 = vadd.f32 %v2194, %v2293
        %v2295 = vpop.f32.mrb[0].mxu0
        %2296 = vmatprep.mubr.f32.mxu0 %v2104
        %2297 = vmatmul.mubr.f32.gmra.mrb[0].mxu0 %v2024
        %v2298 = vpop.f32.mrb[0].mxu0
        %v2299 = vadd.f32 %v2199, %v2298
        %v2300 = vpop.f32.mrb[0].mxu0
        %2301 = vmatprep.mubr.f32.mxu0 %v2107
        %2302 = vmatmul.mubr.f32.gmra.mrb[0].mxu0 %v2028
        %v2303 = vpop.f32.mrb[0].mxu0
        %v2304 = vadd.f32 %v2204, %v2303
        %v2305 = vpop.f32.mrb[0].mxu0
        %2306 = vmatprep.mubr.f32.mxu0 %v2110
        %2307 = vmatmul.mubr.f32.gmra.mrb[0].mxu0 %v2032
        %v2308 = vpop.f32.mrb[0].mxu0
        %v2309 = vadd.f32 %v2209, %v2308
        %v2310 = vpop.f32.mrb[0].mxu0
        %2311 = vdwg.mxu0
        %v2312 = vmax.f32 %v2279, 0.0
        %v2313 = vmax.f32 %v2284, 0.0
        %v2314 = vmax.f32 %v2289, 0.0
        %v2315 = vmax.f32 %v2294, 0.0
        %v2316 = vmax.f32 %v2299, 0.0
        %v2317 = vmax.f32 %v2304, 0.0
        %v2318 = vmax.f32 %v2309, 0.0
        %2319 = vst.msk [vmem:[#allocation4] sm:$0xff] %vm976, %v2312
        %2320 = vst.msk [vmem:[#allocation4 + $0x8] sm:$0xff] %vm976, %v2313
        %2321 = vst.msk [vmem:[#allocation4 + $0x10] sm:$0xff] %vm976, %v2314
        %2322 = vst.msk [vmem:[#allocation4 + $0x18] sm:$0xff] %vm976, %v2315
        %2323 = vst.msk [vmem:[#allocation4 + $0x20] sm:$0xff] %vm976, %v2316
        %2324 = vst.msk [vmem:[#allocation4 + $0x28] sm:$0xff] %vm976, %v2317
        %vm2325 = vcmask 253952
        %2326 = vst.msk [vmem:[#allocation4 + $0x30] sm:$0x1] %vm2325, %v2318
        %v2327 = vld [vmem:[#allocation4] ss:$2 sm:$0x3]
        %s2328 = scalar_lea.vmem [#allocation4], 1
        %v2329 = vld [vmem:[%s2328] ss:$2 sm:$0x3]
        %s2330 = scalar_lea.vmem [#allocation4], 2
        %v2331 = vld [vmem:[%s2330] ss:$2 sm:$0x3]
        %s2332 = scalar_lea.vmem [#allocation4], 3
        %v2333 = vld [vmem:[%s2332] ss:$2 sm:$0x3]
        %s2334 = scalar_lea.vmem [#allocation4], 4
        %v2335 = vld [vmem:[%s2334] ss:$2 sm:$0x3]
        %s2336 = scalar_lea.vmem [#allocation4], 7
        %v2337 = vld [vmem:[%s2336] ss:$2 sm:$0x3]
        %s2338 = scalar_lea.vmem [#allocation4], 8
        %v2339 = vld [vmem:[%s2338] ss:$2 sm:$0x3]
        %s2340 = scalar_lea.vmem [#allocation4], 9
        %v2341 = vld [vmem:[%s2340] ss:$2 sm:$0x3]
        %s2342 = scalar_lea.vmem [#allocation4], 10
        %v2343 = vld [vmem:[%s2342] ss:$2 sm:$0x3]
        %s2344 = scalar_lea.vmem [#allocation4], 11
        %v2345 = vld [vmem:[%s2344] ss:$2 sm:$0x3]
        %s2346 = scalar_lea.vmem [#allocation4], 14
        %v2347 = vld [vmem:[%s2346] ss:$2 sm:$0x3]
        %s2348 = scalar_lea.vmem [#allocation4], 15
        %v2349 = vld [vmem:[%s2348] ss:$2 sm:$0x3]
        %s2350 = scalar_lea.vmem [#allocation4], 16
        %v2351 = vld [vmem:[%s2350] ss:$2 sm:$0x3]
        %s2352 = scalar_lea.vmem [#allocation4], 17
        %v2353 = vld [vmem:[%s2352] ss:$2 sm:$0x3]
        %s2354 = scalar_lea.vmem [#allocation4], 18
        %v2355 = vld [vmem:[%s2354] ss:$2 sm:$0x3]
        %s2356 = scalar_lea.vmem [#allocation4], 21
        %v2357 = vld [vmem:[%s2356] ss:$2 sm:$0x3]
        %s2358 = scalar_lea.vmem [#allocation4], 22
        %v2359 = vld [vmem:[%s2358] ss:$2 sm:$0x3]
        %s2360 = scalar_lea.vmem [#allocation4], 23
        %v2361 = vld [vmem:[%s2360] ss:$2 sm:$0x3]
        %s2362 = scalar_lea.vmem [#allocation4], 24
        %v2363 = vld [vmem:[%s2362] ss:$2 sm:$0x3]
        %s2364 = scalar_lea.vmem [#allocation4], 25
        %v2365 = vld [vmem:[%s2364] ss:$2 sm:$0x3]
        %s2366 = scalar_lea.vmem [#allocation4], 28
        %v2367 = vld [vmem:[%s2366] ss:$2 sm:$0x3]
        %s2368 = scalar_lea.vmem [#allocation4], 29
        %v2369 = vld [vmem:[%s2368] ss:$2 sm:$0x3]
        %s2370 = scalar_lea.vmem [#allocation4], 30
        %v2371 = vld [vmem:[%s2370] ss:$2 sm:$0x3]
        %s2372 = scalar_lea.vmem [#allocation4], 31
        %v2373 = vld [vmem:[%s2372] ss:$2 sm:$0x3]
        %s2374 = scalar_lea.vmem [#allocation4], 32
        %v2375 = vld [vmem:[%s2374] ss:$2 sm:$0x3]
        %2377 = vrot.lane.b32.xlu0 %v2329, 32
        %v2378 = vpop.permute.xlu0 %2377
        %2381 = vrot.lane.b32.xlu0 %v2331, 64
        %v2382 = vpop.permute.xlu0 %2381
        %2385 = vrot.lane.b32.xlu0 %v2333, 96
        %v2386 = vpop.permute.xlu0 %2385
        %2389 = vrot.lane.b32.xlu0 %v2337, 32
        %v2390 = vpop.permute.xlu0 %2389
        %2393 = vrot.lane.b32.xlu0 %v2339, 64
        %v2394 = vpop.permute.xlu0 %2393
        %2397 = vrot.lane.b32.xlu0 %v2341, 96
        %v2398 = vpop.permute.xlu0 %2397
        %2401 = vrot.lane.b32.xlu0 %v2345, 32
        %v2402 = vpop.permute.xlu0 %2401
        %2405 = vrot.lane.b32.xlu0 %v2347, 64
        %v2406 = vpop.permute.xlu0 %2405
        %2409 = vrot.lane.b32.xlu0 %v2349, 96
        %v2410 = vpop.permute.xlu0 %2409
        %2413 = vrot.lane.b32.xlu0 %v2353, 32
        %v2414 = vpop.permute.xlu0 %2413
        %2417 = vrot.lane.b32.xlu0 %v2355, 64
        %v2418 = vpop.permute.xlu0 %2417
        %2421 = vrot.lane.b32.xlu0 %v2357, 96
        %v2422 = vpop.permute.xlu0 %2421
        %v2424 = vsel %vm976, %v2327, %v2378
        %v2425 = vsel %vm980, %v2424, %v2382
        %v2426 = vsel %vm984, %v2425, %v2386
        %v2427 = vsel %vm976, %v2335, %v2390
        %v2428 = vsel %vm980, %v2427, %v2394
        %v2429 = vsel %vm984, %v2428, %v2398
        %v2430 = vsel %vm976, %v2343, %v2402
        %v2431 = vsel %vm980, %v2430, %v2406
        %v2432 = vsel %vm984, %v2431, %v2410
        %v2433 = vsel %vm976, %v2351, %v2414
        %v2434 = vsel %vm980, %v2433, %v2418
        %v2435 = vsel %vm984, %v2434, %v2422
        %2437 = vrot.lane.b32.xlu0 %v2361, 32
        %v2438 = vpop.permute.xlu0 %2437
        %2441 = vrot.lane.b32.xlu0 %v2363, 64
        %v2442 = vpop.permute.xlu0 %2441
        %2445 = vrot.lane.b32.xlu0 %v2365, 96
        %v2446 = vpop.permute.xlu0 %2445
        %2449 = vrot.lane.b32.xlu0 %v2369, 32
        %v2450 = vpop.permute.xlu0 %2449
        %2453 = vrot.lane.b32.xlu0 %v2371, 64
        %v2454 = vpop.permute.xlu0 %2453
        %2457 = vrot.lane.b32.xlu0 %v2373, 96
        %v2458 = vpop.permute.xlu0 %2457
        %v2460 = vsel %vm976, %v2359, %v2438
        %v2461 = vsel %vm980, %v2460, %v2442
        %v2462 = vsel %vm984, %v2461, %v2446
        %v2463 = vsel %vm976, %v2367, %v2450
        %v2464 = vsel %vm980, %v2463, %v2454
        %v2465 = vsel %vm984, %v2464, %v2458
        %v2472 = vcombine.low %v2426, %v2429
        %v2473 = vcombine.low %v2432, %v2435
        %v2474 = vcombine.low %v2462, %v2465
        %2478 = vst [vmem:[#allocation5] sm:$0x33] %v2472
        %2479 = vst [vmem:[#allocation5 + $0x8] sm:$0x33] %v2473
        %2480 = vst [vmem:[#allocation5 + $0x10] sm:$0x33] %v2474
        %vm2481 = vcmask 254976
        %2482 = vst.msk [vmem:[#allocation5 + $0x18] sm:$0x3] %vm2481, %v2375
        %v2483 = vld [vmem:[%s2346] ss:$2 sm:$0x3]
        %v2484 = vld [vmem:[%s2348] ss:$2 sm:$0x3]
        %v2485 = vld [vmem:[%s2350] ss:$2 sm:$0x3]
        %v2486 = vld [vmem:[%s2352] ss:$2 sm:$0x3]
        %v2487 = vld [vmem:[%s2354] ss:$2 sm:$0x3]
        %v2488 = vld [vmem:[%s2356] ss:$2 sm:$0x3]
        %v2489 = vld [vmem:[%s2358] ss:$2 sm:$0x3]
        %v2490 = vld [vmem:[%s2360] ss:$2 sm:$0x3]
        %v2491 = vld [vmem:[%s2362] ss:$2 sm:$0x3]
        %v2492 = vld [vmem:[%s2364] ss:$2 sm:$0x3]
        %v2493 = vld [vmem:[%s2366] ss:$2 sm:$0x3]
        %v2494 = vld [vmem:[%s2368] ss:$2 sm:$0x3]
        %v2495 = vld [vmem:[%s2370] ss:$2 sm:$0x3]
        %v2496 = vld [vmem:[%s2372] ss:$2 sm:$0x3]
        %v2497 = vld [vmem:[%s2374] ss:$2 sm:$0x3]
        %s2498 = scalar_lea.vmem [#allocation4], 35
        %v2499 = vld [vmem:[%s2498] ss:$2 sm:$0x3]
        %s2500 = scalar_lea.vmem [#allocation4], 36
        %v2501 = vld [vmem:[%s2500] ss:$2 sm:$0x3]
        %s2502 = scalar_lea.vmem [#allocation4], 37
        %v2503 = vld [vmem:[%s2502] ss:$2 sm:$0x3]
        %s2504 = scalar_lea.vmem [#allocation4], 38
        %v2505 = vld [vmem:[%s2504] ss:$2 sm:$0x3]
        %s2506 = scalar_lea.vmem [#allocation4], 39
        %v2507 = vld [vmem:[%s2506] ss:$2 sm:$0x3]
        %s2508 = scalar_lea.vmem [#allocation4], 42
        %v2509 = vld [vmem:[%s2508] ss:$2 sm:$0x3]
        %s2510 = scalar_lea.vmem [#allocation4], 43
        %v2511 = vld [vmem:[%s2510] ss:$2 sm:$0x3]
        %s2512 = scalar_lea.vmem [#allocation4], 44
        %v2513 = vld [vmem:[%s2512] ss:$2 sm:$0x3]
        %s2514 = scalar_lea.vmem [#allocation4], 45
        %v2515 = vld [vmem:[%s2514] ss:$2 sm:$0x3]
        %s2516 = scalar_lea.vmem [#allocation4], 46
        %v2517 = vld [vmem:[%s2516] ss:$2 sm:$0x3]
        %2519 = vrot.lane.b32.xlu0 %v2484, 32
        %v2520 = vpop.permute.xlu0 %2519
        %2523 = vrot.lane.b32.xlu0 %v2485, 64
        %v2524 = vpop.permute.xlu0 %2523
        %2527 = vrot.lane.b32.xlu0 %v2486, 96
        %v2528 = vpop.permute.xlu0 %2527
        %2531 = vrot.lane.b32.xlu0 %v2488, 32
        %v2532 = vpop.permute.xlu0 %2531
        %2535 = vrot.lane.b32.xlu0 %v2489, 64
        %v2536 = vpop.permute.xlu0 %2535
        %2539 = vrot.lane.b32.xlu0 %v2490, 96
        %v2540 = vpop.permute.xlu0 %2539
        %2543 = vrot.lane.b32.xlu0 %v2492, 32
        %v2544 = vpop.permute.xlu0 %2543
        %2547 = vrot.lane.b32.xlu0 %v2493, 64
        %v2548 = vpop.permute.xlu0 %2547
        %2551 = vrot.lane.b32.xlu0 %v2494, 96
        %v2552 = vpop.permute.xlu0 %2551
        %2555 = vrot.lane.b32.xlu0 %v2496, 32
        %v2556 = vpop.permute.xlu0 %2555
        %2559 = vrot.lane.b32.xlu0 %v2497, 64
        %v2560 = vpop.permute.xlu0 %2559
        %2563 = vrot.lane.b32.xlu0 %v2499, 96
        %v2564 = vpop.permute.xlu0 %2563
        %v2566 = vsel %vm976, %v2483, %v2520
        %v2567 = vsel %vm980, %v2566, %v2524
        %v2568 = vsel %vm984, %v2567, %v2528
        %v2569 = vsel %vm976, %v2487, %v2532
        %v2570 = vsel %vm980, %v2569, %v2536
        %v2571 = vsel %vm984, %v2570, %v2540
        %v2572 = vsel %vm976, %v2491, %v2544
        %v2573 = vsel %vm980, %v2572, %v2548
        %v2574 = vsel %vm984, %v2573, %v2552
        %v2575 = vsel %vm976, %v2495, %v2556
        %v2576 = vsel %vm980, %v2575, %v2560
        %v2577 = vsel %vm984, %v2576, %v2564
        %2579 = vrot.lane.b32.xlu0 %v2503, 32
        %v2580 = vpop.permute.xlu0 %2579
        %2583 = vrot.lane.b32.xlu0 %v2505, 64
        %v2584 = vpop.permute.xlu0 %2583
        %2587 = vrot.lane.b32.xlu0 %v2507, 96
        %v2588 = vpop.permute.xlu0 %2587
        %2591 = vrot.lane.b32.xlu0 %v2511, 32
        %v2592 = vpop.permute.xlu0 %2591
        %2595 = vrot.lane.b32.xlu0 %v2513, 64
        %v2596 = vpop.permute.xlu0 %2595
        %2599 = vrot.lane.b32.xlu0 %v2515, 96
        %v2600 = vpop.permute.xlu0 %2599
        %v2602 = vsel %vm976, %v2501, %v2580
        %v2603 = vsel %vm980, %v2602, %v2584
        %v2604 = vsel %vm984, %v2603, %v2588
        %v2605 = vsel %vm976, %v2509, %v2592
        %v2606 = vsel %vm980, %v2605, %v2596
        %v2607 = vsel %vm984, %v2606, %v2600
        %v2615 = vcombine.low %v2568, %v2571
        %v2616 = vcombine.low %v2574, %v2577
        %v2617 = vcombine.low %v2604, %v2607
        %v2618 = vrot.slane %v2615, 6
        %v2619 = vrot.slane %v2616, 6
        %v2620 = vrot.slane %v2617, 6
        %v2621 = vrot.slane %v2517, 6
        %2626 = vst [vmem:[#allocation5] sm:$0xcc] %v2618
        %2627 = vst [vmem:[#allocation5 + $0x8] sm:$0xcc] %v2619
        %2628 = vst [vmem:[#allocation5 + $0x10] sm:$0xcc] %v2620
        %vm2629 = vcmask 257026
        %2630 = vst.msk [vmem:[#allocation5 + $0x18] sm:$0xc] %vm2629, %v2621
        %v2631 = vld [vmem:[#allocation5] sm:$0xff]
        %v2632 = vld [vmem:[#allocation5 + $0x8] sm:$0xff]
        %v2633 = vld [vmem:[#allocation5 + $0x10] sm:$0xff]
        %v2634 = vld [vmem:[#allocation5 + $0x18] sm:$0xf]
        %v2635 = vld [vmem:[%s5] sm:$0xff]
        %v2636 = vld [vmem:[%s5 + $0x8] sm:$0xff]
        %v2637 = vld [vmem:[%s5 + $0x10] sm:$0xff]
        %v2638 = vld [vmem:[%s5 + $0x18] sm:$0xff]
        %v2639 = vld [vmem:[%s5 + $0x20] sm:$0xff]
        %v2640 = vld [vmem:[%s5 + $0x28] sm:$0xff]
        %v2641 = vld [vmem:[%s5 + $0x30] sm:$0xff]
        %v2642 = vld [vmem:[%s5 + $0x38] sm:$0xff]
        %v2643 = vld [vmem:[%s5 + $0x40] sm:$0xff]
        %v2644 = vld [vmem:[%s5 + $0x48] sm:$0xff]
        %v2645 = vld [vmem:[%s5 + $0x50] sm:$0xff]
        %v2646 = vld [vmem:[%s5 + $0x58] sm:$0xff]
        %v2647 = vld [vmem:[%s5 + $0x60] sm:$0xff]
        %v2648 = vld [vmem:[%s5 + $0x68] sm:$0xff]
        %v2649 = vld [vmem:[%s5 + $0x70] sm:$0xff]
        %v2650 = vld [vmem:[%s5 + $0x78] sm:$0xff]
        %v2651 = vld [vmem:[%s5 + $0x80] sm:$0xff]
        %v2652 = vld [vmem:[%s5 + $0x88] sm:$0xff]
        %v2653 = vld [vmem:[%s5 + $0x90] sm:$0xff]
        %v2654 = vld [vmem:[%s5 + $0x98] sm:$0xff]
        %v2655 = vld [vmem:[%s5 + $0xa0] sm:$0xff]
        %v2656 = vld [vmem:[%s5 + $0xa8] sm:$0xff]
        %v2657 = vld [vmem:[%s5 + $0xb0] sm:$0xff]
        %v2658 = vld [vmem:[%s5 + $0xb8] sm:$0xff]
        %v2659 = vld [vmem:[%s5 + $0xc0] sm:$0xff]
        %v2660 = vld [vmem:[%s5 + $0xc8] sm:$0xff]
        %v2661 = vld [vmem:[%s5 + $0xd0] sm:$0xff]
        %v2662 = vld [vmem:[%s5 + $0xd8] sm:$0xff]
        %v2663 = vld [vmem:[%s5 + $0xe0] sm:$0xff]
        %v2664 = vld [vmem:[%s5 + $0xe8] sm:$0xff]
        %v2665 = vld [vmem:[%s5 + $0xf0] sm:$0xff]
        %v2666 = vld [vmem:[%s5 + $0xf8] sm:$0xff]
        %v2667 = vld [vmem:[%s5 + $0x100] sm:$0xff]
        %v2668 = vld [vmem:[%s5 + $0x108] sm:$0xff]
        %v2669 = vld [vmem:[%s5 + $0x110] sm:$0xff]
        %v2670 = vld [vmem:[%s5 + $0x118] sm:$0xff]
        %v2671 = vld [vmem:[%s5 + $0x120] sm:$0xff]
        %v2672 = vld [vmem:[%s5 + $0x128] sm:$0xff]
        %v2673 = vld [vmem:[%s5 + $0x130] sm:$0xff]
        %v2674 = vld [vmem:[%s5 + $0x138] sm:$0xff]
        %v2675 = vld [vmem:[%s5 + $0x140] sm:$0xff]
        %v2676 = vld [vmem:[%s5 + $0x148] sm:$0xff]
        %v2677 = vld [vmem:[%s5 + $0x150] sm:$0xff]
        %v2678 = vld [vmem:[%s5 + $0x158] sm:$0xff]
        %v2679 = vld [vmem:[%s5 + $0x160] sm:$0xff]
        %v2680 = vld [vmem:[%s5 + $0x168] sm:$0xff]
        %v2681 = vld [vmem:[%s5 + $0x170] sm:$0xff]
        %v2682 = vld [vmem:[%s5 + $0x178] sm:$0xff]
        %v2683 = vld [vmem:[%s5 + $0x180] sm:$0xff]
        %v2684 = vld [vmem:[%s5 + $0x188] sm:$0xff]
        %v2685 = vld [vmem:[%s5 + $0x190] sm:$0xff]
        %v2686 = vld [vmem:[%s5 + $0x198] sm:$0xff]
        %v2687 = vld [vmem:[%s5 + $0x1a0] sm:$0xff]
        %v2688 = vld [vmem:[%s5 + $0x1a8] sm:$0xff]
        %v2689 = vld [vmem:[%s5 + $0x1b0] sm:$0xff]
        %v2690 = vld [vmem:[%s5 + $0x1b8] sm:$0xff]
        %v2691 = vld [vmem:[%s5 + $0x1c0] sm:$0xff]
        %v2692 = vld [vmem:[%s5 + $0x1c8] sm:$0xff]
        %v2693 = vld [vmem:[%s5 + $0x1d0] sm:$0xff]
        %v2694 = vld [vmem:[%s5 + $0x1d8] sm:$0xff]
        %v2695 = vld [vmem:[%s5 + $0x1e0] sm:$0xff]
        %v2696 = vld [vmem:[%s5 + $0x1e8] sm:$0xff]
        %v2697 = vld [vmem:[%s5 + $0x1f0] sm:$0xff]
        %v2698 = vld [vmem:[%s5 + $0x1f8] sm:$0xff]
        %v2699 = vld [vmem:[%s5 + $0x200] sm:$0xff]
        %v2700 = vld [vmem:[%s5 + $0x208] sm:$0xff]
        %v2701 = vld [vmem:[%s5 + $0x210] sm:$0xff]
        %v2702 = vld [vmem:[%s5 + $0x218] sm:$0xff]
        %v2703 = vld [vmem:[%s5 + $0x220] sm:$0xff]
        %v2704 = vld [vmem:[%s5 + $0x228] sm:$0xff]
        %v2705 = vld [vmem:[%s5 + $0x230] sm:$0xff]
        %v2706 = vld [vmem:[%s5 + $0x238] sm:$0xff]
        %v2707 = vld [vmem:[%s5 + $0x240] sm:$0xff]
        %v2708 = vld [vmem:[%s5 + $0x248] sm:$0xff]
        %v2709 = vld [vmem:[%s5 + $0x250] sm:$0xff]
        %v2710 = vld [vmem:[%s5 + $0x258] sm:$0xff]
        %v2711 = vld [vmem:[%s5 + $0x260] sm:$0xff]
        %v2712 = vld [vmem:[%s5 + $0x268] sm:$0xff]
        %v2713 = vld [vmem:[%s5 + $0x270] sm:$0xff]
        %v2714 = vld [vmem:[%s5 + $0x278] sm:$0xff]
        %v2715 = vld [vmem:[%s5 + $0x280] sm:$0xff]
        %v2716 = vld [vmem:[%s5 + $0x288] sm:$0xff]
        %v2717 = vld [vmem:[%s5 + $0x290] sm:$0xff]
        %v2718 = vld [vmem:[%s5 + $0x298] sm:$0xff]
        %v2719 = vld [vmem:[%s5 + $0x2a0] sm:$0xff]
        %v2720 = vld [vmem:[%s5 + $0x2a8] sm:$0xff]
        %v2721 = vld [vmem:[%s5 + $0x2b0] sm:$0xff]
        %v2722 = vld [vmem:[%s5 + $0x2b8] sm:$0xff]
        %v2723 = vld [vmem:[%s5 + $0x2c0] sm:$0xff]
        %v2724 = vld [vmem:[%s5 + $0x2c8] sm:$0xff]
        %v2725 = vld [vmem:[%s5 + $0x2d0] sm:$0xff]
        %v2726 = vld [vmem:[%s5 + $0x2d8] sm:$0xff]
        %v2727 = vld [vmem:[%s5 + $0x2e0] sm:$0xff]
        %v2728 = vld [vmem:[%s5 + $0x2e8] sm:$0xff]
        %v2729 = vld [vmem:[%s5 + $0x2f0] sm:$0xff]
        %v2730 = vld [vmem:[%s5 + $0x2f8] sm:$0xff]
        %v2731 = vld [vmem:[%s5 + $0x300] sm:$0xff]
        %v2732 = vld [vmem:[%s5 + $0x308] sm:$0xff]
        %v2733 = vld [vmem:[%s5 + $0x310] sm:$0xff]
        %v2734 = vld [vmem:[%s5 + $0x318] sm:$0xff]
        %v2735 = vld [vmem:[%s6] sm:$0x1]
        %v2737 = vlaneseq
        %v2738 = vshrl.u32 %v2737, 7
        %v2739 = vsub.s32 0, %v2738
        %v2740 = vrot.slane %v2735, %v2739
        %v2746 = vcombine.high %v2631, %v2631
        %v2747 = vcombine.high %v2632, %v2632
        %v2748 = vcombine.high %v2633, %v2633
        %v2752 = vsel %vm976, %v2634, 0
        %2754 = vmatprep.subr.mxu0 0.0
        %2755 = vmatpush1.msra.mxu0 %v2635
        %2756 = vmatprep.subr.mxu0 0.0
        %2757 = vmatpush1.msra.mxu0 %v2636
        %2758 = vmatprep.subr.mxu0 0.0
        %2759 = vmatpush1.msra.mxu0 %v2637
        %2760 = vmatprep.subr.mxu0 0.0
        %2761 = vmatpush1.msra.mxu0 %v2638
        %2762 = vmatprep.subr.mxu0 0.0
        %2763 = vmatpush1.msra.mxu0 %v2639
        %2764 = vmatprep.subr.mxu0 0.0
        %2765 = vmatpush1.msra.mxu0 %v2640
        %2766 = vmatprep.subr.mxu0 0.0
        %2767 = vmatpush1.msra.mxu0 %v2641
        %2768 = vmatprep.subr.mxu0 0.0
        %2769 = vmatpush1.msra.mxu0 %v2642
        %2770 = vmatprep.subr.mxu0 0.0
        %2771 = vmatpush1.msra.mxu0 %v2643
        %2772 = vmatprep.subr.mxu0 0.0
        %2773 = vmatpush1.msra.mxu0 %v2644
        %2774 = vmatprep.subr.mxu0 0.0
        %2775 = vmatpush1.msra.mxu0 %v2645
        %2776 = vmatprep.subr.mxu0 0.0
        %2777 = vmatpush1.msra.mxu0 %v2646
        %2778 = vmatprep.subr.mxu0 0.0
        %2779 = vmatpush1.msra.mxu0 %v2647
        %2780 = vmatprep.subr.mxu0 0.0
        %2781 = vmatpush1.msra.mxu0 %v2648
        %2782 = vmatprep.subr.mxu0 0.0
        %2783 = vmatpush1.msra.mxu0 %v2649
        %2784 = vmatprep.subr.mxu0 0.0
        %2785 = vmatpush1.msra.mxu0 %v2650
        %2786 = vmatprep.subr.mxu0 0.0
        %2787 = vmatpush1.msra.mxu0 %v2651
        %2788 = vmatprep.subr.mxu0 0.0
        %2789 = vmatpush1.msra.mxu0 %v2652
        %2790 = vmatprep.subr.mxu0 0.0
        %2791 = vmatpush1.msra.mxu0 %v2653
        %2792 = vmatprep.subr.mxu0 0.0
        %2793 = vmatpush1.msra.mxu0 %v2654
        %2794 = vmatprep.subr.mxu0 0.0
        %2795 = vmatpush1.msra.mxu0 %v2655
        %2796 = vmatprep.subr.mxu0 0.0
        %2797 = vmatpush1.msra.mxu0 %v2656
        %2798 = vmatprep.subr.mxu0 0.0
        %2799 = vmatpush1.msra.mxu0 %v2657
        %2800 = vmatprep.subr.mxu0 0.0
        %2801 = vmatpush1.msra.mxu0 %v2658
        %2802 = vmatprep.subr.mxu0 0.0
        %2803 = vmatpush1.msra.mxu0 %v2659
        %2804 = vmatprep.subr.mxu0 0.0
        %2805 = vmatpush1.msra.mxu0 %v2660
        %2806 = vmatprep.subr.mxu0 0.0
        %2807 = vmatpush1.msra.mxu0 %v2661
        %2808 = vmatprep.subr.mxu0 0.0
        %2809 = vmatpush1.msra.mxu0 %v2662
        %2810 = vmatprep.subr.mxu0 0.0
        %2811 = vmatpush1.msra.mxu0 %v2663
        %2812 = vmatprep.subr.mxu0 0.0
        %2813 = vmatpush1.msra.mxu0 %v2664
        %2814 = vmatprep.subr.mxu0 0.0
        %2815 = vmatpush1.msra.mxu0 %v2665
        %2816 = vmatprep.subr.mxu0 0.0
        %2817 = vmatpush1.msra.mxu0 %v2666
        %2818 = vmatprep.mubr.f32.mxu0 %v2746
        %2819 = vmatmul.mubr.f32.gmra.mrb[0].mxu0 %v2631
        %v2820 = vpop.f32.mrb[0].mxu0
        %v2821 = vadd.f32 %v2740, %v2820
        %v2822 = vpop.f32.mrb[0].mxu0
        %2823 = vdwg.mxu0
        %2824 = vmatprep.subr.mxu0 0.0
        %2825 = vmatpush1.msra.mxu0 %v2667
        %2826 = vmatprep.subr.mxu0 0.0
        %2827 = vmatpush1.msra.mxu0 %v2668
        %2828 = vmatprep.subr.mxu0 0.0
        %2829 = vmatpush1.msra.mxu0 %v2669
        %2830 = vmatprep.subr.mxu0 0.0
        %2831 = vmatpush1.msra.mxu0 %v2670
        %2832 = vmatprep.subr.mxu0 0.0
        %2833 = vmatpush1.msra.mxu0 %v2671
        %2834 = vmatprep.subr.mxu0 0.0
        %2835 = vmatpush1.msra.mxu0 %v2672
        %2836 = vmatprep.subr.mxu0 0.0
        %2837 = vmatpush1.msra.mxu0 %v2673
        %2838 = vmatprep.subr.mxu0 0.0
        %2839 = vmatpush1.msra.mxu0 %v2674
        %2840 = vmatprep.subr.mxu0 0.0
        %2841 = vmatpush1.msra.mxu0 %v2675
        %2842 = vmatprep.subr.mxu0 0.0
        %2843 = vmatpush1.msra.mxu0 %v2676
        %2844 = vmatprep.subr.mxu0 0.0
        %2845 = vmatpush1.msra.mxu0 %v2677
        %2846 = vmatprep.subr.mxu0 0.0
        %2847 = vmatpush1.msra.mxu0 %v2678
        %2848 = vmatprep.subr.mxu0 0.0
        %2849 = vmatpush1.msra.mxu0 %v2679
        %2850 = vmatprep.subr.mxu0 0.0
        %2851 = vmatpush1.msra.mxu0 %v2680
        %2852 = vmatprep.subr.mxu0 0.0
        %2853 = vmatpush1.msra.mxu0 %v2681
        %2854 = vmatprep.subr.mxu0 0.0
        %2855 = vmatpush1.msra.mxu0 %v2682
        %2856 = vmatprep.subr.mxu0 0.0
        %2857 = vmatpush1.msra.mxu0 %v2683
        %2858 = vmatprep.subr.mxu0 0.0
        %2859 = vmatpush1.msra.mxu0 %v2684
        %2860 = vmatprep.subr.mxu0 0.0
        %2861 = vmatpush1.msra.mxu0 %v2685
        %2862 = vmatprep.subr.mxu0 0.0
        %2863 = vmatpush1.msra.mxu0 %v2686
        %2864 = vmatprep.subr.mxu0 0.0
        %2865 = vmatpush1.msra.mxu0 %v2687
        %2866 = vmatprep.subr.mxu0 0.0
        %2867 = vmatpush1.msra.mxu0 %v2688
        %2868 = vmatprep.subr.mxu0 0.0
        %2869 = vmatpush1.msra.mxu0 %v2689
        %2870 = vmatprep.subr.mxu0 0.0
        %2871 = vmatpush1.msra.mxu0 %v2690
        %2872 = vmatprep.subr.mxu0 0.0
        %2873 = vmatpush1.msra.mxu0 %v2691
        %2874 = vmatprep.subr.mxu0 0.0
        %2875 = vmatpush1.msra.mxu0 %v2692
        %2876 = vmatprep.subr.mxu0 0.0
        %2877 = vmatpush1.msra.mxu0 %v2693
        %2878 = vmatprep.subr.mxu0 0.0
        %2879 = vmatpush1.msra.mxu0 %v2694
        %2880 = vmatprep.subr.mxu0 0.0
        %2881 = vmatpush1.msra.mxu0 %v2695
        %2882 = vmatprep.subr.mxu0 0.0
        %2883 = vmatpush1.msra.mxu0 %v2696
        %2884 = vmatprep.subr.mxu0 0.0
        %2885 = vmatpush1.msra.mxu0 %v2697
        %2886 = vmatprep.subr.mxu0 0.0
        %2887 = vmatpush1.msra.mxu0 %v2698
        %2888 = vmatprep.mubr.f32.mxu0 %v2747
        %2889 = vmatmul.mubr.f32.gmra.mrb[0].mxu0 %v2632
        %v2890 = vpop.f32.mrb[0].mxu0
        %v2891 = vadd.f32 %v2821, %v2890
        %v2892 = vpop.f32.mrb[0].mxu0
        %2893 = vdwg.mxu0
        %2894 = vmatprep.subr.mxu0 0.0
        %2895 = vmatpush1.msra.mxu0 %v2699
        %2896 = vmatprep.subr.mxu0 0.0
        %2897 = vmatpush1.msra.mxu0 %v2700
        %2898 = vmatprep.subr.mxu0 0.0
        %2899 = vmatpush1.msra.mxu0 %v2701
        %2900 = vmatprep.subr.mxu0 0.0
        %2901 = vmatpush1.msra.mxu0 %v2702
        %2902 = vmatprep.subr.mxu0 0.0
        %2903 = vmatpush1.msra.mxu0 %v2703
        %2904 = vmatprep.subr.mxu0 0.0
        %2905 = vmatpush1.msra.mxu0 %v2704
        %2906 = vmatprep.subr.mxu0 0.0
        %2907 = vmatpush1.msra.mxu0 %v2705
        %2908 = vmatprep.subr.mxu0 0.0
        %2909 = vmatpush1.msra.mxu0 %v2706
        %2910 = vmatprep.subr.mxu0 0.0
        %2911 = vmatpush1.msra.mxu0 %v2707
        %2912 = vmatprep.subr.mxu0 0.0
        %2913 = vmatpush1.msra.mxu0 %v2708
        %2914 = vmatprep.subr.mxu0 0.0
        %2915 = vmatpush1.msra.mxu0 %v2709
        %2916 = vmatprep.subr.mxu0 0.0
        %2917 = vmatpush1.msra.mxu0 %v2710
        %2918 = vmatprep.subr.mxu0 0.0
        %2919 = vmatpush1.msra.mxu0 %v2711
        %2920 = vmatprep.subr.mxu0 0.0
        %2921 = vmatpush1.msra.mxu0 %v2712
        %2922 = vmatprep.subr.mxu0 0.0
        %2923 = vmatpush1.msra.mxu0 %v2713
        %2924 = vmatprep.subr.mxu0 0.0
        %2925 = vmatpush1.msra.mxu0 %v2714
        %2926 = vmatprep.subr.mxu0 0.0
        %2927 = vmatpush1.msra.mxu0 %v2715
        %2928 = vmatprep.subr.mxu0 0.0
        %2929 = vmatpush1.msra.mxu0 %v2716
        %2930 = vmatprep.subr.mxu0 0.0
        %2931 = vmatpush1.msra.mxu0 %v2717
        %2932 = vmatprep.subr.mxu0 0.0
        %2933 = vmatpush1.msra.mxu0 %v2718
        %2934 = vmatprep.subr.mxu0 0.0
        %2935 = vmatpush1.msra.mxu0 %v2719
        %2936 = vmatprep.subr.mxu0 0.0
        %2937 = vmatpush1.msra.mxu0 %v2720
        %2938 = vmatprep.subr.mxu0 0.0
        %2939 = vmatpush1.msra.mxu0 %v2721
        %2940 = vmatprep.subr.mxu0 0.0
        %2941 = vmatpush1.msra.mxu0 %v2722
        %2942 = vmatprep.subr.mxu0 0.0
        %2943 = vmatpush1.msra.mxu0 %v2723
        %2944 = vmatprep.subr.mxu0 0.0
        %2945 = vmatpush1.msra.mxu0 %v2724
        %2946 = vmatprep.subr.mxu0 0.0
        %2947 = vmatpush1.msra.mxu0 %v2725
        %2948 = vmatprep.subr.mxu0 0.0
        %2949 = vmatpush1.msra.mxu0 %v2726
        %2950 = vmatprep.subr.mxu0 0.0
        %2951 = vmatpush1.msra.mxu0 %v2727
        %2952 = vmatprep.subr.mxu0 0.0
        %2953 = vmatpush1.msra.mxu0 %v2728
        %2954 = vmatprep.subr.mxu0 0.0
        %2955 = vmatpush1.msra.mxu0 %v2729
        %2956 = vmatprep.subr.mxu0 0.0
        %2957 = vmatpush1.msra.mxu0 %v2730
        %2958 = vmatprep.mubr.f32.mxu0 %v2748
        %2959 = vmatmul.mubr.f32.gmra.mrb[0].mxu0 %v2633
        %v2960 = vpop.f32.mrb[0].mxu0
        %v2961 = vadd.f32 %v2891, %v2960
        %v2962 = vpop.f32.mrb[0].mxu0
        %2963 = vdwg.mxu0
        %2964 = vmatprep.subr.mxu0 0.0
        %2965 = vmatpush1.msra.mxu0 %v2731
        %2966 = vmatprep.subr.mxu0 0.0
        %2967 = vmatpush1.msra.mxu0 %v2732
        %2968 = vmatprep.subr.mxu0 0.0
        %2969 = vmatpush1.msra.mxu0 %v2733
        %2970 = vmatprep.subr.mxu0 0.0
        %2971 = vmatpush1.msra.mxu0 %v2734
        %2972 = vmatprep.subr.mxu0 0.0
        %2973 = vmatpush1.msra.mxu0 0.0
        %2974 = vmatprep.subr.mxu0 0.0
        %2975 = vmatpush1.msra.mxu0 0.0
        %2976 = vmatprep.subr.mxu0 0.0
        %2977 = vmatpush1.msra.mxu0 0.0
        %2978 = vmatprep.subr.mxu0 0.0
        %2979 = vmatpush1.msra.mxu0 0.0
        %2980 = vmatprep.subr.mxu0 0.0
        %2981 = vmatpush1.msra.mxu0 0.0
        %2982 = vmatprep.subr.mxu0 0.0
        %2983 = vmatpush1.msra.mxu0 0.0
        %2984 = vmatprep.subr.mxu0 0.0
        %2985 = vmatpush1.msra.mxu0 0.0
        %2986 = vmatprep.subr.mxu0 0.0
        %2987 = vmatpush1.msra.mxu0 0.0
        %2988 = vmatprep.subr.mxu0 0.0
        %2989 = vmatpush1.msra.mxu0 0.0
        %2990 = vmatprep.subr.mxu0 0.0
        %2991 = vmatpush1.msra.mxu0 0.0
        %2992 = vmatprep.subr.mxu0 0.0
        %2993 = vmatpush1.msra.mxu0 0.0
        %2994 = vmatprep.subr.mxu0 0.0
        %2995 = vmatpush1.msra.mxu0 0.0
        %2996 = vmatprep.subr.mxu0 0.0
        %2997 = vmatpush1.msra.mxu0 0.0
        %2998 = vmatprep.subr.mxu0 0.0
        %2999 = vmatpush1.msra.mxu0 0.0
        %3000 = vmatprep.subr.mxu0 0.0
        %3001 = vmatpush1.msra.mxu0 0.0
        %3002 = vmatprep.subr.mxu0 0.0
        %3003 = vmatpush1.msra.mxu0 0.0
        %3004 = vmatprep.subr.mxu0 0.0
        %3005 = vmatpush1.msra.mxu0 0.0
        %3006 = vmatprep.subr.mxu0 0.0
        %3007 = vmatpush1.msra.mxu0 0.0
        %3008 = vmatprep.subr.mxu0 0.0
        %3009 = vmatpush1.msra.mxu0 0.0
        %3010 = vmatprep.subr.mxu0 0.0
        %3011 = vmatpush1.msra.mxu0 0.0
        %3012 = vmatprep.subr.mxu0 0.0
        %3013 = vmatpush1.msra.mxu0 0.0
        %3014 = vmatprep.subr.mxu0 0.0
        %3015 = vmatpush1.msra.mxu0 0.0
        %3016 = vmatprep.subr.mxu0 0.0
        %3017 = vmatpush1.msra.mxu0 0.0
        %3018 = vmatprep.subr.mxu0 0.0
        %3019 = vmatpush1.msra.mxu0 0.0
        %3020 = vmatprep.subr.mxu0 0.0
        %3021 = vmatpush1.msra.mxu0 0.0
        %3022 = vmatprep.subr.mxu0 0.0
        %3023 = vmatpush1.msra.mxu0 0.0
        %3024 = vmatprep.subr.mxu0 0.0
        %3025 = vmatpush1.msra.mxu0 0.0
        %3026 = vmatprep.subr.mxu0 0.0
        %3027 = vmatpush1.msra.mxu0 0.0
        %3028 = vmatprep.mubr.f32.mxu0 0.0
        %3029 = vmatmul.mubr.f32.gmra.mrb[0].mxu0 %v2752
        %v3030 = vpop.f32.mrb[0].mxu0
        %v3031 = vadd.f32 %v2961, %v3030
        %v3032 = vpop.f32.mrb[0].mxu0
        %3033 = vdwg.mxu0
        %v3034 = vmax.f32 %v3031, 0.0
        %v3035 = vld [vmem:[%s8] sm:$0x1]
        %v3036 = vld [vmem:[%s7] sm:$0xff]
        %v3037 = vld [vmem:[%s7 + $0x8] sm:$0xff]
        %v3038 = vld [vmem:[%s7 + $0x10] sm:$0xff]
        %v3039 = vld [vmem:[%s7 + $0x18] sm:$0xff]
        %v3041 = vsel %vm976, %v3034, 0
        %3043 = vmatprep.subr.mxu0 0.0
        %3044 = vmatpush1.msra.mxu0 %v3036
        %3045 = vmatprep.subr.mxu0 0.0
        %3046 = vmatpush1.msra.mxu0 %v3037
        %3047 = vmatprep.subr.mxu0 0.0
        %3048 = vmatpush1.msra.mxu0 %v3038
        %3049 = vmatprep.subr.mxu0 0.0
        %3050 = vmatpush1.msra.mxu0 %v3039
        %3051 = vmatprep.subr.mxu0 0.0
        %3052 = vmatpush1.msra.mxu0 0.0
        %3053 = vmatprep.subr.mxu0 0.0
        %3054 = vmatpush1.msra.mxu0 0.0
        %3055 = vmatprep.subr.mxu0 0.0
        %3056 = vmatpush1.msra.mxu0 0.0
        %3057 = vmatprep.subr.mxu0 0.0
        %3058 = vmatpush1.msra.mxu0 0.0
        %3059 = vmatprep.subr.mxu0 0.0
        %3060 = vmatpush1.msra.mxu0 0.0
        %3061 = vmatprep.subr.mxu0 0.0
        %3062 = vmatpush1.msra.mxu0 0.0
        %3063 = vmatprep.subr.mxu0 0.0
        %3064 = vmatpush1.msra.mxu0 0.0
        %3065 = vmatprep.subr.mxu0 0.0
        %3066 = vmatpush1.msra.mxu0 0.0
        %3067 = vmatprep.subr.mxu0 0.0
        %3068 = vmatpush1.msra.mxu0 0.0
        %3069 = vmatprep.subr.mxu0 0.0
        %3070 = vmatpush1.msra.mxu0 0.0
        %3071 = vmatprep.subr.mxu0 0.0
        %3072 = vmatpush1.msra.mxu0 0.0
        %3073 = vmatprep.subr.mxu0 0.0
        %3074 = vmatpush1.msra.mxu0 0.0
        %3075 = vmatprep.subr.mxu0 0.0
        %3076 = vmatpush1.msra.mxu0 0.0
        %3077 = vmatprep.subr.mxu0 0.0
        %3078 = vmatpush1.msra.mxu0 0.0
        %3079 = vmatprep.subr.mxu0 0.0
        %3080 = vmatpush1.msra.mxu0 0.0
        %3081 = vmatprep.subr.mxu0 0.0
        %3082 = vmatpush1.msra.mxu0 0.0
        %3083 = vmatprep.subr.mxu0 0.0
        %3084 = vmatpush1.msra.mxu0 0.0
        %3085 = vmatprep.subr.mxu0 0.0
        %3086 = vmatpush1.msra.mxu0 0.0
        %3087 = vmatprep.subr.mxu0 0.0
        %3088 = vmatpush1.msra.mxu0 0.0
        %3089 = vmatprep.subr.mxu0 0.0
        %3090 = vmatpush1.msra.mxu0 0.0
        %3091 = vmatprep.subr.mxu0 0.0
        %3092 = vmatpush1.msra.mxu0 0.0
        %3093 = vmatprep.subr.mxu0 0.0
        %3094 = vmatpush1.msra.mxu0 0.0
        %3095 = vmatprep.subr.mxu0 0.0
        %3096 = vmatpush1.msra.mxu0 0.0
        %3097 = vmatprep.subr.mxu0 0.0
        %3098 = vmatpush1.msra.mxu0 0.0
        %3099 = vmatprep.subr.mxu0 0.0
        %3100 = vmatpush1.msra.mxu0 0.0
        %3101 = vmatprep.subr.mxu0 0.0
        %3102 = vmatpush1.msra.mxu0 0.0
        %3103 = vmatprep.subr.mxu0 0.0
        %3104 = vmatpush1.msra.mxu0 0.0
        %3105 = vmatprep.subr.mxu0 0.0
        %3106 = vmatpush1.msra.mxu0 0.0
        %3107 = vmatprep.mubr.f32.mxu0 0.0
        %3108 = vmatmul.mubr.f32.gmra.mrb[0].mxu0 %v3041
        %v3109 = vpop.f32.mrb[0].mxu0
        %v3110 = vadd.f32 0.0, %v3109
        %v3111 = vpop.f32.mrb[0].mxu0
        %3112 = vdwg.mxu0
        %v3113 = vadd.f32 %v3035, %v3110
        %v3114 = vld [vmem:[%s7 + $0x20] sm:$0xff]
        %v3115 = vld [vmem:[%s7 + $0x28] sm:$0xff]
        %v3116 = vld [vmem:[%s7 + $0x30] sm:$0xff]
        %v3117 = vld [vmem:[%s7 + $0x38] sm:$0xff]
        %v3118 = vrot.slane %v3034, 1
        %v3119 = vsel %vm976, %v3118, 0
        %3121 = vmatprep.subr.mxu0 0.0
        %3122 = vmatpush1.msra.mxu0 %v3114
        %3123 = vmatprep.subr.mxu0 0.0
        %3124 = vmatpush1.msra.mxu0 %v3115
        %3125 = vmatprep.subr.mxu0 0.0
        %3126 = vmatpush1.msra.mxu0 %v3116
        %3127 = vmatprep.subr.mxu0 0.0
        %3128 = vmatpush1.msra.mxu0 %v3117
        %3129 = vmatprep.subr.mxu0 0.0
        %3130 = vmatpush1.msra.mxu0 0.0
        %3131 = vmatprep.subr.mxu0 0.0
        %3132 = vmatpush1.msra.mxu0 0.0
        %3133 = vmatprep.subr.mxu0 0.0
        %3134 = vmatpush1.msra.mxu0 0.0
        %3135 = vmatprep.subr.mxu0 0.0
        %3136 = vmatpush1.msra.mxu0 0.0
        %3137 = vmatprep.subr.mxu0 0.0
        %3138 = vmatpush1.msra.mxu0 0.0
        %3139 = vmatprep.subr.mxu0 0.0
        %3140 = vmatpush1.msra.mxu0 0.0
        %3141 = vmatprep.subr.mxu0 0.0
        %3142 = vmatpush1.msra.mxu0 0.0
        %3143 = vmatprep.subr.mxu0 0.0
        %3144 = vmatpush1.msra.mxu0 0.0
        %3145 = vmatprep.subr.mxu0 0.0
        %3146 = vmatpush1.msra.mxu0 0.0
        %3147 = vmatprep.subr.mxu0 0.0
        %3148 = vmatpush1.msra.mxu0 0.0
        %3149 = vmatprep.subr.mxu0 0.0
        %3150 = vmatpush1.msra.mxu0 0.0
        %3151 = vmatprep.subr.mxu0 0.0
        %3152 = vmatpush1.msra.mxu0 0.0
        %3153 = vmatprep.subr.mxu0 0.0
        %3154 = vmatpush1.msra.mxu0 0.0
        %3155 = vmatprep.subr.mxu0 0.0
        %3156 = vmatpush1.msra.mxu0 0.0
        %3157 = vmatprep.subr.mxu0 0.0
        %3158 = vmatpush1.msra.mxu0 0.0
        %3159 = vmatprep.subr.mxu0 0.0
        %3160 = vmatpush1.msra.mxu0 0.0
        %3161 = vmatprep.subr.mxu0 0.0
        %3162 = vmatpush1.msra.mxu0 0.0
        %3163 = vmatprep.subr.mxu0 0.0
        %3164 = vmatpush1.msra.mxu0 0.0
        %3165 = vmatprep.subr.mxu0 0.0
        %3166 = vmatpush1.msra.mxu0 0.0
        %3167 = vmatprep.subr.mxu0 0.0
        %3168 = vmatpush1.msra.mxu0 0.0
        %3169 = vmatprep.subr.mxu0 0.0
        %3170 = vmatpush1.msra.mxu0 0.0
        %3171 = vmatprep.subr.mxu0 0.0
        %3172 = vmatpush1.msra.mxu0 0.0
        %3173 = vmatprep.subr.mxu0 0.0
        %3174 = vmatpush1.msra.mxu0 0.0
        %3175 = vmatprep.subr.mxu0 0.0
        %3176 = vmatpush1.msra.mxu0 0.0
        %3177 = vmatprep.subr.mxu0 0.0
        %3178 = vmatpush1.msra.mxu0 0.0
        %3179 = vmatprep.subr.mxu0 0.0
        %3180 = vmatpush1.msra.mxu0 0.0
        %3181 = vmatprep.subr.mxu0 0.0
        %3182 = vmatpush1.msra.mxu0 0.0
        %3183 = vmatprep.subr.mxu0 0.0
        %3184 = vmatpush1.msra.mxu0 0.0
        %3185 = vmatprep.mubr.f32.mxu0 0.0
        %3186 = vmatmul.mubr.f32.gmra.mrb[0].mxu0 %v3119
        %v3187 = vpop.f32.mrb[0].mxu0
        %v3188 = vadd.f32 0.0, %v3187
        %v3189 = vpop.f32.mrb[0].mxu0
        %3190 = vdwg.mxu0
        %v3191 = vadd.f32 %v3113, %v3188
        %v3192 = vld [vmem:[%s7 + $0x40] sm:$0xff]
        %v3193 = vld [vmem:[%s7 + $0x48] sm:$0xff]
        %v3194 = vld [vmem:[%s7 + $0x50] sm:$0xff]
        %v3195 = vld [vmem:[%s7 + $0x58] sm:$0xff]
        %v3196 = vrot.slane %v3034, 2
        %v3197 = vsel %vm976, %v3196, 0
        %3199 = vmatprep.subr.mxu0 0.0
        %3200 = vmatpush1.msra.mxu0 %v3192
        %3201 = vmatprep.subr.mxu0 0.0
        %3202 = vmatpush1.msra.mxu0 %v3193
        %3203 = vmatprep.subr.mxu0 0.0
        %3204 = vmatpush1.msra.mxu0 %v3194
        %3205 = vmatprep.subr.mxu0 0.0
        %3206 = vmatpush1.msra.mxu0 %v3195
        %3207 = vmatprep.subr.mxu0 0.0
        %3208 = vmatpush1.msra.mxu0 0.0
        %3209 = vmatprep.subr.mxu0 0.0
        %3210 = vmatpush1.msra.mxu0 0.0
        %3211 = vmatprep.subr.mxu0 0.0
        %3212 = vmatpush1.msra.mxu0 0.0
        %3213 = vmatprep.subr.mxu0 0.0
        %3214 = vmatpush1.msra.mxu0 0.0
        %3215 = vmatprep.subr.mxu0 0.0
        %3216 = vmatpush1.msra.mxu0 0.0
        %3217 = vmatprep.subr.mxu0 0.0
        %3218 = vmatpush1.msra.mxu0 0.0
        %3219 = vmatprep.subr.mxu0 0.0
        %3220 = vmatpush1.msra.mxu0 0.0
        %3221 = vmatprep.subr.mxu0 0.0
        %3222 = vmatpush1.msra.mxu0 0.0
        %3223 = vmatprep.subr.mxu0 0.0
        %3224 = vmatpush1.msra.mxu0 0.0
        %3225 = vmatprep.subr.mxu0 0.0
        %3226 = vmatpush1.msra.mxu0 0.0
        %3227 = vmatprep.subr.mxu0 0.0
        %3228 = vmatpush1.msra.mxu0 0.0
        %3229 = vmatprep.subr.mxu0 0.0
        %3230 = vmatpush1.msra.mxu0 0.0
        %3231 = vmatprep.subr.mxu0 0.0
        %3232 = vmatpush1.msra.mxu0 0.0
        %3233 = vmatprep.subr.mxu0 0.0
        %3234 = vmatpush1.msra.mxu0 0.0
        %3235 = vmatprep.subr.mxu0 0.0
        %3236 = vmatpush1.msra.mxu0 0.0
        %3237 = vmatprep.subr.mxu0 0.0
        %3238 = vmatpush1.msra.mxu0 0.0
        %3239 = vmatprep.subr.mxu0 0.0
        %3240 = vmatpush1.msra.mxu0 0.0
        %3241 = vmatprep.subr.mxu0 0.0
        %3242 = vmatpush1.msra.mxu0 0.0
        %3243 = vmatprep.subr.mxu0 0.0
        %3244 = vmatpush1.msra.mxu0 0.0
        %3245 = vmatprep.subr.mxu0 0.0
        %3246 = vmatpush1.msra.mxu0 0.0
        %3247 = vmatprep.subr.mxu0 0.0
        %3248 = vmatpush1.msra.mxu0 0.0
        %3249 = vmatprep.subr.mxu0 0.0
        %3250 = vmatpush1.msra.mxu0 0.0
        %3251 = vmatprep.subr.mxu0 0.0
        %3252 = vmatpush1.msra.mxu0 0.0
        %3253 = vmatprep.subr.mxu0 0.0
        %3254 = vmatpush1.msra.mxu0 0.0
        %3255 = vmatprep.subr.mxu0 0.0
        %3256 = vmatpush1.msra.mxu0 0.0
        %3257 = vmatprep.subr.mxu0 0.0
        %3258 = vmatpush1.msra.mxu0 0.0
        %3259 = vmatprep.subr.mxu0 0.0
        %3260 = vmatpush1.msra.mxu0 0.0
        %3261 = vmatprep.subr.mxu0 0.0
        %3262 = vmatpush1.msra.mxu0 0.0
        %3263 = vmatprep.mubr.f32.mxu0 0.0
        %3264 = vmatmul.mubr.f32.gmra.mrb[0].mxu0 %v3197
        %v3265 = vpop.f32.mrb[0].mxu0
        %v3266 = vadd.f32 0.0, %v3265
        %v3267 = vpop.f32.mrb[0].mxu0
        %3268 = vdwg.mxu0
        %v3269 = vadd.f32 %v3191, %v3266
        %v3270 = vld [vmem:[%s7 + $0x60] sm:$0xff]
        %v3271 = vld [vmem:[%s7 + $0x68] sm:$0xff]
        %v3272 = vld [vmem:[%s7 + $0x70] sm:$0xff]
        %v3273 = vld [vmem:[%s7 + $0x78] sm:$0xff]
        %v3274 = vrot.slane %v3034, 3
        %v3275 = vsel %vm976, %v3274, 0
        %3277 = vmatprep.subr.mxu0 0.0
        %3278 = vmatpush1.msra.mxu0 %v3270
        %3279 = vmatprep.subr.mxu0 0.0
        %3280 = vmatpush1.msra.mxu0 %v3271
        %3281 = vmatprep.subr.mxu0 0.0
        %3282 = vmatpush1.msra.mxu0 %v3272
        %3283 = vmatprep.subr.mxu0 0.0
        %3284 = vmatpush1.msra.mxu0 %v3273
        %3285 = vmatprep.subr.mxu0 0.0
        %3286 = vmatpush1.msra.mxu0 0.0
        %3287 = vmatprep.subr.mxu0 0.0
        %3288 = vmatpush1.msra.mxu0 0.0
        %3289 = vmatprep.subr.mxu0 0.0
        %3290 = vmatpush1.msra.mxu0 0.0
        %3291 = vmatprep.subr.mxu0 0.0
        %3292 = vmatpush1.msra.mxu0 0.0
        %3293 = vmatprep.subr.mxu0 0.0
        %3294 = vmatpush1.msra.mxu0 0.0
        %3295 = vmatprep.subr.mxu0 0.0
        %3296 = vmatpush1.msra.mxu0 0.0
        %3297 = vmatprep.subr.mxu0 0.0
        %3298 = vmatpush1.msra.mxu0 0.0
        %3299 = vmatprep.subr.mxu0 0.0
        %3300 = vmatpush1.msra.mxu0 0.0
        %3301 = vmatprep.subr.mxu0 0.0
        %3302 = vmatpush1.msra.mxu0 0.0
        %3303 = vmatprep.subr.mxu0 0.0
        %3304 = vmatpush1.msra.mxu0 0.0
        %3305 = vmatprep.subr.mxu0 0.0
        %3306 = vmatpush1.msra.mxu0 0.0
        %3307 = vmatprep.subr.mxu0 0.0
        %3308 = vmatpush1.msra.mxu0 0.0
        %3309 = vmatprep.subr.mxu0 0.0
        %3310 = vmatpush1.msra.mxu0 0.0
        %3311 = vmatprep.subr.mxu0 0.0
        %3312 = vmatpush1.msra.mxu0 0.0
        %3313 = vmatprep.subr.mxu0 0.0
        %3314 = vmatpush1.msra.mxu0 0.0
        %3315 = vmatprep.subr.mxu0 0.0
        %3316 = vmatpush1.msra.mxu0 0.0
        %3317 = vmatprep.subr.mxu0 0.0
        %3318 = vmatpush1.msra.mxu0 0.0
        %3319 = vmatprep.subr.mxu0 0.0
        %3320 = vmatpush1.msra.mxu0 0.0
        %3321 = vmatprep.subr.mxu0 0.0
        %3322 = vmatpush1.msra.mxu0 0.0
        %3323 = vmatprep.subr.mxu0 0.0
        %3324 = vmatpush1.msra.mxu0 0.0
        %3325 = vmatprep.subr.mxu0 0.0
        %3326 = vmatpush1.msra.mxu0 0.0
        %3327 = vmatprep.subr.mxu0 0.0
        %3328 = vmatpush1.msra.mxu0 0.0
        %3329 = vmatprep.subr.mxu0 0.0
        %3330 = vmatpush1.msra.mxu0 0.0
        %3331 = vmatprep.subr.mxu0 0.0
        %3332 = vmatpush1.msra.mxu0 0.0
        %3333 = vmatprep.subr.mxu0 0.0
        %3334 = vmatpush1.msra.mxu0 0.0
        %3335 = vmatprep.subr.mxu0 0.0
        %3336 = vmatpush1.msra.mxu0 0.0
        %3337 = vmatprep.subr.mxu0 0.0
        %3338 = vmatpush1.msra.mxu0 0.0
        %3339 = vmatprep.subr.mxu0 0.0
        %3340 = vmatpush1.msra.mxu0 0.0
        %3341 = vmatprep.mubr.f32.mxu0 0.0
        %3342 = vmatmul.mubr.f32.gmra.mrb[0].mxu0 %v3275
        %v3343 = vpop.f32.mrb[0].mxu0
        %v3344 = vadd.f32 0.0, %v3343
        %v3345 = vpop.f32.mrb[0].mxu0
        %3346 = vdwg.mxu0
        %v3347 = vadd.f32 %v3269, %v3344
        %vm3348 = vcmask 24576
        %3349 = vst.msk [vmem:[%s324] sm:$0x1] %vm3348, %v3347
        %s3350 = sand.u32 %s225, 1
        %s3351 = scalar_lea.sflag [#allocation7], %s3350
        %s3352 = sand.u32 %s225, 1
        %s3353 = scalar_lea.vmem [#allocation6], %s3352
        // Predicated region
        $region57: #{dqn_forward.1} parent=55 // pred_check
          %p3354 = pneg %p235
        $region58: #{dqn_forward.1} parent=55 // pred_check_branch
          %3356 = sbr.rel (%p3354) target = $region60
        $region59: #{dqn_forward.1} parent=55 // pred_region
          %s3358 = ssub.s32 16, 16
          %3359 = vsyncadd %s3351, %s3358
          %s3360 = smul.addr %s23, 16
          %s3361 = scalar_lea.hbm %s9, %s3360
          %s3363 = sshll.u32 %s3353, 4
          %s3364 = int_to_ptr.vmem [resolvable:$true] %s3363
          %3366 = dma.vmem_to_hbm [thread:$0]  %s3364, 16, %s3361, %s3351
        $region60: #{dqn_forward.1} parent=55 // pred_fallthru
          _
      $region56: #{dqn_forward.1} parent=5 // pred_fallthru
        _
      %p3367 = scmp.le.s32.totalorder 2, %s18
      // Predicated region
      $region61: #{dqn_forward.1} parent=5 // pred_check
        %p3368 = pneg %p3367
      $region62: #{dqn_forward.1} parent=5 // pred_check_branch
        %3370 = sbr.rel (%p3368) target = $region64
      $region63: #{dqn_forward.1} parent=5 // pred_region
        %s3371 = ssub.s32 %s18, 2
        // Predicated region
        $region65: #{dqn_forward.1} parent=63 // pred_check
          %p3372 = pneg %p241
        $region66: #{dqn_forward.1} parent=63 // pred_check_branch
          %3374 = sbr.rel (%p3372) target = $region68
        $region67: #{dqn_forward.1} parent=63 // pred_region
          %s3375 = sand.u32 %s226, 1
          %s3376 = scalar_lea.sflag [#allocation7], %s3375
          %s3377 = sand.u32 %s226, 1
          %s3378 = scalar_lea.vmem [#allocation6], %s3377
          %3379 = dma.done %s3376, 16
        $region68: #{dqn_forward.1} parent=63 // pred_fallthru
          _
      $region64: #{dqn_forward.1} parent=5 // pred_fallthru
        _
    $region6: #{dqn_forward.1} parent=1 // loop_footer
      %s22 = sadd.s32 1, %s18
    $region7: #{dqn_forward.1} parent=1 // loop_footer_branch
      %17 = sbr.rel target = $region3
    $region8: #{dqn_forward.1} parent=1 // loop_exit
      _
    %3380 = vsyncpa [#allocation7], 1
    %s3381 = scalar_lea.sflag [#allocation7], 1
    %3382 = vsyncpa %s3381, 1

</llo_original>
